<compile_context>
chip_gen: v6e
topology: v6e:2x2x1
jax: 0.10.0
libtpu: 0.0.40
codegen_flags: <defaults>
</compile_context>

<pallas_src>
import numpy as np
import jax
import jax.numpy as jnp
from jax.experimental import pallas as pl
from jax.experimental.pallas import tpu as pltpu

N_LAYERS = 6       # len(mask)
HIDDEN = 64
DIM = 2
K_AUG = 8          # padded contraction dim of the fused layer-1 matmul
NEG_SLOPE = 0.01   # nn.LeakyReLU default negative_slope
MAX_TB = 4096      # batch-tile cap (multiple of 128)
_LOG_2PI = float(np.log(2.0 * np.pi))


def _leaky_relu(v):
    return jnp.where(v >= 0, v, NEG_SLOPE * v)


# ------------------------------ Pallas kernel --------------------------------
#
# Transposed layout: activations are (features, batch_tile); batch lives on the
# 128-lane axis.  Per layer i (static unroll, reversed, mask baked in):
#   j = 1 - (i % 2)  : the input column kept by mask[i]
#   u = i % 2        : the output column updated by the coupling (1 - mask[i])
#
# Packed params (stacked over the 6 layers):
#   w1b1 : (6, 128, 8) bf16  col0 = concat(sW1[j,:], tW1[j,:]), col1 = concat(sB1,tB1), rest 0
#   w2   : (6, 128, 128) bf16 = blockdiag(sW2, tW2)^T
#   b2   : (6, 128, 1) f32   = concat(sB2, tB2)
#   w3   : (6, 2, 128) bf16  row0 = [sW3[:,u], 0], row1 = [0, tW3[:,u]]
#   b3   : (6, 2, 1)  f32    = [sB3[u], tB3[u]]

def realnvp_logprob_kernel(w1b1_ref, w2_ref, b2_ref, w3_ref, b3_ref,
                           x_ref, out_ref):
    xT = x_ref[...].astype(jnp.float32)            # (2, tb), batch on lanes
    zc = [xT[0:1, :], xT[1:2, :]]                  # two (1, tb) rows
    log_det = jnp.zeros_like(zc[0])                # (1, tb)
    tb = zc[0].shape[1]

    # Hoisted constants: row-0 mask for the augmented layer-1 operand.
    # Rows 2..7 of `aug` multiply zero weight columns, so their content (1.0)
    # is irrelevant; row 1 must be the ones row that carries b1.
    row_ids = jax.lax.broadcasted_iota(jnp.int32, (K_AUG, tb), 0)
    row0_mask = row_ids == 0

    for i in reversed(range(N_LAYERS)):            # static unroll
        j = 1 - (i % 2)                            # masked-in (kept) column
        u = i % 2                                  # column updated by the coupling

        # fused s/t MLP; layer-1 + bias folded into one (128,8)@(8,tb) MXU dot
        aug = jnp.where(row0_mask, zc[j], 1.0).astype(jnp.bfloat16)       # (8, tb)
        h = _leaky_relu(jnp.dot(w1b1_ref[i], aug,
                                preferred_element_type=jnp.float32))      # (128, tb)
        h = _leaky_relu(jnp.dot(w2_ref[i], h.astype(jnp.bfloat16),
                                preferred_element_type=jnp.float32)
                        + b2_ref[i])                                      # (128, tb)
        pre = jnp.dot(w3_ref[i], h.astype(jnp.bfloat16),
                      preferred_element_type=jnp.float32) + b3_ref[i]     # (2, tb)

        s = jnp.tanh(pre[0:1, :])                  # surviving s column
        t = pre[1:2, :]                            # surviving t column

        # inverse affine coupling + log-det accumulation (all f32)
        zc[u] = (zc[u] - t) * jnp.exp(-s)
        log_det = log_det - s

    # prior = MultivariateNormal(zeros(2), eye(2)):
    #   log_prob(z) = -0.5*||z||^2 - (D/2)*log(2*pi)  with D == 2
    prior_lp = -0.5 * (zc[0] * zc[0] + zc[1] * zc[1]) - _LOG_2PI
    out_ref[...] = prior_lp + log_det              # lane-dense (1, tb) store


# ------------------------------ host wrapper ---------------------------------

def _round_up(n, m):
    return ((n + m - 1) // m) * m


def _choose_tb(B):
    """Lane-dense batch tile: multiple of 128, capped, even #steps when possible."""
    bp = _round_up(max(B, 1), 128)
    if bp <= 128:
        return 128                                 # tiny batch: one lane-dense tile
    n_tiles = max(2, (bp + MAX_TB - 1) // MAX_TB)  # >= 2 grid steps
    if n_tiles % 2:
        n_tiles += 1                               # even step count (v7x: 2 TCs)
    return min(MAX_TB, _round_up((bp + n_tiles - 1) // n_tiles, 128))


def realnvp_log_prob(x, packed, *, tb=None):
    """x: (B, 2) float32; packed: the 5 packed/stacked param arrays."""
    B, D = x.shape
    assert D == DIM
    if tb is None:
        tb = _choose_tb(B)

    Bp = pl.cdiv(B, tb) * tb
    xT = x.T.astype(jnp.float32)                   # (2, B): batch -> lane axis
    if Bp != B:
        xT = jnp.pad(xT, ((0, 0), (0, Bp - B)))    # zero tail is numerically safe

    # weights: whole-array, VMEM-resident, single-buffered (grid-invariant)
    weight_spec = pl.BlockSpec(memory_space=pltpu.MemorySpace.VMEM)
    in_specs = [weight_spec] * 5 + [pl.BlockSpec((DIM, tb), lambda i: (0, i))]
    out_spec = pl.BlockSpec((1, tb), lambda i: (0, i))

    out = pl.pallas_call(
        realnvp_logprob_kernel,
        out_shape=jax.ShapeDtypeStruct((1, Bp), jnp.float32),
        grid=(Bp // tb,),
        in_specs=in_specs,
        out_specs=out_spec,
        compiler_params=pltpu.CompilerParams(
            dimension_semantics=("parallel",),
            vmem_limit_bytes=32 * 1024 * 1024),    # clears v5e's 16 MiB default
    )(*packed, xT)
    return out[0, :B]


# -------------------- parameter construction (deterministic) -----------------

def _xavier_uniform(key, shape, gain=0.01):
    fan_in, fan_out = shape
    bound = gain * float(np.sqrt(6.0 / (fan_in + fan_out)))
    return jax.random.uniform(key, shape, jnp.float32, -bound, bound)


def _bias(key, fan_in, size):
    bound = 1.0 / float(np.sqrt(fan_in))
    return jax.random.uniform(key, (size,), jnp.float32, -bound, bound)


def make_params(key):
    """Raw (PyTorch-layout, pre-transposed to (in,out)) per-layer weights:
       [sW1,sB1,sW2,sB2,sW3,sB3,tW1,tB1,tW2,tB2,tW3,tB3], each stacked over 6 layers."""
    shapes = [(DIM, HIDDEN), (HIDDEN, HIDDEN), (HIDDEN, DIM)]
    names = ("sW1", "sB1", "sW2", "sB2", "sW3", "sB3",
             "tW1", "tB1", "tW2", "tB2", "tW3", "tB3")
    stacks = {n: [] for n in names}
    for _ in range(N_LAYERS):
        for prefix in ("s", "t"):
            for li, (fi, fo) in enumerate(shapes, start=1):
                key, kw, kb = jax.random.split(key, 3)
                stacks[f"{prefix}W{li}"].append(_xavier_uniform(kw, (fi, fo)))
                stacks[f"{prefix}B{li}"].append(_bias(kb, fi, fo))
    out = []
    for n in names:
        arr = jnp.stack(stacks[n])                 # (6, fi, fo) or (6, fo)
        if arr.ndim == 2:                          # biases -> (6, 1, fo)
            arr = arr[:, None, :]
        out.append(arr)
    return out


def pack_params(params):
    """Build the 5 kernel arrays (mask baked in statically, matmul weights in bf16)."""
    sW1, sB1, sW2, sB2, sW3, sB3, tW1, tB1, tW2, tB2, tW3, tB3 = params
    w1b1, w2, b2, w3, b3 = [], [], [], [], []
    for i in range(N_LAYERS):
        j = 1 - (i % 2)                            # masked-in input column
        u = i % 2                                  # surviving output column
        m = jnp.zeros((2 * HIDDEN, K_AUG), jnp.float32)
        m = (m.at[:, 0].set(jnp.concatenate([sW1[i][j, :], tW1[i][j, :]]))
               .at[:, 1].set(jnp.concatenate([sB1[i][0, :], tB1[i][0, :]])))
        w1b1.append(m)                                                      # (128, 8)
        w2T = jnp.zeros((2 * HIDDEN, 2 * HIDDEN), jnp.float32)
        w2T = (w2T.at[:HIDDEN, :HIDDEN].set(sW2[i].T)
                   .at[HIDDEN:, HIDDEN:].set(tW2[i].T))                     # (128,128)
        w2.append(w2T)
        b2.append(jnp.concatenate([sB2[i][0, :], tB2[i][0, :]])[:, None])   # (128,1)
        w3T = jnp.zeros((2, 2 * HIDDEN), jnp.float32)
        w3T = (w3T.at[0, :HIDDEN].set(sW3[i][:, u])
                   .at[1, HIDDEN:].set(tW3[i][:, u]))                       # (2,128)
        w3.append(w3T)
        b3.append(jnp.array([sB3[i][0, u], tB3[i][0, u]], jnp.float32)[:, None])  # (2,1)
    return [jnp.stack(w1b1).astype(jnp.bfloat16),
            jnp.stack(w2).astype(jnp.bfloat16),
            jnp.stack(b2),
            jnp.stack(w3).astype(jnp.bfloat16),
            jnp.stack(b3)]


def make_mask():
    base = np.array([[0.0, 1.0], [1.0, 0.0]], dtype=np.float32)
    mask = np.tile(base, (N_LAYERS // 2, 1))       # (6, 2)
    return jnp.asarray(mask)[:, None, :]           # (6, 1, 2)


# ---------------- pure-JAX reference (mirrors the PyTorch module) -------------

def reference_log_prob(x, params, mask):
    sW1, sB1, sW2, sB2, sW3, sB3, tW1, tB1, tW2, tB2, tW3, tB3 = params
    z = x.astype(jnp.float32)
    log_det = jnp.zeros((x.shape[0],), jnp.float32)
    for i in reversed(range(N_LAYERS)):
        m = mask[i]
        one_m = 1.0 - m
        z_ = m * z
        h = _leaky_relu(z_ @ sW1[i] + sB1[i])
        h = _leaky_relu(h @ sW2[i] + sB2[i])
        s = jnp.tanh(h @ sW3[i] + sB3[i]) * one_m
        h = _leaky_relu(z_ @ tW1[i] + tB1[i])
        h = _leaky_relu(h @ tW2[i] + tB2[i])
        t = (h @ tW3[i] + tB3[i]) * one_m
        z = one_m * (z - t) * jnp.exp(-s) + z_
        log_det = log_det - jnp.sum(s, axis=1)
    prior_lp = -0.5 * jnp.sum(z * z, axis=1) - _LOG_2PI
    return prior_lp + log_det


if __name__ == "__main__":
    key = jax.random.PRNGKey(0)
    kp, kx = jax.random.split(key)

    params = make_params(kp)
    mask = make_mask()
    packed = pack_params(params)

    # B=64  -> small-batch path (tile rounded up to 128)
    # B=256 -> tb=128, 2-step parallel grid (even for v7x)
    # B=300 -> tb=256, 2-step grid, exercises the padding path
    for B in (64, 256, 300):
        kx, kb = jax.random.split(kx)
        x = jax.random.normal(kb, (B, DIM), jnp.float32)

        out = jax.block_until_ready(realnvp_log_prob(x, packed))
        ref = reference_log_prob(x, params, mask)
        # Tolerance relaxed vs the pure-f32 variant: matmul operands are bf16 at
        # the MXU (f32 accumulation / biases / couplings), which is well inside
        # a few-e-3 of the f32 reference for this gain=0.01 parameterization,
        # while still catching any structural bug (those show up as O(0.1-1)).
        np.testing.assert_allclose(np.asarray(out), np.asarray(ref),
                                   atol=3e-3, rtol=3e-3)

    print("KERNEL_OK")
</pallas_src>

<mosaic_0001>
module attributes {stable_mosaic.version = 11 : i64} {
  func.func @realnvp_logprob_kernel(%arg0: i32, %arg1: memref<6x128x8xbf16, #tpu.memory_space<vmem>>, %arg2: memref<6x128x128xbf16, #tpu.memory_space<vmem>>, %arg3: memref<6x128x1xf32, #tpu.memory_space<vmem>>, %arg4: memref<6x2x128xbf16, #tpu.memory_space<vmem>>, %arg5: memref<6x2x1xf32, #tpu.memory_space<vmem>>, %arg6: memref<2x128xf32, #tpu.memory_space<vmem>>, %arg7: memref<1x128xf32, #tpu.memory_space<vmem>>) attributes {dimension_semantics = [#tpu.dimension_semantics<parallel>], iteration_bounds = array<i64: 1>, scalar_prefetch = 0 : i64, scratch_operands = 0 : i64, tpu.core_type = #tpu.core_type<tc>, window_params = [{pipeline_mode = #tpu.pipeline_mode<synchronous>, transform_indices = @transform_0, window_bounds = array<i64: 6, 128, 8>}, {pipeline_mode = #tpu.pipeline_mode<synchronous>, transform_indices = @transform_1, window_bounds = array<i64: 6, 128, 128>}, {pipeline_mode = #tpu.pipeline_mode<synchronous>, transform_indices = @transform_2, window_bounds = array<i64: 6, 128, 1>}, {pipeline_mode = #tpu.pipeline_mode<synchronous>, transform_indices = @transform_3, window_bounds = array<i64: 6, 2, 128>}, {pipeline_mode = #tpu.pipeline_mode<synchronous>, transform_indices = @transform_4, window_bounds = array<i64: 6, 2, 1>}, {transform_indices = @transform_5, window_bounds = array<i64: 2, 128>}, {transform_indices = @transform_6, window_bounds = array<i64: 1, 128>}]} {
    %c0 = arith.constant 0 : index
    %c0_0 = arith.constant 0 : index
    %0 = vector.load %arg6[%c0, %c0_0] : memref<2x128xf32, #tpu.memory_space<vmem>>, vector<2x128xf32>
    %1 = vector.extract_strided_slice %0 {offsets = [0, 0], sizes = [1, 128], strides = [1, 1]} : vector<2x128xf32> to vector<1x128xf32>
    %2 = vector.extract_strided_slice %0 {offsets = [1, 0], sizes = [1, 128], strides = [1, 1]} : vector<2x128xf32> to vector<1x128xf32>
    %cst = arith.constant 0.000000e+00 : f32
    %3 = vector.broadcast %cst : f32 to vector<1x128xf32>
    %4 = tpu.iota {dimensions = array<i32: 0>} : vector<8x128xi32>
    %c0_i32 = arith.constant 0 : i32
    %5 = vector.broadcast %c0_i32 : i32 to vector<8x128xi32>
    %6 = arith.cmpi eq, %4, %5 : vector<8x128xi32>
    %cst_1 = arith.constant 1.000000e+00 : f32
    %7 = vector.shape_cast %1 : vector<1x128xf32> to vector<1x128xf32>
    %8 = vector.broadcast %7 : vector<1x128xf32> to vector<8x128xf32>
    %9 = vector.broadcast %cst_1 : f32 to vector<8x128xf32>
    %10 = arith.select %6, %8, %9 : vector<8x128xi1>, vector<8x128xf32>
    %11 = arith.truncf %10 : vector<8x128xf32> to vector<8x128xbf16>
    %c5 = arith.constant 5 : index
    %c0_2 = arith.constant 0 : index
    %c0_3 = arith.constant 0 : index
    %12 = vector.load %arg1[%c5, %c0_2, %c0_3] : memref<6x128x8xbf16, #tpu.memory_space<vmem>>, vector<1x128x8xbf16>
    %13 = vector.shape_cast %12 : vector<1x128x8xbf16> to vector<128x8xbf16>
    %cst_4 = arith.constant dense<0.000000e+00> : vector<128x128xf32>
    %14 = tpu.matmul %13, %11, %cst_4 {dimension_numbers = #tpu.dot_dimension_numbers<[1], [0], [0], [1], [0, 0, 1, 1], [], []>} : vector<128x8xbf16>, vector<8x128xbf16>, vector<128x128xf32> -> vector<128x128xf32>
    %cst_5 = arith.constant 0.000000e+00 : f32
    %15 = vector.broadcast %cst_5 : f32 to vector<128x128xf32>
    %16 = arith.cmpf oge, %14, %15 : vector<128x128xf32>
    %cst_6 = arith.constant 0.00999999977 : f32
    %17 = vector.broadcast %cst_6 : f32 to vector<128x128xf32>
    %18 = arith.mulf %17, %14 : vector<128x128xf32>
    %19 = arith.select %16, %14, %18 : vector<128x128xi1>, vector<128x128xf32>
    %c5_7 = arith.constant 5 : index
    %c0_8 = arith.constant 0 : index
    %c0_9 = arith.constant 0 : index
    %20 = vector.load %arg2[%c5_7, %c0_8, %c0_9] : memref<6x128x128xbf16, #tpu.memory_space<vmem>>, vector<1x128x128xbf16>
    %21 = vector.shape_cast %20 : vector<1x128x128xbf16> to vector<128x128xbf16>
    %22 = arith.truncf %19 : vector<128x128xf32> to vector<128x128xbf16>
    %cst_10 = arith.constant dense<0.000000e+00> : vector<128x128xf32>
    %23 = tpu.matmul %21, %22, %cst_10 {dimension_numbers = #tpu.dot_dimension_numbers<[1], [0], [0], [1], [0, 0, 1, 1], [], []>} : vector<128x128xbf16>, vector<128x128xbf16>, vector<128x128xf32> -> vector<128x128xf32>
    %c5_11 = arith.constant 5 : index
    %c0_12 = arith.constant 0 : index
    %c0_13 = arith.constant 0 : index
    %24 = vector.load %arg3[%c5_11, %c0_12, %c0_13] : memref<6x128x1xf32, #tpu.memory_space<vmem>>, vector<1x128x1xf32>
    %25 = vector.shape_cast %24 : vector<1x128x1xf32> to vector<128x1xf32>
    %26 = vector.broadcast %25 : vector<128x1xf32> to vector<128x128xf32>
    %27 = arith.addf %23, %26 : vector<128x128xf32>
    %cst_14 = arith.constant 0.000000e+00 : f32
    %28 = vector.broadcast %cst_14 : f32 to vector<128x128xf32>
    %29 = arith.cmpf oge, %27, %28 : vector<128x128xf32>
    %cst_15 = arith.constant 0.00999999977 : f32
    %30 = vector.broadcast %cst_15 : f32 to vector<128x128xf32>
    %31 = arith.mulf %30, %27 : vector<128x128xf32>
    %32 = arith.select %29, %27, %31 : vector<128x128xi1>, vector<128x128xf32>
    %c5_16 = arith.constant 5 : index
    %c0_17 = arith.constant 0 : index
    %c0_18 = arith.constant 0 : index
    %33 = vector.load %arg4[%c5_16, %c0_17, %c0_18] : memref<6x2x128xbf16, #tpu.memory_space<vmem>>, vector<1x2x128xbf16>
    %34 = vector.shape_cast %33 : vector<1x2x128xbf16> to vector<2x128xbf16>
    %35 = arith.truncf %32 : vector<128x128xf32> to vector<128x128xbf16>
    %cst_19 = arith.constant dense<0.000000e+00> : vector<2x128xf32>
    %36 = tpu.matmul %34, %35, %cst_19 {dimension_numbers = #tpu.dot_dimension_numbers<[1], [0], [0], [1], [0, 0, 1, 1], [], []>} : vector<2x128xbf16>, vector<128x128xbf16>, vector<2x128xf32> -> vector<2x128xf32>
    %c5_20 = arith.constant 5 : index
    %c0_21 = arith.constant 0 : index
    %c0_22 = arith.constant 0 : index
    %37 = vector.load %arg5[%c5_20, %c0_21, %c0_22] : memref<6x2x1xf32, #tpu.memory_space<vmem>>, vector<1x2x1xf32>
    %38 = vector.shape_cast %37 : vector<1x2x1xf32> to vector<2x1xf32>
    %39 = vector.broadcast %38 : vector<2x1xf32> to vector<2x128xf32>
    %40 = arith.addf %36, %39 : vector<2x128xf32>
    %41 = vector.extract_strided_slice %40 {offsets = [0, 0], sizes = [1, 128], strides = [1, 1]} : vector<2x128xf32> to vector<1x128xf32>
    %42 = math.tanh %41 : vector<1x128xf32>
    %43 = vector.extract_strided_slice %40 {offsets = [1, 0], sizes = [1, 128], strides = [1, 1]} : vector<2x128xf32> to vector<1x128xf32>
    %44 = arith.subf %2, %43 : vector<1x128xf32>
    %cst_23 = arith.constant 0.000000e+00 : f32
    %45 = vector.broadcast %cst_23 : f32 to vector<1x128xf32>
    %46 = arith.subf %45, %42 : vector<1x128xf32>
    %47 = math.exp %46 : vector<1x128xf32>
    %48 = arith.mulf %44, %47 : vector<1x128xf32>
    %49 = arith.subf %3, %42 : vector<1x128xf32>
    %cst_24 = arith.constant 1.000000e+00 : f32
    %50 = vector.shape_cast %48 : vector<1x128xf32> to vector<1x128xf32>
    %51 = vector.broadcast %50 : vector<1x128xf32> to vector<8x128xf32>
    %52 = vector.broadcast %cst_24 : f32 to vector<8x128xf32>
    %53 = arith.select %6, %51, %52 : vector<8x128xi1>, vector<8x128xf32>
    %54 = arith.truncf %53 : vector<8x128xf32> to vector<8x128xbf16>
    %c4 = arith.constant 4 : index
    %c0_25 = arith.constant 0 : index
    %c0_26 = arith.constant 0 : index
    %55 = vector.load %arg1[%c4, %c0_25, %c0_26] : memref<6x128x8xbf16, #tpu.memory_space<vmem>>, vector<1x128x8xbf16>
    %56 = vector.shape_cast %55 : vector<1x128x8xbf16> to vector<128x8xbf16>
    %cst_27 = arith.constant dense<0.000000e+00> : vector<128x128xf32>
    %57 = tpu.matmul %56, %54, %cst_27 {dimension_numbers = #tpu.dot_dimension_numbers<[1], [0], [0], [1], [0, 0, 1, 1], [], []>} : vector<128x8xbf16>, vector<8x128xbf16>, vector<128x128xf32> -> vector<128x128xf32>
    %cst_28 = arith.constant 0.000000e+00 : f32
    %58 = vector.broadcast %cst_28 : f32 to vector<128x128xf32>
    %59 = arith.cmpf oge, %57, %58 : vector<128x128xf32>
    %cst_29 = arith.constant 0.00999999977 : f32
    %60 = vector.broadcast %cst_29 : f32 to vector<128x128xf32>
    %61 = arith.mulf %60, %57 : vector<128x128xf32>
    %62 = arith.select %59, %57, %61 : vector<128x128xi1>, vector<128x128xf32>
    %c4_30 = arith.constant 4 : index
    %c0_31 = arith.constant 0 : index
    %c0_32 = arith.constant 0 : index
    %63 = vector.load %arg2[%c4_30, %c0_31, %c0_32] : memref<6x128x128xbf16, #tpu.memory_space<vmem>>, vector<1x128x128xbf16>
    %64 = vector.shape_cast %63 : vector<1x128x128xbf16> to vector<128x128xbf16>
    %65 = arith.truncf %62 : vector<128x128xf32> to vector<128x128xbf16>
    %cst_33 = arith.constant dense<0.000000e+00> : vector<128x128xf32>
    %66 = tpu.matmul %64, %65, %cst_33 {dimension_numbers = #tpu.dot_dimension_numbers<[1], [0], [0], [1], [0, 0, 1, 1], [], []>} : vector<128x128xbf16>, vector<128x128xbf16>, vector<128x128xf32> -> vector<128x128xf32>
    %c4_34 = arith.constant 4 : index
    %c0_35 = arith.constant 0 : index
    %c0_36 = arith.constant 0 : index
    %67 = vector.load %arg3[%c4_34, %c0_35, %c0_36] : memref<6x128x1xf32, #tpu.memory_space<vmem>>, vector<1x128x1xf32>
    %68 = vector.shape_cast %67 : vector<1x128x1xf32> to vector<128x1xf32>
    %69 = vector.broadcast %68 : vector<128x1xf32> to vector<128x128xf32>
    %70 = arith.addf %66, %69 : vector<128x128xf32>
    %cst_37 = arith.constant 0.000000e+00 : f32
    %71 = vector.broadcast %cst_37 : f32 to vector<128x128xf32>
    %72 = arith.cmpf oge, %70, %71 : vector<128x128xf32>
    %cst_38 = arith.constant 0.00999999977 : f32
    %73 = vector.broadcast %cst_38 : f32 to vector<128x128xf32>
    %74 = arith.mulf %73, %70 : vector<128x128xf32>
    %75 = arith.select %72, %70, %74 : vector<128x128xi1>, vector<128x128xf32>
    %c4_39 = arith.constant 4 : index
    %c0_40 = arith.constant 0 : index
    %c0_41 = arith.constant 0 : index
    %76 = vector.load %arg4[%c4_39, %c0_40, %c0_41] : memref<6x2x128xbf16, #tpu.memory_space<vmem>>, vector<1x2x128xbf16>
    %77 = vector.shape_cast %76 : vector<1x2x128xbf16> to vector<2x128xbf16>
    %78 = arith.truncf %75 : vector<128x128xf32> to vector<128x128xbf16>
    %cst_42 = arith.constant dense<0.000000e+00> : vector<2x128xf32>
    %79 = tpu.matmul %77, %78, %cst_42 {dimension_numbers = #tpu.dot_dimension_numbers<[1], [0], [0], [1], [0, 0, 1, 1], [], []>} : vector<2x128xbf16>, vector<128x128xbf16>, vector<2x128xf32> -> vector<2x128xf32>
    %c4_43 = arith.constant 4 : index
    %c0_44 = arith.constant 0 : index
    %c0_45 = arith.constant 0 : index
    %80 = vector.load %arg5[%c4_43, %c0_44, %c0_45] : memref<6x2x1xf32, #tpu.memory_space<vmem>>, vector<1x2x1xf32>
    %81 = vector.shape_cast %80 : vector<1x2x1xf32> to vector<2x1xf32>
    %82 = vector.broadcast %81 : vector<2x1xf32> to vector<2x128xf32>
    %83 = arith.addf %79, %82 : vector<2x128xf32>
    %84 = vector.extract_strided_slice %83 {offsets = [0, 0], sizes = [1, 128], strides = [1, 1]} : vector<2x128xf32> to vector<1x128xf32>
    %85 = math.tanh %84 : vector<1x128xf32>
    %86 = vector.extract_strided_slice %83 {offsets = [1, 0], sizes = [1, 128], strides = [1, 1]} : vector<2x128xf32> to vector<1x128xf32>
    %87 = arith.subf %1, %86 : vector<1x128xf32>
    %cst_46 = arith.constant 0.000000e+00 : f32
    %88 = vector.broadcast %cst_46 : f32 to vector<1x128xf32>
    %89 = arith.subf %88, %85 : vector<1x128xf32>
    %90 = math.exp %89 : vector<1x128xf32>
    %91 = arith.mulf %87, %90 : vector<1x128xf32>
    %92 = arith.subf %49, %85 : vector<1x128xf32>
    %cst_47 = arith.constant 1.000000e+00 : f32
    %93 = vector.shape_cast %91 : vector<1x128xf32> to vector<1x128xf32>
    %94 = vector.broadcast %93 : vector<1x128xf32> to vector<8x128xf32>
    %95 = vector.broadcast %cst_47 : f32 to vector<8x128xf32>
    %96 = arith.select %6, %94, %95 : vector<8x128xi1>, vector<8x128xf32>
    %97 = arith.truncf %96 : vector<8x128xf32> to vector<8x128xbf16>
    %c3 = arith.constant 3 : index
    %c0_48 = arith.constant 0 : index
    %c0_49 = arith.constant 0 : index
    %98 = vector.load %arg1[%c3, %c0_48, %c0_49] : memref<6x128x8xbf16, #tpu.memory_space<vmem>>, vector<1x128x8xbf16>
    %99 = vector.shape_cast %98 : vector<1x128x8xbf16> to vector<128x8xbf16>
    %cst_50 = arith.constant dense<0.000000e+00> : vector<128x128xf32>
    %100 = tpu.matmul %99, %97, %cst_50 {dimension_numbers = #tpu.dot_dimension_numbers<[1], [0], [0], [1], [0, 0, 1, 1], [], []>} : vector<128x8xbf16>, vector<8x128xbf16>, vector<128x128xf32> -> vector<128x128xf32>
    %cst_51 = arith.constant 0.000000e+00 : f32
    %101 = vector.broadcast %cst_51 : f32 to vector<128x128xf32>
    %102 = arith.cmpf oge, %100, %101 : vector<128x128xf32>
    %cst_52 = arith.constant 0.00999999977 : f32
    %103 = vector.broadcast %cst_52 : f32 to vector<128x128xf32>
    %104 = arith.mulf %103, %100 : vector<128x128xf32>
    %105 = arith.select %102, %100, %104 : vector<128x128xi1>, vector<128x128xf32>
    %c3_53 = arith.constant 3 : index
    %c0_54 = arith.constant 0 : index
    %c0_55 = arith.constant 0 : index
    %106 = vector.load %arg2[%c3_53, %c0_54, %c0_55] : memref<6x128x128xbf16, #tpu.memory_space<vmem>>, vector<1x128x128xbf16>
    %107 = vector.shape_cast %106 : vector<1x128x128xbf16> to vector<128x128xbf16>
    %108 = arith.truncf %105 : vector<128x128xf32> to vector<128x128xbf16>
    %cst_56 = arith.constant dense<0.000000e+00> : vector<128x128xf32>
    %109 = tpu.matmul %107, %108, %cst_56 {dimension_numbers = #tpu.dot_dimension_numbers<[1], [0], [0], [1], [0, 0, 1, 1], [], []>} : vector<128x128xbf16>, vector<128x128xbf16>, vector<128x128xf32> -> vector<128x128xf32>
    %c3_57 = arith.constant 3 : index
    %c0_58 = arith.constant 0 : index
    %c0_59 = arith.constant 0 : index
    %110 = vector.load %arg3[%c3_57, %c0_58, %c0_59] : memref<6x128x1xf32, #tpu.memory_space<vmem>>, vector<1x128x1xf32>
    %111 = vector.shape_cast %110 : vector<1x128x1xf32> to vector<128x1xf32>
    %112 = vector.broadcast %111 : vector<128x1xf32> to vector<128x128xf32>
    %113 = arith.addf %109, %112 : vector<128x128xf32>
    %cst_60 = arith.constant 0.000000e+00 : f32
    %114 = vector.broadcast %cst_60 : f32 to vector<128x128xf32>
    %115 = arith.cmpf oge, %113, %114 : vector<128x128xf32>
    %cst_61 = arith.constant 0.00999999977 : f32
    %116 = vector.broadcast %cst_61 : f32 to vector<128x128xf32>
    %117 = arith.mulf %116, %113 : vector<128x128xf32>
    %118 = arith.select %115, %113, %117 : vector<128x128xi1>, vector<128x128xf32>
    %c3_62 = arith.constant 3 : index
    %c0_63 = arith.constant 0 : index
    %c0_64 = arith.constant 0 : index
    %119 = vector.load %arg4[%c3_62, %c0_63, %c0_64] : memref<6x2x128xbf16, #tpu.memory_space<vmem>>, vector<1x2x128xbf16>
    %120 = vector.shape_cast %119 : vector<1x2x128xbf16> to vector<2x128xbf16>
    %121 = arith.truncf %118 : vector<128x128xf32> to vector<128x128xbf16>
    %cst_65 = arith.constant dense<0.000000e+00> : vector<2x128xf32>
    %122 = tpu.matmul %120, %121, %cst_65 {dimension_numbers = #tpu.dot_dimension_numbers<[1], [0], [0], [1], [0, 0, 1, 1], [], []>} : vector<2x128xbf16>, vector<128x128xbf16>, vector<2x128xf32> -> vector<2x128xf32>
    %c3_66 = arith.constant 3 : index
    %c0_67 = arith.constant 0 : index
    %c0_68 = arith.constant 0 : index
    %123 = vector.load %arg5[%c3_66, %c0_67, %c0_68] : memref<6x2x1xf32, #tpu.memory_space<vmem>>, vector<1x2x1xf32>
    %124 = vector.shape_cast %123 : vector<1x2x1xf32> to vector<2x1xf32>
    %125 = vector.broadcast %124 : vector<2x1xf32> to vector<2x128xf32>
    %126 = arith.addf %122, %125 : vector<2x128xf32>
    %127 = vector.extract_strided_slice %126 {offsets = [0, 0], sizes = [1, 128], strides = [1, 1]} : vector<2x128xf32> to vector<1x128xf32>
    %128 = math.tanh %127 : vector<1x128xf32>
    %129 = vector.extract_strided_slice %126 {offsets = [1, 0], sizes = [1, 128], strides = [1, 1]} : vector<2x128xf32> to vector<1x128xf32>
    %130 = arith.subf %48, %129 : vector<1x128xf32>
    %cst_69 = arith.constant 0.000000e+00 : f32
    %131 = vector.broadcast %cst_69 : f32 to vector<1x128xf32>
    %132 = arith.subf %131, %128 : vector<1x128xf32>
    %133 = math.exp %132 : vector<1x128xf32>
    %134 = arith.mulf %130, %133 : vector<1x128xf32>
    %135 = arith.subf %92, %128 : vector<1x128xf32>
    %cst_70 = arith.constant 1.000000e+00 : f32
    %136 = vector.shape_cast %134 : vector<1x128xf32> to vector<1x128xf32>
    %137 = vector.broadcast %136 : vector<1x128xf32> to vector<8x128xf32>
    %138 = vector.broadcast %cst_70 : f32 to vector<8x128xf32>
    %139 = arith.select %6, %137, %138 : vector<8x128xi1>, vector<8x128xf32>
    %140 = arith.truncf %139 : vector<8x128xf32> to vector<8x128xbf16>
    %c2 = arith.constant 2 : index
    %c0_71 = arith.constant 0 : index
    %c0_72 = arith.constant 0 : index
    %141 = vector.load %arg1[%c2, %c0_71, %c0_72] : memref<6x128x8xbf16, #tpu.memory_space<vmem>>, vector<1x128x8xbf16>
    %142 = vector.shape_cast %141 : vector<1x128x8xbf16> to vector<128x8xbf16>
    %cst_73 = arith.constant dense<0.000000e+00> : vector<128x128xf32>
    %143 = tpu.matmul %142, %140, %cst_73 {dimension_numbers = #tpu.dot_dimension_numbers<[1], [0], [0], [1], [0, 0, 1, 1], [], []>} : vector<128x8xbf16>, vector<8x128xbf16>, vector<128x128xf32> -> vector<128x128xf32>
    %cst_74 = arith.constant 0.000000e+00 : f32
    %144 = vector.broadcast %cst_74 : f32 to vector<128x128xf32>
    %145 = arith.cmpf oge, %143, %144 : vector<128x128xf32>
    %cst_75 = arith.constant 0.00999999977 : f32
    %146 = vector.broadcast %cst_75 : f32 to vector<128x128xf32>
    %147 = arith.mulf %146, %143 : vector<128x128xf32>
    %148 = arith.select %145, %143, %147 : vector<128x128xi1>, vector<128x128xf32>
    %c2_76 = arith.constant 2 : index
    %c0_77 = arith.constant 0 : index
    %c0_78 = arith.constant 0 : index
    %149 = vector.load %arg2[%c2_76, %c0_77, %c0_78] : memref<6x128x128xbf16, #tpu.memory_space<vmem>>, vector<1x128x128xbf16>
    %150 = vector.shape_cast %149 : vector<1x128x128xbf16> to vector<128x128xbf16>
    %151 = arith.truncf %148 : vector<128x128xf32> to vector<128x128xbf16>
    %cst_79 = arith.constant dense<0.000000e+00> : vector<128x128xf32>
    %152 = tpu.matmul %150, %151, %cst_79 {dimension_numbers = #tpu.dot_dimension_numbers<[1], [0], [0], [1], [0, 0, 1, 1], [], []>} : vector<128x128xbf16>, vector<128x128xbf16>, vector<128x128xf32> -> vector<128x128xf32>
    %c2_80 = arith.constant 2 : index
    %c0_81 = arith.constant 0 : index
    %c0_82 = arith.constant 0 : index
    %153 = vector.load %arg3[%c2_80, %c0_81, %c0_82] : memref<6x128x1xf32, #tpu.memory_space<vmem>>, vector<1x128x1xf32>
    %154 = vector.shape_cast %153 : vector<1x128x1xf32> to vector<128x1xf32>
    %155 = vector.broadcast %154 : vector<128x1xf32> to vector<128x128xf32>
    %156 = arith.addf %152, %155 : vector<128x128xf32>
    %cst_83 = arith.constant 0.000000e+00 : f32
    %157 = vector.broadcast %cst_83 : f32 to vector<128x128xf32>
    %158 = arith.cmpf oge, %156, %157 : vector<128x128xf32>
    %cst_84 = arith.constant 0.00999999977 : f32
    %159 = vector.broadcast %cst_84 : f32 to vector<128x128xf32>
    %160 = arith.mulf %159, %156 : vector<128x128xf32>
    %161 = arith.select %158, %156, %160 : vector<128x128xi1>, vector<128x128xf32>
    %c2_85 = arith.constant 2 : index
    %c0_86 = arith.constant 0 : index
    %c0_87 = arith.constant 0 : index
    %162 = vector.load %arg4[%c2_85, %c0_86, %c0_87] : memref<6x2x128xbf16, #tpu.memory_space<vmem>>, vector<1x2x128xbf16>
    %163 = vector.shape_cast %162 : vector<1x2x128xbf16> to vector<2x128xbf16>
    %164 = arith.truncf %161 : vector<128x128xf32> to vector<128x128xbf16>
    %cst_88 = arith.constant dense<0.000000e+00> : vector<2x128xf32>
    %165 = tpu.matmul %163, %164, %cst_88 {dimension_numbers = #tpu.dot_dimension_numbers<[1], [0], [0], [1], [0, 0, 1, 1], [], []>} : vector<2x128xbf16>, vector<128x128xbf16>, vector<2x128xf32> -> vector<2x128xf32>
    %c2_89 = arith.constant 2 : index
    %c0_90 = arith.constant 0 : index
    %c0_91 = arith.constant 0 : index
    %166 = vector.load %arg5[%c2_89, %c0_90, %c0_91] : memref<6x2x1xf32, #tpu.memory_space<vmem>>, vector<1x2x1xf32>
    %167 = vector.shape_cast %166 : vector<1x2x1xf32> to vector<2x1xf32>
    %168 = vector.broadcast %167 : vector<2x1xf32> to vector<2x128xf32>
    %169 = arith.addf %165, %168 : vector<2x128xf32>
    %170 = vector.extract_strided_slice %169 {offsets = [0, 0], sizes = [1, 128], strides = [1, 1]} : vector<2x128xf32> to vector<1x128xf32>
    %171 = math.tanh %170 : vector<1x128xf32>
    %172 = vector.extract_strided_slice %169 {offsets = [1, 0], sizes = [1, 128], strides = [1, 1]} : vector<2x128xf32> to vector<1x128xf32>
    %173 = arith.subf %91, %172 : vector<1x128xf32>
    %cst_92 = arith.constant 0.000000e+00 : f32
    %174 = vector.broadcast %cst_92 : f32 to vector<1x128xf32>
    %175 = arith.subf %174, %171 : vector<1x128xf32>
    %176 = math.exp %175 : vector<1x128xf32>
    %177 = arith.mulf %173, %176 : vector<1x128xf32>
    %178 = arith.subf %135, %171 : vector<1x128xf32>
    %cst_93 = arith.constant 1.000000e+00 : f32
    %179 = vector.shape_cast %177 : vector<1x128xf32> to vector<1x128xf32>
    %180 = vector.broadcast %179 : vector<1x128xf32> to vector<8x128xf32>
    %181 = vector.broadcast %cst_93 : f32 to vector<8x128xf32>
    %182 = arith.select %6, %180, %181 : vector<8x128xi1>, vector<8x128xf32>
    %183 = arith.truncf %182 : vector<8x128xf32> to vector<8x128xbf16>
    %c1 = arith.constant 1 : index
    %c0_94 = arith.constant 0 : index
    %c0_95 = arith.constant 0 : index
    %184 = vector.load %arg1[%c1, %c0_94, %c0_95] : memref<6x128x8xbf16, #tpu.memory_space<vmem>>, vector<1x128x8xbf16>
    %185 = vector.shape_cast %184 : vector<1x128x8xbf16> to vector<128x8xbf16>
    %cst_96 = arith.constant dense<0.000000e+00> : vector<128x128xf32>
    %186 = tpu.matmul %185, %183, %cst_96 {dimension_numbers = #tpu.dot_dimension_numbers<[1], [0], [0], [1], [0, 0, 1, 1], [], []>} : vector<128x8xbf16>, vector<8x128xbf16>, vector<128x128xf32> -> vector<128x128xf32>
    %cst_97 = arith.constant 0.000000e+00 : f32
    %187 = vector.broadcast %cst_97 : f32 to vector<128x128xf32>
    %188 = arith.cmpf oge, %186, %187 : vector<128x128xf32>
    %cst_98 = arith.constant 0.00999999977 : f32
    %189 = vector.broadcast %cst_98 : f32 to vector<128x128xf32>
    %190 = arith.mulf %189, %186 : vector<128x128xf32>
    %191 = arith.select %188, %186, %190 : vector<128x128xi1>, vector<128x128xf32>
    %c1_99 = arith.constant 1 : index
    %c0_100 = arith.constant 0 : index
    %c0_101 = arith.constant 0 : index
    %192 = vector.load %arg2[%c1_99, %c0_100, %c0_101] : memref<6x128x128xbf16, #tpu.memory_space<vmem>>, vector<1x128x128xbf16>
    %193 = vector.shape_cast %192 : vector<1x128x128xbf16> to vector<128x128xbf16>
    %194 = arith.truncf %191 : vector<128x128xf32> to vector<128x128xbf16>
    %cst_102 = arith.constant dense<0.000000e+00> : vector<128x128xf32>
    %195 = tpu.matmul %193, %194, %cst_102 {dimension_numbers = #tpu.dot_dimension_numbers<[1], [0], [0], [1], [0, 0, 1, 1], [], []>} : vector<128x128xbf16>, vector<128x128xbf16>, vector<128x128xf32> -> vector<128x128xf32>
    %c1_103 = arith.constant 1 : index
    %c0_104 = arith.constant 0 : index
    %c0_105 = arith.constant 0 : index
    %196 = vector.load %arg3[%c1_103, %c0_104, %c0_105] : memref<6x128x1xf32, #tpu.memory_space<vmem>>, vector<1x128x1xf32>
    %197 = vector.shape_cast %196 : vector<1x128x1xf32> to vector<128x1xf32>
    %198 = vector.broadcast %197 : vector<128x1xf32> to vector<128x128xf32>
    %199 = arith.addf %195, %198 : vector<128x128xf32>
    %cst_106 = arith.constant 0.000000e+00 : f32
    %200 = vector.broadcast %cst_106 : f32 to vector<128x128xf32>
    %201 = arith.cmpf oge, %199, %200 : vector<128x128xf32>
    %cst_107 = arith.constant 0.00999999977 : f32
    %202 = vector.broadcast %cst_107 : f32 to vector<128x128xf32>
    %203 = arith.mulf %202, %199 : vector<128x128xf32>
    %204 = arith.select %201, %199, %203 : vector<128x128xi1>, vector<128x128xf32>
    %c1_108 = arith.constant 1 : index
    %c0_109 = arith.constant 0 : index
    %c0_110 = arith.constant 0 : index
    %205 = vector.load %arg4[%c1_108, %c0_109, %c0_110] : memref<6x2x128xbf16, #tpu.memory_space<vmem>>, vector<1x2x128xbf16>
    %206 = vector.shape_cast %205 : vector<1x2x128xbf16> to vector<2x128xbf16>
    %207 = arith.truncf %204 : vector<128x128xf32> to vector<128x128xbf16>
    %cst_111 = arith.constant dense<0.000000e+00> : vector<2x128xf32>
    %208 = tpu.matmul %206, %207, %cst_111 {dimension_numbers = #tpu.dot_dimension_numbers<[1], [0], [0], [1], [0, 0, 1, 1], [], []>} : vector<2x128xbf16>, vector<128x128xbf16>, vector<2x128xf32> -> vector<2x128xf32>
    %c1_112 = arith.constant 1 : index
    %c0_113 = arith.constant 0 : index
    %c0_114 = arith.constant 0 : index
    %209 = vector.load %arg5[%c1_112, %c0_113, %c0_114] : memref<6x2x1xf32, #tpu.memory_space<vmem>>, vector<1x2x1xf32>
    %210 = vector.shape_cast %209 : vector<1x2x1xf32> to vector<2x1xf32>
    %211 = vector.broadcast %210 : vector<2x1xf32> to vector<2x128xf32>
    %212 = arith.addf %208, %211 : vector<2x128xf32>
    %213 = vector.extract_strided_slice %212 {offsets = [0, 0], sizes = [1, 128], strides = [1, 1]} : vector<2x128xf32> to vector<1x128xf32>
    %214 = math.tanh %213 : vector<1x128xf32>
    %215 = vector.extract_strided_slice %212 {offsets = [1, 0], sizes = [1, 128], strides = [1, 1]} : vector<2x128xf32> to vector<1x128xf32>
    %216 = arith.subf %134, %215 : vector<1x128xf32>
    %cst_115 = arith.constant 0.000000e+00 : f32
    %217 = vector.broadcast %cst_115 : f32 to vector<1x128xf32>
    %218 = arith.subf %217, %214 : vector<1x128xf32>
    %219 = math.exp %218 : vector<1x128xf32>
    %220 = arith.mulf %216, %219 : vector<1x128xf32>
    %221 = arith.subf %178, %214 : vector<1x128xf32>
    %cst_116 = arith.constant 1.000000e+00 : f32
    %222 = vector.shape_cast %220 : vector<1x128xf32> to vector<1x128xf32>
    %223 = vector.broadcast %222 : vector<1x128xf32> to vector<8x128xf32>
    %224 = vector.broadcast %cst_116 : f32 to vector<8x128xf32>
    %225 = arith.select %6, %223, %224 : vector<8x128xi1>, vector<8x128xf32>
    %226 = arith.truncf %225 : vector<8x128xf32> to vector<8x128xbf16>
    %c0_117 = arith.constant 0 : index
    %c0_118 = arith.constant 0 : index
    %c0_119 = arith.constant 0 : index
    %227 = vector.load %arg1[%c0_117, %c0_118, %c0_119] : memref<6x128x8xbf16, #tpu.memory_space<vmem>>, vector<1x128x8xbf16>
    %228 = vector.shape_cast %227 : vector<1x128x8xbf16> to vector<128x8xbf16>
    %cst_120 = arith.constant dense<0.000000e+00> : vector<128x128xf32>
    %229 = tpu.matmul %228, %226, %cst_120 {dimension_numbers = #tpu.dot_dimension_numbers<[1], [0], [0], [1], [0, 0, 1, 1], [], []>} : vector<128x8xbf16>, vector<8x128xbf16>, vector<128x128xf32> -> vector<128x128xf32>
    %cst_121 = arith.constant 0.000000e+00 : f32
    %230 = vector.broadcast %cst_121 : f32 to vector<128x128xf32>
    %231 = arith.cmpf oge, %229, %230 : vector<128x128xf32>
    %cst_122 = arith.constant 0.00999999977 : f32
    %232 = vector.broadcast %cst_122 : f32 to vector<128x128xf32>
    %233 = arith.mulf %232, %229 : vector<128x128xf32>
    %234 = arith.select %231, %229, %233 : vector<128x128xi1>, vector<128x128xf32>
    %c0_123 = arith.constant 0 : index
    %c0_124 = arith.constant 0 : index
    %c0_125 = arith.constant 0 : index
    %235 = vector.load %arg2[%c0_123, %c0_124, %c0_125] : memref<6x128x128xbf16, #tpu.memory_space<vmem>>, vector<1x128x128xbf16>
    %236 = vector.shape_cast %235 : vector<1x128x128xbf16> to vector<128x128xbf16>
    %237 = arith.truncf %234 : vector<128x128xf32> to vector<128x128xbf16>
    %cst_126 = arith.constant dense<0.000000e+00> : vector<128x128xf32>
    %238 = tpu.matmul %236, %237, %cst_126 {dimension_numbers = #tpu.dot_dimension_numbers<[1], [0], [0], [1], [0, 0, 1, 1], [], []>} : vector<128x128xbf16>, vector<128x128xbf16>, vector<128x128xf32> -> vector<128x128xf32>
    %c0_127 = arith.constant 0 : index
    %c0_128 = arith.constant 0 : index
    %c0_129 = arith.constant 0 : index
    %239 = vector.load %arg3[%c0_127, %c0_128, %c0_129] : memref<6x128x1xf32, #tpu.memory_space<vmem>>, vector<1x128x1xf32>
    %240 = vector.shape_cast %239 : vector<1x128x1xf32> to vector<128x1xf32>
    %241 = vector.broadcast %240 : vector<128x1xf32> to vector<128x128xf32>
    %242 = arith.addf %238, %241 : vector<128x128xf32>
    %cst_130 = arith.constant 0.000000e+00 : f32
    %243 = vector.broadcast %cst_130 : f32 to vector<128x128xf32>
    %244 = arith.cmpf oge, %242, %243 : vector<128x128xf32>
    %cst_131 = arith.constant 0.00999999977 : f32
    %245 = vector.broadcast %cst_131 : f32 to vector<128x128xf32>
    %246 = arith.mulf %245, %242 : vector<128x128xf32>
    %247 = arith.select %244, %242, %246 : vector<128x128xi1>, vector<128x128xf32>
    %c0_132 = arith.constant 0 : index
    %c0_133 = arith.constant 0 : index
    %c0_134 = arith.constant 0 : index
    %248 = vector.load %arg4[%c0_132, %c0_133, %c0_134] : memref<6x2x128xbf16, #tpu.memory_space<vmem>>, vector<1x2x128xbf16>
    %249 = vector.shape_cast %248 : vector<1x2x128xbf16> to vector<2x128xbf16>
    %250 = arith.truncf %247 : vector<128x128xf32> to vector<128x128xbf16>
    %cst_135 = arith.constant dense<0.000000e+00> : vector<2x128xf32>
    %251 = tpu.matmul %249, %250, %cst_135 {dimension_numbers = #tpu.dot_dimension_numbers<[1], [0], [0], [1], [0, 0, 1, 1], [], []>} : vector<2x128xbf16>, vector<128x128xbf16>, vector<2x128xf32> -> vector<2x128xf32>
    %c0_136 = arith.constant 0 : index
    %c0_137 = arith.constant 0 : index
    %c0_138 = arith.constant 0 : index
    %252 = vector.load %arg5[%c0_136, %c0_137, %c0_138] : memref<6x2x1xf32, #tpu.memory_space<vmem>>, vector<1x2x1xf32>
    %253 = vector.shape_cast %252 : vector<1x2x1xf32> to vector<2x1xf32>
    %254 = vector.broadcast %253 : vector<2x1xf32> to vector<2x128xf32>
    %255 = arith.addf %251, %254 : vector<2x128xf32>
    %256 = vector.extract_strided_slice %255 {offsets = [0, 0], sizes = [1, 128], strides = [1, 1]} : vector<2x128xf32> to vector<1x128xf32>
    %257 = math.tanh %256 : vector<1x128xf32>
    %258 = vector.extract_strided_slice %255 {offsets = [1, 0], sizes = [1, 128], strides = [1, 1]} : vector<2x128xf32> to vector<1x128xf32>
    %259 = arith.subf %177, %258 : vector<1x128xf32>
    %cst_139 = arith.constant 0.000000e+00 : f32
    %260 = vector.broadcast %cst_139 : f32 to vector<1x128xf32>
    %261 = arith.subf %260, %257 : vector<1x128xf32>
    %262 = math.exp %261 : vector<1x128xf32>
    %263 = arith.mulf %259, %262 : vector<1x128xf32>
    %264 = arith.subf %221, %257 : vector<1x128xf32>
    %265 = arith.mulf %263, %263 : vector<1x128xf32>
    %266 = arith.mulf %220, %220 : vector<1x128xf32>
    %267 = arith.addf %265, %266 : vector<1x128xf32>
    %cst_140 = arith.constant -5.000000e-01 : f32
    %268 = vector.broadcast %cst_140 : f32 to vector<1x128xf32>
    %269 = arith.mulf %268, %267 : vector<1x128xf32>
    %cst_141 = arith.constant 1.83787704 : f32
    %270 = vector.broadcast %cst_141 : f32 to vector<1x128xf32>
    %271 = arith.subf %269, %270 : vector<1x128xf32>
    %272 = arith.addf %271, %264 : vector<1x128xf32>
    %c0_142 = arith.constant 0 : index
    %c0_143 = arith.constant 0 : index
    %273 = vector.load %arg7[%c0_142, %c0_143] : memref<1x128xf32, #tpu.memory_space<vmem>>, vector<1x128xf32>
    tpu.vector_store %arg7[%c0_142, %c0_143], %272 {strides = array<i32>} : memref<1x128xf32, #tpu.memory_space<vmem>>, vector<1x128xf32>,
    return
  }
  func.func @transform_0(%arg0: i32) -> (i32, i32, i32) {
    %c0_i32 = arith.constant 0 : i32
    %c0_i32_0 = arith.constant 0 : i32
    %c0_i32_1 = arith.constant 0 : i32
    %c0_i32_2 = arith.constant 0 : i32
    return %c0_i32, %c0_i32_0, %c0_i32_1 : i32, i32, i32
  }
  func.func @transform_1(%arg0: i32) -> (i32, i32, i32) {
    %c0_i32 = arith.constant 0 : i32
    %c0_i32_0 = arith.constant 0 : i32
    %c0_i32_1 = arith.constant 0 : i32
    %c0_i32_2 = arith.constant 0 : i32
    return %c0_i32, %c0_i32_0, %c0_i32_1 : i32, i32, i32
  }
  func.func @transform_2(%arg0: i32) -> (i32, i32, i32) {
    %c0_i32 = arith.constant 0 : i32
    %c0_i32_0 = arith.constant 0 : i32
    %c0_i32_1 = arith.constant 0 : i32
    %c0_i32_2 = arith.constant 0 : i32
    return %c0_i32, %c0_i32_0, %c0_i32_1 : i32, i32, i32
  }
  func.func @transform_3(%arg0: i32) -> (i32, i32, i32) {
    %c0_i32 = arith.constant 0 : i32
    %c0_i32_0 = arith.constant 0 : i32
    %c0_i32_1 = arith.constant 0 : i32
    %c0_i32_2 = arith.constant 0 : i32
    return %c0_i32, %c0_i32_0, %c0_i32_1 : i32, i32, i32
  }
  func.func @transform_4(%arg0: i32) -> (i32, i32, i32) {
    %c0_i32 = arith.constant 0 : i32
    %c0_i32_0 = arith.constant 0 : i32
    %c0_i32_1 = arith.constant 0 : i32
    %c0_i32_2 = arith.constant 0 : i32
    return %c0_i32, %c0_i32_0, %c0_i32_1 : i32, i32, i32
  }
  func.func @transform_5(%arg0: i32) -> (i32, i32) {
    %c0_i32 = arith.constant 0 : i32
    %c0_i32_0 = arith.constant 0 : i32
    return %c0_i32, %arg0 : i32, i32
  }
  func.func @transform_6(%arg0: i32) -> (i32, i32) {
    %c0_i32 = arith.constant 0 : i32
    %c0_i32_0 = arith.constant 0 : i32
    return %c0_i32, %arg0 : i32, i32
  }
}

</mosaic_0001>

<llo_original>
// kernel: tpu_custom_call.1
$region0: #{tpu_custom_call.1}
  #allocation0 [shape = 'u32[]', space=smem, size = 0x4, offset = 0x4, fixed_abs, tag = 'smem constant byte address 0x4 - core index']
  #allocation1 [shape = 'u32[144,128]{1,0:T(1,128)}', space=vmem, size = 0x12000, scoped, tag = 'internal scratch']
  %s0 = inlined_call_operand.vmem [shape: bf16[6,128,8], index: 0, kind: input, shape index: {}]
  %s1 = inlined_call_operand.vmem [shape: bf16[6,128,128], index: 1, kind: input, shape index: {}]
  %s2 = inlined_call_operand.vmem [shape: f32[6,128,1], index: 2, kind: input, shape index: {}]
  %s3 = inlined_call_operand.vmem [shape: bf16[6,2,128], index: 3, kind: input, shape index: {}]
  %s4 = inlined_call_operand.vmem [shape: f32[6,2,1], index: 4, kind: input, shape index: {}]
  %s5 = inlined_call_operand.vmem [shape: f32[2,128], index: 5, kind: input, shape index: {}]
  %s6 = inlined_call_operand.hbm [shape: f32[1,128], index: 6, kind: output, shape index: {}]
  %s7 = sld [smem:[#allocation0]]
  $region34: #{tpu_custom_call.1} parent=0
    _
  %s9 = ssub.s32 1, %s7
  %s10 = scalar_select 0, %s9, %s7
  $region1: #{tpu_custom_call.1} parent=0
    #allocation2 [shape = 'u8[512]{0}', space=vmem, size = 0x400, scoped, tag = 'output window, operand 0, single buffered']
    #allocation3 [shape = 's32[1]{0}', space=sflag, size = 0x4, scoped, tag = 'scoped memory for tpu_custom_call.1']
    %11 = vsyncpa [#allocation3], 0
    // Predicated region
    $region2: #{tpu_custom_call.1} parent=1 // pred_check
      _
    $region3: #{tpu_custom_call.1} parent=1 // pred_check_branch
      %13 = sbr.rel (0) target = $region5
    $region4: #{tpu_custom_call.1} parent=1 // pred_region
      _
    $region5: #{tpu_custom_call.1} parent=1 // pred_fallthru
      _
    // Predicated region
    $region6: #{tpu_custom_call.1} parent=1 // pred_check
      _
    $region7: #{tpu_custom_call.1} parent=1 // pred_check_branch
      %15 = sbr.rel (0) target = $region9
    $region8: #{tpu_custom_call.1} parent=1 // pred_region
      _
    $region9: #{tpu_custom_call.1} parent=1 // pred_fallthru
      _
    // Predicated region
    $region10: #{tpu_custom_call.1} parent=1 // pred_check
      _
    $region11: #{tpu_custom_call.1} parent=1 // pred_check_branch
      %17 = sbr.rel (0) target = $region13
    $region12: #{tpu_custom_call.1} parent=1 // pred_region
      _
    $region13: #{tpu_custom_call.1} parent=1 // pred_fallthru
      _
    // Predicated region
    $region14: #{tpu_custom_call.1} parent=1 // pred_check
      _
    $region15: #{tpu_custom_call.1} parent=1 // pred_check_branch
      %19 = sbr.rel (0) target = $region17
    $region16: #{tpu_custom_call.1} parent=1 // pred_region
      _
    $region17: #{tpu_custom_call.1} parent=1 // pred_fallthru
      _
    // Predicated region
    $region18: #{tpu_custom_call.1} parent=1 // pred_check
      _
    $region19: #{tpu_custom_call.1} parent=1 // pred_check_branch
      %21 = sbr.rel (0) target = $region21
    $region20: #{tpu_custom_call.1} parent=1 // pred_region
      _
    $region21: #{tpu_custom_call.1} parent=1 // pred_fallthru
      _
    // Predicated region
    $region22: #{tpu_custom_call.1} parent=1 // pred_check
      _
    $region23: #{tpu_custom_call.1} parent=1 // pred_check_branch
      %23 = sbr.rel (0) target = $region25
    $region24: #{tpu_custom_call.1} parent=1 // pred_region
      _
    $region25: #{tpu_custom_call.1} parent=1 // pred_fallthru
      _
    %v25 = vld [vmem:[%s5] sm:$0x3]
    %v26 = vlaneseq
    %v27 = vshrl.u32 %v26, 7
    %vm28 = vcmp.eq.s32.totalorder %v27, 0
    %v29 = vlaneseq
    %v30 = vshrl.u32 %v29, 7
    %v31 = vsub.s32 0, %v30
    %v32 = vrot.slane %v25, %v31
    %v33 = vsel %vm28, %v32, 1.0
    %v34 = vpack.c.bf16 %v33, %v33
    %s35 = scalar_lea.vmem %s0, 320
    %v36 = vld [vmem:[%s35] sm:$0xf]
    %v37 = vld [vmem:[%s35 + $0x4] sm:$0xf]
    %v38 = vld [vmem:[%s35 + $0x8] sm:$0xf]
    %v39 = vld [vmem:[%s35 + $0xc] sm:$0xf]
    %v40 = vld [vmem:[%s35 + $0x10] sm:$0xf]
    %v41 = vld [vmem:[%s35 + $0x14] sm:$0xf]
    %v42 = vld [vmem:[%s35 + $0x18] sm:$0xf]
    %v43 = vld [vmem:[%s35 + $0x1c] sm:$0xf]
    %v44 = vld [vmem:[%s35 + $0x20] sm:$0xf]
    %v45 = vld [vmem:[%s35 + $0x24] sm:$0xf]
    %v46 = vld [vmem:[%s35 + $0x28] sm:$0xf]
    %v47 = vld [vmem:[%s35 + $0x2c] sm:$0xf]
    %v48 = vld [vmem:[%s35 + $0x30] sm:$0xf]
    %v49 = vld [vmem:[%s35 + $0x34] sm:$0xf]
    %v50 = vld [vmem:[%s35 + $0x38] sm:$0xf]
    %v51 = vld [vmem:[%s35 + $0x3c] sm:$0xf]
    %v68 = vunpack.c.l.b16 %v36
    %v69 = vunpack.c.l.b16 %v37
    %v70 = vunpack.c.l.b16 %v38
    %v71 = vunpack.c.l.b16 %v39
    %v72 = vunpack.c.l.b16 %v40
    %v73 = vunpack.c.l.b16 %v41
    %v74 = vunpack.c.l.b16 %v42
    %v75 = vunpack.c.l.b16 %v43
    %v76 = vunpack.c.l.b16 %v44
    %v77 = vunpack.c.l.b16 %v45
    %v78 = vunpack.c.l.b16 %v46
    %v79 = vunpack.c.l.b16 %v47
    %v80 = vunpack.c.l.b16 %v48
    %v81 = vunpack.c.l.b16 %v49
    %v82 = vunpack.c.l.b16 %v50
    %v83 = vunpack.c.l.b16 %v51
    %v84 = vpack.c.b16 %v69, %v68
    %v85 = vpack.c.b16 %v71, %v70
    %v86 = vpack.c.b16 %v73, %v72
    %v87 = vpack.c.b16 %v75, %v74
    %v88 = vpack.c.b16 %v77, %v76
    %v89 = vpack.c.b16 %v79, %v78
    %v90 = vpack.c.b16 %v81, %v80
    %v91 = vpack.c.b16 %v83, %v82
    %vm92 = vcmask 64512
    %v94 = vsel %vm92, %v84, 0
    %v97 = vsel %vm92, %v85, 0
    %v100 = vsel %vm92, %v86, 0
    %v103 = vsel %vm92, %v87, 0
    %v106 = vsel %vm92, %v88, 0
    %v109 = vsel %vm92, %v89, 0
    %v112 = vsel %vm92, %v90, 0
    %v115 = vsel %vm92, %v91, 0
    %vm117 = vcmask 1043456
    %v119 = vsel %vm117, %v34, 0
    %121 = vmatprep.subr.bf16.mxu0 0
    %122 = vmatpush1.bf16.msra.mxu0 0
    %123 = vmatprep.subr.bf16.mxu0 0
    %124 = vmatpush1.bf16.msra.mxu0 0
    %125 = vmatprep.subr.bf16.mxu0 0
    %126 = vmatpush1.bf16.msra.mxu0 0
    %127 = vmatprep.subr.bf16.mxu0 0
    %128 = vmatpush1.bf16.msra.mxu0 0
    %129 = vmatprep.subr.bf16.mxu0 0
    %130 = vmatpush1.bf16.msra.mxu0 0
    %131 = vmatprep.subr.bf16.mxu0 0
    %132 = vmatpush1.bf16.msra.mxu0 0
    %133 = vmatprep.subr.bf16.mxu0 0
    %134 = vmatpush1.bf16.msra.mxu0 0
    %135 = vmatprep.subr.bf16.mxu0 0
    %136 = vmatpush1.bf16.msra.mxu0 %v119
    %137 = vmatprep.subr.bf16.mxu0 0
    %138 = vmatpush2.bf16.msra.mxu0 0
    %139 = vmatprep.subr.bf16.mxu0 0
    %140 = vmatpush2.bf16.msra.mxu0 0
    %141 = vmatprep.subr.bf16.mxu0 0
    %142 = vmatpush2.bf16.msra.mxu0 0
    %143 = vmatprep.subr.bf16.mxu0 0
    %144 = vmatpush2.bf16.msra.mxu0 0
    %145 = vmatprep.subr.bf16.mxu0 0
    %146 = vmatpush2.bf16.msra.mxu0 0
    %147 = vmatprep.subr.bf16.mxu0 0
    %148 = vmatpush2.bf16.msra.mxu0 0
    %149 = vmatprep.subr.bf16.mxu0 0
    %150 = vmatpush2.bf16.msra.mxu0 0
    %151 = vmatprep.subr.bf16.mxu0 0
    %152 = vmatpush2.bf16.msra.mxu0 0
    %153 = vmatprep.mubr.bf16.mxu0 0
    %154 = vmatmul.mubr.bf16.gmra.mxu0 %v94
    %v155 = vpop.f32.mrf.mxu0
    %v156 = vadd.f32 0.0, %v155
    %v157 = vpop.f32.mrf.mxu0
    %v158 = vpop.f32.mrf.mxu0
    %v159 = vadd.f32 0.0, %v158
    %v160 = vpop.f32.mrf.mxu0
    %161 = vmatprep.mubr.bf16.mxu0 0
    %162 = vmatmul.mubr.bf16.gmra.mxu0 %v97
    %v163 = vpop.f32.mrf.mxu0
    %v164 = vadd.f32 0.0, %v163
    %v165 = vpop.f32.mrf.mxu0
    %v166 = vpop.f32.mrf.mxu0
    %v167 = vadd.f32 0.0, %v166
    %v168 = vpop.f32.mrf.mxu0
    %169 = vmatprep.mubr.bf16.mxu0 0
    %170 = vmatmul.mubr.bf16.gmra.mxu0 %v100
    %v171 = vpop.f32.mrf.mxu0
    %v172 = vadd.f32 0.0, %v171
    %v173 = vpop.f32.mrf.mxu0
    %v174 = vpop.f32.mrf.mxu0
    %v175 = vadd.f32 0.0, %v174
    %v176 = vpop.f32.mrf.mxu0
    %177 = vmatprep.mubr.bf16.mxu0 0
    %178 = vmatmul.mubr.bf16.gmra.mxu0 %v103
    %v179 = vpop.f32.mrf.mxu0
    %v180 = vadd.f32 0.0, %v179
    %v181 = vpop.f32.mrf.mxu0
    %v182 = vpop.f32.mrf.mxu0
    %v183 = vadd.f32 0.0, %v182
    %v184 = vpop.f32.mrf.mxu0
    %185 = vmatprep.mubr.bf16.mxu0 0
    %186 = vmatmul.mubr.bf16.gmra.mxu0 %v106
    %v187 = vpop.f32.mrf.mxu0
    %v188 = vadd.f32 0.0, %v187
    %v189 = vpop.f32.mrf.mxu0
    %v190 = vpop.f32.mrf.mxu0
    %v191 = vadd.f32 0.0, %v190
    %v192 = vpop.f32.mrf.mxu0
    %193 = vmatprep.mubr.bf16.mxu0 0
    %194 = vmatmul.mubr.bf16.gmra.mxu0 %v109
    %v195 = vpop.f32.mrf.mxu0
    %v196 = vadd.f32 0.0, %v195
    %v197 = vpop.f32.mrf.mxu0
    %v198 = vpop.f32.mrf.mxu0
    %v199 = vadd.f32 0.0, %v198
    %v200 = vpop.f32.mrf.mxu0
    %201 = vmatprep.mubr.bf16.mxu0 0
    %202 = vmatmul.mubr.bf16.gmra.mxu0 %v112
    %v203 = vpop.f32.mrf.mxu0
    %v204 = vadd.f32 0.0, %v203
    %v205 = vpop.f32.mrf.mxu0
    %v206 = vpop.f32.mrf.mxu0
    %v207 = vadd.f32 0.0, %v206
    %v208 = vpop.f32.mrf.mxu0
    %209 = vmatprep.mubr.bf16.mxu0 0
    %210 = vmatmul.mubr.bf16.gmra.mxu0 %v115
    %v211 = vpop.f32.mrf.mxu0
    %v212 = vadd.f32 0.0, %v211
    %v213 = vpop.f32.mrf.mxu0
    %v214 = vpop.f32.mrf.mxu0
    %v215 = vadd.f32 0.0, %v214
    %v216 = vpop.f32.mrf.mxu0
    %217 = vdwg.mxu0
    %vm218 = vcmp.ge.f32.partialorder %v156, 0.0
    %vm219 = vcmp.ge.f32.partialorder %v159, 0.0
    %vm220 = vcmp.ge.f32.partialorder %v164, 0.0
    %vm221 = vcmp.ge.f32.partialorder %v167, 0.0
    %vm222 = vcmp.ge.f32.partialorder %v172, 0.0
    %vm223 = vcmp.ge.f32.partialorder %v175, 0.0
    %vm224 = vcmp.ge.f32.partialorder %v180, 0.0
    %vm225 = vcmp.ge.f32.partialorder %v183, 0.0
    %vm226 = vcmp.ge.f32.partialorder %v188, 0.0
    %vm227 = vcmp.ge.f32.partialorder %v191, 0.0
    %vm228 = vcmp.ge.f32.partialorder %v196, 0.0
    %vm229 = vcmp.ge.f32.partialorder %v199, 0.0
    %vm230 = vcmp.ge.f32.partialorder %v204, 0.0
    %vm231 = vcmp.ge.f32.partialorder %v207, 0.0
    %vm232 = vcmp.ge.f32.partialorder %v212, 0.0
    %vm233 = vcmp.ge.f32.partialorder %v215, 0.0
    %v234 = vmul.f32 %v156, 0.01
    %v235 = vmul.f32 %v159, 0.01
    %v236 = vmul.f32 %v164, 0.01
    %v237 = vmul.f32 %v167, 0.01
    %v238 = vmul.f32 %v172, 0.01
    %v239 = vmul.f32 %v175, 0.01
    %v240 = vmul.f32 %v180, 0.01
    %v241 = vmul.f32 %v183, 0.01
    %v242 = vmul.f32 %v188, 0.01
    %v243 = vmul.f32 %v191, 0.01
    %v244 = vmul.f32 %v196, 0.01
    %v245 = vmul.f32 %v199, 0.01
    %v246 = vmul.f32 %v204, 0.01
    %v247 = vmul.f32 %v207, 0.01
    %v248 = vmul.f32 %v212, 0.01
    %v249 = vmul.f32 %v215, 0.01
    %v250 = vsel %vm218, %v156, %v234
    %v251 = vsel %vm219, %v159, %v235
    %v252 = vsel %vm220, %v164, %v236
    %v253 = vsel %vm221, %v167, %v237
    %v254 = vsel %vm222, %v172, %v238
    %v255 = vsel %vm223, %v175, %v239
    %v256 = vsel %vm224, %v180, %v240
    %v257 = vsel %vm225, %v183, %v241
    %v258 = vsel %vm226, %v188, %v242
    %v259 = vsel %vm227, %v191, %v243
    %v260 = vsel %vm228, %v196, %v244
    %v261 = vsel %vm229, %v199, %v245
    %v262 = vsel %vm230, %v204, %v246
    %v263 = vsel %vm231, %v207, %v247
    %v264 = vsel %vm232, %v212, %v248
    %v265 = vsel %vm233, %v215, %v249
    %s266 = scalar_lea.vmem %s1, 320
    %v267 = vld [vmem:[%s266] sm:$0xf]
    %v268 = vld [vmem:[%s266 + $0x4] sm:$0xf]
    %v269 = vld [vmem:[%s266 + $0x8] sm:$0xf]
    %v270 = vld [vmem:[%s266 + $0xc] sm:$0xf]
    %v271 = vld [vmem:[%s266 + $0x10] sm:$0xf]
    %v272 = vld [vmem:[%s266 + $0x14] sm:$0xf]
    %v273 = vld [vmem:[%s266 + $0x18] sm:$0xf]
    %v274 = vld [vmem:[%s266 + $0x1c] sm:$0xf]
    %v275 = vld [vmem:[%s266 + $0x20] sm:$0xf]
    %v276 = vld [vmem:[%s266 + $0x24] sm:$0xf]
    %v277 = vld [vmem:[%s266 + $0x28] sm:$0xf]
    %v278 = vld [vmem:[%s266 + $0x2c] sm:$0xf]
    %v279 = vld [vmem:[%s266 + $0x30] sm:$0xf]
    %v280 = vld [vmem:[%s266 + $0x34] sm:$0xf]
    %v281 = vld [vmem:[%s266 + $0x38] sm:$0xf]
    %v282 = vld [vmem:[%s266 + $0x3c] sm:$0xf]
    %v283 = vpack.c.bf16 %v251, %v250
    %v284 = vpack.c.bf16 %v253, %v252
    %v285 = vpack.c.bf16 %v255, %v254
    %v286 = vpack.c.bf16 %v257, %v256
    %v287 = vpack.c.bf16 %v259, %v258
    %v288 = vpack.c.bf16 %v261, %v260
    %v289 = vpack.c.bf16 %v263, %v262
    %v290 = vpack.c.bf16 %v265, %v264
    %s291 = scalar_lea.vmem %s2, 640
    %v292 = vld [vmem:[%s291] sm:$0xff]
    %v293 = vld [vmem:[%s291 + $0x8] sm:$0xff]
    %v294 = vld [vmem:[%s291 + $0x10] sm:$0xff]
    %v295 = vld [vmem:[%s291 + $0x18] sm:$0xff]
    %v296 = vld [vmem:[%s291 + $0x20] sm:$0xff]
    %v297 = vld [vmem:[%s291 + $0x28] sm:$0xff]
    %v298 = vld [vmem:[%s291 + $0x30] sm:$0xff]
    %v299 = vld [vmem:[%s291 + $0x38] sm:$0xff]
    %v300 = vld [vmem:[%s291 + $0x40] sm:$0xff]
    %v301 = vld [vmem:[%s291 + $0x48] sm:$0xff]
    %v302 = vld [vmem:[%s291 + $0x50] sm:$0xff]
    %v303 = vld [vmem:[%s291 + $0x58] sm:$0xff]
    %v304 = vld [vmem:[%s291 + $0x60] sm:$0xff]
    %v305 = vld [vmem:[%s291 + $0x68] sm:$0xff]
    %v306 = vld [vmem:[%s291 + $0x70] sm:$0xff]
    %v307 = vld [vmem:[%s291 + $0x78] sm:$0xff]
    %309 = vset.pattern.permute.xlu0 0
    %310 = vperm.xlu0 %309, %v292
    %v311 = vpop.permute.xlu0 %310
    %314 = vset.pattern.permute.xlu0 0
    %315 = vperm.xlu0 %314, %v293
    %v316 = vpop.permute.xlu0 %315
    %319 = vset.pattern.permute.xlu0 0
    %320 = vperm.xlu0 %319, %v294
    %v321 = vpop.permute.xlu0 %320
    %324 = vset.pattern.permute.xlu0 0
    %325 = vperm.xlu0 %324, %v295
    %v326 = vpop.permute.xlu0 %325
    %329 = vset.pattern.permute.xlu0 0
    %330 = vperm.xlu0 %329, %v296
    %v331 = vpop.permute.xlu0 %330
    %334 = vset.pattern.permute.xlu0 0
    %335 = vperm.xlu0 %334, %v297
    %v336 = vpop.permute.xlu0 %335
    %339 = vset.pattern.permute.xlu0 0
    %340 = vperm.xlu0 %339, %v298
    %v341 = vpop.permute.xlu0 %340
    %344 = vset.pattern.permute.xlu0 0
    %345 = vperm.xlu0 %344, %v299
    %v346 = vpop.permute.xlu0 %345
    %349 = vset.pattern.permute.xlu0 0
    %350 = vperm.xlu0 %349, %v300
    %v351 = vpop.permute.xlu0 %350
    %354 = vset.pattern.permute.xlu0 0
    %355 = vperm.xlu0 %354, %v301
    %v356 = vpop.permute.xlu0 %355
    %359 = vset.pattern.permute.xlu0 0
    %360 = vperm.xlu0 %359, %v302
    %v361 = vpop.permute.xlu0 %360
    %364 = vset.pattern.permute.xlu0 0
    %365 = vperm.xlu0 %364, %v303
    %v366 = vpop.permute.xlu0 %365
    %369 = vset.pattern.permute.xlu0 0
    %370 = vperm.xlu0 %369, %v304
    %v371 = vpop.permute.xlu0 %370
    %374 = vset.pattern.permute.xlu0 0
    %375 = vperm.xlu0 %374, %v305
    %v376 = vpop.permute.xlu0 %375
    %379 = vset.pattern.permute.xlu0 0
    %380 = vperm.xlu0 %379, %v306
    %v381 = vpop.permute.xlu0 %380
    %384 = vset.pattern.permute.xlu0 0
    %385 = vperm.xlu0 %384, %v307
    %v386 = vpop.permute.xlu0 %385
    %v404 = vunpack.c.l.b16 %v267
    %v405 = vunpack.c.l.b16 %v268
    %v406 = vunpack.c.l.b16 %v269
    %v407 = vunpack.c.l.b16 %v270
    %v408 = vunpack.c.l.b16 %v271
    %v409 = vunpack.c.l.b16 %v272
    %v410 = vunpack.c.l.b16 %v273
    %v411 = vunpack.c.l.b16 %v274
    %v412 = vunpack.c.l.b16 %v275
    %v413 = vunpack.c.l.b16 %v276
    %v414 = vunpack.c.l.b16 %v277
    %v415 = vunpack.c.l.b16 %v278
    %v416 = vunpack.c.l.b16 %v279
    %v417 = vunpack.c.l.b16 %v280
    %v418 = vunpack.c.l.b16 %v281
    %v419 = vunpack.c.l.b16 %v282
    %v420 = vpack.c.b16 %v405, %v404
    %v421 = vpack.c.b16 %v407, %v406
    %v422 = vpack.c.b16 %v409, %v408
    %v423 = vpack.c.b16 %v411, %v410
    %v424 = vpack.c.b16 %v413, %v412
    %v425 = vpack.c.b16 %v415, %v414
    %v426 = vpack.c.b16 %v417, %v416
    %v427 = vpack.c.b16 %v419, %v418
    %436 = vmatprep.subr.bf16.mxu0 0
    %437 = vmatpush1.bf16.msra.mxu0 %v290
    %438 = vmatprep.subr.bf16.mxu0 0
    %439 = vmatpush1.bf16.msra.mxu0 %v289
    %440 = vmatprep.subr.bf16.mxu0 0
    %441 = vmatpush1.bf16.msra.mxu0 %v288
    %442 = vmatprep.subr.bf16.mxu0 0
    %443 = vmatpush1.bf16.msra.mxu0 %v287
    %444 = vmatprep.subr.bf16.mxu0 0
    %445 = vmatpush1.bf16.msra.mxu0 %v286
    %446 = vmatprep.subr.bf16.mxu0 0
    %447 = vmatpush1.bf16.msra.mxu0 %v285
    %448 = vmatprep.subr.bf16.mxu0 0
    %449 = vmatpush1.bf16.msra.mxu0 %v284
    %450 = vmatprep.subr.bf16.mxu0 0
    %451 = vmatpush1.bf16.msra.mxu0 %v283
    %452 = vmatprep.subr.bf16.mxu0 0
    %453 = vmatpush2.bf16.msra.mxu0 0
    %454 = vmatprep.subr.bf16.mxu0 0
    %455 = vmatpush2.bf16.msra.mxu0 0
    %456 = vmatprep.subr.bf16.mxu0 0
    %457 = vmatpush2.bf16.msra.mxu0 0
    %458 = vmatprep.subr.bf16.mxu0 0
    %459 = vmatpush2.bf16.msra.mxu0 0
    %460 = vmatprep.subr.bf16.mxu0 0
    %461 = vmatpush2.bf16.msra.mxu0 0
    %462 = vmatprep.subr.bf16.mxu0 0
    %463 = vmatpush2.bf16.msra.mxu0 0
    %464 = vmatprep.subr.bf16.mxu0 0
    %465 = vmatpush2.bf16.msra.mxu0 0
    %466 = vmatprep.subr.bf16.mxu0 0
    %467 = vmatpush2.bf16.msra.mxu0 0
    %468 = vmatprep.mubr.bf16.mxu0 0
    %469 = vmatmul.mubr.bf16.gmra.mxu0 %v420
    %v470 = vpop.f32.mrf.mxu0
    %v471 = vadd.f32 %v311, %v470
    %v472 = vpop.f32.mrf.mxu0
    %v473 = vpop.f32.mrf.mxu0
    %v474 = vadd.f32 %v316, %v473
    %v475 = vpop.f32.mrf.mxu0
    %476 = vmatprep.mubr.bf16.mxu0 0
    %477 = vmatmul.mubr.bf16.gmra.mxu0 %v421
    %v478 = vpop.f32.mrf.mxu0
    %v479 = vadd.f32 %v321, %v478
    %v480 = vpop.f32.mrf.mxu0
    %v481 = vpop.f32.mrf.mxu0
    %v482 = vadd.f32 %v326, %v481
    %v483 = vpop.f32.mrf.mxu0
    %484 = vmatprep.mubr.bf16.mxu0 0
    %485 = vmatmul.mubr.bf16.gmra.mxu0 %v422
    %v486 = vpop.f32.mrf.mxu0
    %v487 = vadd.f32 %v331, %v486
    %v488 = vpop.f32.mrf.mxu0
    %v489 = vpop.f32.mrf.mxu0
    %v490 = vadd.f32 %v336, %v489
    %v491 = vpop.f32.mrf.mxu0
    %492 = vmatprep.mubr.bf16.mxu0 0
    %493 = vmatmul.mubr.bf16.gmra.mxu0 %v423
    %v494 = vpop.f32.mrf.mxu0
    %v495 = vadd.f32 %v341, %v494
    %v496 = vpop.f32.mrf.mxu0
    %v497 = vpop.f32.mrf.mxu0
    %v498 = vadd.f32 %v346, %v497
    %v499 = vpop.f32.mrf.mxu0
    %500 = vmatprep.mubr.bf16.mxu0 0
    %501 = vmatmul.mubr.bf16.gmra.mxu0 %v424
    %v502 = vpop.f32.mrf.mxu0
    %v503 = vadd.f32 %v351, %v502
    %v504 = vpop.f32.mrf.mxu0
    %v505 = vpop.f32.mrf.mxu0
    %v506 = vadd.f32 %v356, %v505
    %v507 = vpop.f32.mrf.mxu0
    %508 = vmatprep.mubr.bf16.mxu0 0
    %509 = vmatmul.mubr.bf16.gmra.mxu0 %v425
    %v510 = vpop.f32.mrf.mxu0
    %v511 = vadd.f32 %v361, %v510
    %v512 = vpop.f32.mrf.mxu0
    %v513 = vpop.f32.mrf.mxu0
    %v514 = vadd.f32 %v366, %v513
    %v515 = vpop.f32.mrf.mxu0
    %516 = vmatprep.mubr.bf16.mxu0 0
    %517 = vmatmul.mubr.bf16.gmra.mxu0 %v426
    %v518 = vpop.f32.mrf.mxu0
    %v519 = vadd.f32 %v371, %v518
    %v520 = vpop.f32.mrf.mxu0
    %v521 = vpop.f32.mrf.mxu0
    %v522 = vadd.f32 %v376, %v521
    %v523 = vpop.f32.mrf.mxu0
    %524 = vmatprep.mubr.bf16.mxu0 0
    %525 = vmatmul.mubr.bf16.gmra.mxu0 %v427
    %v526 = vpop.f32.mrf.mxu0
    %v527 = vadd.f32 %v381, %v526
    %v528 = vpop.f32.mrf.mxu0
    %v529 = vpop.f32.mrf.mxu0
    %v530 = vadd.f32 %v386, %v529
    %v531 = vpop.f32.mrf.mxu0
    %532 = vdwg.mxu0
    %vm533 = vcmp.ge.f32.partialorder %v471, 0.0
    %vm534 = vcmp.ge.f32.partialorder %v474, 0.0
    %vm535 = vcmp.ge.f32.partialorder %v479, 0.0
    %vm536 = vcmp.ge.f32.partialorder %v482, 0.0
    %vm537 = vcmp.ge.f32.partialorder %v487, 0.0
    %vm538 = vcmp.ge.f32.partialorder %v490, 0.0
    %vm539 = vcmp.ge.f32.partialorder %v495, 0.0
    %vm540 = vcmp.ge.f32.partialorder %v498, 0.0
    %vm541 = vcmp.ge.f32.partialorder %v503, 0.0
    %vm542 = vcmp.ge.f32.partialorder %v506, 0.0
    %vm543 = vcmp.ge.f32.partialorder %v511, 0.0
    %vm544 = vcmp.ge.f32.partialorder %v514, 0.0
    %vm545 = vcmp.ge.f32.partialorder %v519, 0.0
    %vm546 = vcmp.ge.f32.partialorder %v522, 0.0
    %vm547 = vcmp.ge.f32.partialorder %v527, 0.0
    %vm548 = vcmp.ge.f32.partialorder %v530, 0.0
    %v549 = vmul.f32 %v471, 0.01
    %v550 = vmul.f32 %v474, 0.01
    %v551 = vmul.f32 %v479, 0.01
    %v552 = vmul.f32 %v482, 0.01
    %v553 = vmul.f32 %v487, 0.01
    %v554 = vmul.f32 %v490, 0.01
    %v555 = vmul.f32 %v495, 0.01
    %v556 = vmul.f32 %v498, 0.01
    %v557 = vmul.f32 %v503, 0.01
    %v558 = vmul.f32 %v506, 0.01
    %v559 = vmul.f32 %v511, 0.01
    %v560 = vmul.f32 %v514, 0.01
    %v561 = vmul.f32 %v519, 0.01
    %v562 = vmul.f32 %v522, 0.01
    %v563 = vmul.f32 %v527, 0.01
    %v564 = vmul.f32 %v530, 0.01
    %v565 = vsel %vm533, %v471, %v549
    %v566 = vsel %vm534, %v474, %v550
    %v567 = vsel %vm535, %v479, %v551
    %v568 = vsel %vm536, %v482, %v552
    %v569 = vsel %vm537, %v487, %v553
    %v570 = vsel %vm538, %v490, %v554
    %v571 = vsel %vm539, %v495, %v555
    %v572 = vsel %vm540, %v498, %v556
    %v573 = vsel %vm541, %v503, %v557
    %v574 = vsel %vm542, %v506, %v558
    %v575 = vsel %vm543, %v511, %v559
    %v576 = vsel %vm544, %v514, %v560
    %v577 = vsel %vm545, %v519, %v561
    %v578 = vsel %vm546, %v522, %v562
    %v579 = vsel %vm547, %v527, %v563
    %v580 = vsel %vm548, %v530, %v564
    %s581 = scalar_lea.vmem %s3, 5
    %v582 = vld [vmem:[%s581] sm:$0x1]
    %v583 = vpack.c.bf16 %v566, %v565
    %v584 = vpack.c.bf16 %v568, %v567
    %v585 = vpack.c.bf16 %v570, %v569
    %v586 = vpack.c.bf16 %v572, %v571
    %v587 = vpack.c.bf16 %v574, %v573
    %v588 = vpack.c.bf16 %v576, %v575
    %v589 = vpack.c.bf16 %v578, %v577
    %v590 = vpack.c.bf16 %v580, %v579
    %s591 = scalar_lea.vmem %s4, 10
    %v592 = vld [vmem:[%s591] sm:$0x3]
    %594 = vset.pattern.permute.xlu0 0
    %595 = vperm.xlu0 %594, %v592
    %v596 = vpop.permute.xlu0 %595
    %598 = vmatprep.subr.bf16.mxu0 0
    %599 = vmatpush1.bf16.msra.mxu0 %v590
    %600 = vmatprep.subr.bf16.mxu0 0
    %601 = vmatpush1.bf16.msra.mxu0 %v589
    %602 = vmatprep.subr.bf16.mxu0 0
    %603 = vmatpush1.bf16.msra.mxu0 %v588
    %604 = vmatprep.subr.bf16.mxu0 0
    %605 = vmatpush1.bf16.msra.mxu0 %v587
    %606 = vmatprep.subr.bf16.mxu0 0
    %607 = vmatpush1.bf16.msra.mxu0 %v586
    %608 = vmatprep.subr.bf16.mxu0 0
    %609 = vmatpush1.bf16.msra.mxu0 %v585
    %610 = vmatprep.subr.bf16.mxu0 0
    %611 = vmatpush1.bf16.msra.mxu0 %v584
    %612 = vmatprep.subr.bf16.mxu0 0
    %613 = vmatpush1.bf16.msra.mxu0 %v583
    %614 = vmatprep.subr.bf16.mxu0 0
    %615 = vmatpush2.bf16.msra.mxu0 0
    %616 = vmatprep.subr.bf16.mxu0 0
    %617 = vmatpush2.bf16.msra.mxu0 0
    %618 = vmatprep.subr.bf16.mxu0 0
    %619 = vmatpush2.bf16.msra.mxu0 0
    %620 = vmatprep.subr.bf16.mxu0 0
    %621 = vmatpush2.bf16.msra.mxu0 0
    %622 = vmatprep.subr.bf16.mxu0 0
    %623 = vmatpush2.bf16.msra.mxu0 0
    %624 = vmatprep.subr.bf16.mxu0 0
    %625 = vmatpush2.bf16.msra.mxu0 0
    %626 = vmatprep.subr.bf16.mxu0 0
    %627 = vmatpush2.bf16.msra.mxu0 0
    %628 = vmatprep.subr.bf16.mxu0 0
    %629 = vmatpush2.bf16.msra.mxu0 0
    %630 = vmatprep.mubr.bf16.mxu0 0
    %631 = vmatmul.mubr.bf16.gmra.mxu0 %v582
    %v632 = vpop.f32.mrf.mxu0
    %v633 = vadd.f32 %v596, %v632
    %v634 = vpop.f32.mrf.mxu0
    %v635 = vpop.f32.mrf.mxu0
    %v636 = vpop.f32.mrf.mxu0
    %637 = vdwg.mxu0
    %v638 = vtanh.pop %v633
    %v639 = vsub.f32 %v25, %v633
    %v640 = vsub.f32 0.0, %v638
    %v641 = vmul.f32 %v640, 1.442695
    %v642 = vpow.pop %v641
    %v644 = vrot.slane %v642, 7
    %v646 = vmul.f32 %v639, %v644
    %v647 = vlaneseq
    %v648 = vshrl.u32 %v647, 7
    %v649 = vsub.s32 1, %v648
    %v650 = vrot.slane %v646, %v649
    %v651 = vsel %vm28, %v650, 1.0
    %v652 = vpack.c.bf16 %v651, %v651
    %s653 = scalar_lea.vmem %s0, 256
    %v654 = vld [vmem:[%s653] sm:$0xf]
    %v655 = vld [vmem:[%s653 + $0x4] sm:$0xf]
    %v656 = vld [vmem:[%s653 + $0x8] sm:$0xf]
    %v657 = vld [vmem:[%s653 + $0xc] sm:$0xf]
    %v658 = vld [vmem:[%s653 + $0x10] sm:$0xf]
    %v659 = vld [vmem:[%s653 + $0x14] sm:$0xf]
    %v660 = vld [vmem:[%s653 + $0x18] sm:$0xf]
    %v661 = vld [vmem:[%s653 + $0x1c] sm:$0xf]
    %v662 = vld [vmem:[%s653 + $0x20] sm:$0xf]
    %v663 = vld [vmem:[%s653 + $0x24] sm:$0xf]
    %v664 = vld [vmem:[%s653 + $0x28] sm:$0xf]
    %v665 = vld [vmem:[%s653 + $0x2c] sm:$0xf]
    %v666 = vld [vmem:[%s653 + $0x30] sm:$0xf]
    %v667 = vld [vmem:[%s653 + $0x34] sm:$0xf]
    %v668 = vld [vmem:[%s653 + $0x38] sm:$0xf]
    %v669 = vld [vmem:[%s653 + $0x3c] sm:$0xf]
    %v686 = vunpack.c.l.b16 %v654
    %v687 = vunpack.c.l.b16 %v655
    %v688 = vunpack.c.l.b16 %v656
    %v689 = vunpack.c.l.b16 %v657
    %v690 = vunpack.c.l.b16 %v658
    %v691 = vunpack.c.l.b16 %v659
    %v692 = vunpack.c.l.b16 %v660
    %v693 = vunpack.c.l.b16 %v661
    %v694 = vunpack.c.l.b16 %v662
    %v695 = vunpack.c.l.b16 %v663
    %v696 = vunpack.c.l.b16 %v664
    %v697 = vunpack.c.l.b16 %v665
    %v698 = vunpack.c.l.b16 %v666
    %v699 = vunpack.c.l.b16 %v667
    %v700 = vunpack.c.l.b16 %v668
    %v701 = vunpack.c.l.b16 %v669
    %v702 = vpack.c.b16 %v687, %v686
    %v703 = vpack.c.b16 %v689, %v688
    %v704 = vpack.c.b16 %v691, %v690
    %v705 = vpack.c.b16 %v693, %v692
    %v706 = vpack.c.b16 %v695, %v694
    %v707 = vpack.c.b16 %v697, %v696
    %v708 = vpack.c.b16 %v699, %v698
    %v709 = vpack.c.b16 %v701, %v700
    %v711 = vsel %vm92, %v702, 0
    %v714 = vsel %vm92, %v703, 0
    %v717 = vsel %vm92, %v704, 0
    %v720 = vsel %vm92, %v705, 0
    %v723 = vsel %vm92, %v706, 0
    %v726 = vsel %vm92, %v707, 0
    %v729 = vsel %vm92, %v708, 0
    %v732 = vsel %vm92, %v709, 0
    %v735 = vsel %vm117, %v652, 0
    %737 = vmatprep.subr.bf16.mxu0 0
    %738 = vmatpush1.bf16.msra.mxu0 0
    %739 = vmatprep.subr.bf16.mxu0 0
    %740 = vmatpush1.bf16.msra.mxu0 0
    %741 = vmatprep.subr.bf16.mxu0 0
    %742 = vmatpush1.bf16.msra.mxu0 0
    %743 = vmatprep.subr.bf16.mxu0 0
    %744 = vmatpush1.bf16.msra.mxu0 0
    %745 = vmatprep.subr.bf16.mxu0 0
    %746 = vmatpush1.bf16.msra.mxu0 0
    %747 = vmatprep.subr.bf16.mxu0 0
    %748 = vmatpush1.bf16.msra.mxu0 0
    %749 = vmatprep.subr.bf16.mxu0 0
    %750 = vmatpush1.bf16.msra.mxu0 0
    %751 = vmatprep.subr.bf16.mxu0 0
    %752 = vmatpush1.bf16.msra.mxu0 %v735
    %753 = vmatprep.subr.bf16.mxu0 0
    %754 = vmatpush2.bf16.msra.mxu0 0
    %755 = vmatprep.subr.bf16.mxu0 0
    %756 = vmatpush2.bf16.msra.mxu0 0
    %757 = vmatprep.subr.bf16.mxu0 0
    %758 = vmatpush2.bf16.msra.mxu0 0
    %759 = vmatprep.subr.bf16.mxu0 0
    %760 = vmatpush2.bf16.msra.mxu0 0
    %761 = vmatprep.subr.bf16.mxu0 0
    %762 = vmatpush2.bf16.msra.mxu0 0
    %763 = vmatprep.subr.bf16.mxu0 0
    %764 = vmatpush2.bf16.msra.mxu0 0
    %765 = vmatprep.subr.bf16.mxu0 0
    %766 = vmatpush2.bf16.msra.mxu0 0
    %767 = vmatprep.subr.bf16.mxu0 0
    %768 = vmatpush2.bf16.msra.mxu0 0
    %769 = vmatprep.mubr.bf16.mxu0 0
    %770 = vmatmul.mubr.bf16.gmra.mxu0 %v711
    %v771 = vpop.f32.mrf.mxu0
    %v772 = vadd.f32 0.0, %v771
    %v773 = vpop.f32.mrf.mxu0
    %v774 = vpop.f32.mrf.mxu0
    %v775 = vadd.f32 0.0, %v774
    %v776 = vpop.f32.mrf.mxu0
    %777 = vmatprep.mubr.bf16.mxu0 0
    %778 = vmatmul.mubr.bf16.gmra.mxu0 %v714
    %v779 = vpop.f32.mrf.mxu0
    %v780 = vadd.f32 0.0, %v779
    %v781 = vpop.f32.mrf.mxu0
    %v782 = vpop.f32.mrf.mxu0
    %v783 = vadd.f32 0.0, %v782
    %v784 = vpop.f32.mrf.mxu0
    %785 = vmatprep.mubr.bf16.mxu0 0
    %786 = vmatmul.mubr.bf16.gmra.mxu0 %v717
    %v787 = vpop.f32.mrf.mxu0
    %v788 = vadd.f32 0.0, %v787
    %v789 = vpop.f32.mrf.mxu0
    %v790 = vpop.f32.mrf.mxu0
    %v791 = vadd.f32 0.0, %v790
    %v792 = vpop.f32.mrf.mxu0
    %793 = vmatprep.mubr.bf16.mxu0 0
    %794 = vmatmul.mubr.bf16.gmra.mxu0 %v720
    %v795 = vpop.f32.mrf.mxu0
    %v796 = vadd.f32 0.0, %v795
    %v797 = vpop.f32.mrf.mxu0
    %v798 = vpop.f32.mrf.mxu0
    %v799 = vadd.f32 0.0, %v798
    %v800 = vpop.f32.mrf.mxu0
    %801 = vmatprep.mubr.bf16.mxu0 0
    %802 = vmatmul.mubr.bf16.gmra.mxu0 %v723
    %v803 = vpop.f32.mrf.mxu0
    %v804 = vadd.f32 0.0, %v803
    %v805 = vpop.f32.mrf.mxu0
    %v806 = vpop.f32.mrf.mxu0
    %v807 = vadd.f32 0.0, %v806
    %v808 = vpop.f32.mrf.mxu0
    %809 = vmatprep.mubr.bf16.mxu0 0
    %810 = vmatmul.mubr.bf16.gmra.mxu0 %v726
    %v811 = vpop.f32.mrf.mxu0
    %v812 = vadd.f32 0.0, %v811
    %v813 = vpop.f32.mrf.mxu0
    %v814 = vpop.f32.mrf.mxu0
    %v815 = vadd.f32 0.0, %v814
    %v816 = vpop.f32.mrf.mxu0
    %817 = vmatprep.mubr.bf16.mxu0 0
    %818 = vmatmul.mubr.bf16.gmra.mxu0 %v729
    %v819 = vpop.f32.mrf.mxu0
    %v820 = vadd.f32 0.0, %v819
    %v821 = vpop.f32.mrf.mxu0
    %v822 = vpop.f32.mrf.mxu0
    %v823 = vadd.f32 0.0, %v822
    %v824 = vpop.f32.mrf.mxu0
    %825 = vmatprep.mubr.bf16.mxu0 0
    %826 = vmatmul.mubr.bf16.gmra.mxu0 %v732
    %v827 = vpop.f32.mrf.mxu0
    %v828 = vadd.f32 0.0, %v827
    %v829 = vpop.f32.mrf.mxu0
    %v830 = vpop.f32.mrf.mxu0
    %v831 = vadd.f32 0.0, %v830
    %v832 = vpop.f32.mrf.mxu0
    %833 = vdwg.mxu0
    %vm834 = vcmp.ge.f32.partialorder %v772, 0.0
    %vm835 = vcmp.ge.f32.partialorder %v775, 0.0
    %vm836 = vcmp.ge.f32.partialorder %v780, 0.0
    %vm837 = vcmp.ge.f32.partialorder %v783, 0.0
    %vm838 = vcmp.ge.f32.partialorder %v788, 0.0
    %vm839 = vcmp.ge.f32.partialorder %v791, 0.0
    %vm840 = vcmp.ge.f32.partialorder %v796, 0.0
    %vm841 = vcmp.ge.f32.partialorder %v799, 0.0
    %vm842 = vcmp.ge.f32.partialorder %v804, 0.0
    %vm843 = vcmp.ge.f32.partialorder %v807, 0.0
    %vm844 = vcmp.ge.f32.partialorder %v812, 0.0
    %vm845 = vcmp.ge.f32.partialorder %v815, 0.0
    %vm846 = vcmp.ge.f32.partialorder %v820, 0.0
    %vm847 = vcmp.ge.f32.partialorder %v823, 0.0
    %vm848 = vcmp.ge.f32.partialorder %v828, 0.0
    %vm849 = vcmp.ge.f32.partialorder %v831, 0.0
    %v850 = vmul.f32 %v772, 0.01
    %v851 = vmul.f32 %v775, 0.01
    %v852 = vmul.f32 %v780, 0.01
    %v853 = vmul.f32 %v783, 0.01
    %v854 = vmul.f32 %v788, 0.01
    %v855 = vmul.f32 %v791, 0.01
    %v856 = vmul.f32 %v796, 0.01
    %v857 = vmul.f32 %v799, 0.01
    %v858 = vmul.f32 %v804, 0.01
    %v859 = vmul.f32 %v807, 0.01
    %v860 = vmul.f32 %v812, 0.01
    %v861 = vmul.f32 %v815, 0.01
    %v862 = vmul.f32 %v820, 0.01
    %v863 = vmul.f32 %v823, 0.01
    %v864 = vmul.f32 %v828, 0.01
    %v865 = vmul.f32 %v831, 0.01
    %v866 = vsel %vm834, %v772, %v850
    %v867 = vsel %vm835, %v775, %v851
    %v868 = vsel %vm836, %v780, %v852
    %v869 = vsel %vm837, %v783, %v853
    %v870 = vsel %vm838, %v788, %v854
    %v871 = vsel %vm839, %v791, %v855
    %v872 = vsel %vm840, %v796, %v856
    %v873 = vsel %vm841, %v799, %v857
    %v874 = vsel %vm842, %v804, %v858
    %v875 = vsel %vm843, %v807, %v859
    %v876 = vsel %vm844, %v812, %v860
    %v877 = vsel %vm845, %v815, %v861
    %v878 = vsel %vm846, %v820, %v862
    %v879 = vsel %vm847, %v823, %v863
    %v880 = vsel %vm848, %v828, %v864
    %v881 = vsel %vm849, %v831, %v865
    %s882 = scalar_lea.vmem %s1, 256
    %v883 = vld [vmem:[%s882] sm:$0xf]
    %v884 = vld [vmem:[%s882 + $0x4] sm:$0xf]
    %v885 = vld [vmem:[%s882 + $0x8] sm:$0xf]
    %v886 = vld [vmem:[%s882 + $0xc] sm:$0xf]
    %v887 = vld [vmem:[%s882 + $0x10] sm:$0xf]
    %v888 = vld [vmem:[%s882 + $0x14] sm:$0xf]
    %v889 = vld [vmem:[%s882 + $0x18] sm:$0xf]
    %v890 = vld [vmem:[%s882 + $0x1c] sm:$0xf]
    %v891 = vld [vmem:[%s882 + $0x20] sm:$0xf]
    %v892 = vld [vmem:[%s882 + $0x24] sm:$0xf]
    %v893 = vld [vmem:[%s882 + $0x28] sm:$0xf]
    %v894 = vld [vmem:[%s882 + $0x2c] sm:$0xf]
    %v895 = vld [vmem:[%s882 + $0x30] sm:$0xf]
    %v896 = vld [vmem:[%s882 + $0x34] sm:$0xf]
    %v897 = vld [vmem:[%s882 + $0x38] sm:$0xf]
    %v898 = vld [vmem:[%s882 + $0x3c] sm:$0xf]
    %v899 = vpack.c.bf16 %v867, %v866
    %v900 = vpack.c.bf16 %v869, %v868
    %v901 = vpack.c.bf16 %v871, %v870
    %v902 = vpack.c.bf16 %v873, %v872
    %v903 = vpack.c.bf16 %v875, %v874
    %v904 = vpack.c.bf16 %v877, %v876
    %v905 = vpack.c.bf16 %v879, %v878
    %v906 = vpack.c.bf16 %v881, %v880
    %s907 = scalar_lea.vmem %s2, 512
    %v908 = vld [vmem:[%s907] sm:$0xff]
    %v909 = vld [vmem:[%s907 + $0x8] sm:$0xff]
    %v910 = vld [vmem:[%s907 + $0x10] sm:$0xff]
    %v911 = vld [vmem:[%s907 + $0x18] sm:$0xff]
    %v912 = vld [vmem:[%s907 + $0x20] sm:$0xff]
    %v913 = vld [vmem:[%s907 + $0x28] sm:$0xff]
    %v914 = vld [vmem:[%s907 + $0x30] sm:$0xff]
    %v915 = vld [vmem:[%s907 + $0x38] sm:$0xff]
    %v916 = vld [vmem:[%s907 + $0x40] sm:$0xff]
    %v917 = vld [vmem:[%s907 + $0x48] sm:$0xff]
    %v918 = vld [vmem:[%s907 + $0x50] sm:$0xff]
    %v919 = vld [vmem:[%s907 + $0x58] sm:$0xff]
    %v920 = vld [vmem:[%s907 + $0x60] sm:$0xff]
    %v921 = vld [vmem:[%s907 + $0x68] sm:$0xff]
    %v922 = vld [vmem:[%s907 + $0x70] sm:$0xff]
    %v923 = vld [vmem:[%s907 + $0x78] sm:$0xff]
    %925 = vset.pattern.permute.xlu0 0
    %926 = vperm.xlu0 %925, %v908
    %v927 = vpop.permute.xlu0 %926
    %930 = vset.pattern.permute.xlu0 0
    %931 = vperm.xlu0 %930, %v909
    %v932 = vpop.permute.xlu0 %931
    %935 = vset.pattern.permute.xlu0 0
    %936 = vperm.xlu0 %935, %v910
    %v937 = vpop.permute.xlu0 %936
    %940 = vset.pattern.permute.xlu0 0
    %941 = vperm.xlu0 %940, %v911
    %v942 = vpop.permute.xlu0 %941
    %945 = vset.pattern.permute.xlu0 0
    %946 = vperm.xlu0 %945, %v912
    %v947 = vpop.permute.xlu0 %946
    %950 = vset.pattern.permute.xlu0 0
    %951 = vperm.xlu0 %950, %v913
    %v952 = vpop.permute.xlu0 %951
    %955 = vset.pattern.permute.xlu0 0
    %956 = vperm.xlu0 %955, %v914
    %v957 = vpop.permute.xlu0 %956
    %960 = vset.pattern.permute.xlu0 0
    %961 = vperm.xlu0 %960, %v915
    %v962 = vpop.permute.xlu0 %961
    %965 = vset.pattern.permute.xlu0 0
    %966 = vperm.xlu0 %965, %v916
    %v967 = vpop.permute.xlu0 %966
    %970 = vset.pattern.permute.xlu0 0
    %971 = vperm.xlu0 %970, %v917
    %v972 = vpop.permute.xlu0 %971
    %975 = vset.pattern.permute.xlu0 0
    %976 = vperm.xlu0 %975, %v918
    %v977 = vpop.permute.xlu0 %976
    %980 = vset.pattern.permute.xlu0 0
    %981 = vperm.xlu0 %980, %v919
    %v982 = vpop.permute.xlu0 %981
    %985 = vset.pattern.permute.xlu0 0
    %986 = vperm.xlu0 %985, %v920
    %v987 = vpop.permute.xlu0 %986
    %990 = vset.pattern.permute.xlu0 0
    %991 = vperm.xlu0 %990, %v921
    %v992 = vpop.permute.xlu0 %991
    %995 = vset.pattern.permute.xlu0 0
    %996 = vperm.xlu0 %995, %v922
    %v997 = vpop.permute.xlu0 %996
    %1000 = vset.pattern.permute.xlu0 0
    %1001 = vperm.xlu0 %1000, %v923
    %v1002 = vpop.permute.xlu0 %1001
    %v1020 = vunpack.c.l.b16 %v883
    %v1021 = vunpack.c.l.b16 %v884
    %v1022 = vunpack.c.l.b16 %v885
    %v1023 = vunpack.c.l.b16 %v886
    %v1024 = vunpack.c.l.b16 %v887
    %v1025 = vunpack.c.l.b16 %v888
    %v1026 = vunpack.c.l.b16 %v889
    %v1027 = vunpack.c.l.b16 %v890
    %v1028 = vunpack.c.l.b16 %v891
    %v1029 = vunpack.c.l.b16 %v892
    %v1030 = vunpack.c.l.b16 %v893
    %v1031 = vunpack.c.l.b16 %v894
    %v1032 = vunpack.c.l.b16 %v895
    %v1033 = vunpack.c.l.b16 %v896
    %v1034 = vunpack.c.l.b16 %v897
    %v1035 = vunpack.c.l.b16 %v898
    %v1036 = vpack.c.b16 %v1021, %v1020
    %v1037 = vpack.c.b16 %v1023, %v1022
    %v1038 = vpack.c.b16 %v1025, %v1024
    %v1039 = vpack.c.b16 %v1027, %v1026
    %v1040 = vpack.c.b16 %v1029, %v1028
    %v1041 = vpack.c.b16 %v1031, %v1030
    %v1042 = vpack.c.b16 %v1033, %v1032
    %v1043 = vpack.c.b16 %v1035, %v1034
    %1052 = vmatprep.subr.bf16.mxu0 0
    %1053 = vmatpush1.bf16.msra.mxu0 %v906
    %1054 = vmatprep.subr.bf16.mxu0 0
    %1055 = vmatpush1.bf16.msra.mxu0 %v905
    %1056 = vmatprep.subr.bf16.mxu0 0
    %1057 = vmatpush1.bf16.msra.mxu0 %v904
    %1058 = vmatprep.subr.bf16.mxu0 0
    %1059 = vmatpush1.bf16.msra.mxu0 %v903
    %1060 = vmatprep.subr.bf16.mxu0 0
    %1061 = vmatpush1.bf16.msra.mxu0 %v902
    %1062 = vmatprep.subr.bf16.mxu0 0
    %1063 = vmatpush1.bf16.msra.mxu0 %v901
    %1064 = vmatprep.subr.bf16.mxu0 0
    %1065 = vmatpush1.bf16.msra.mxu0 %v900
    %1066 = vmatprep.subr.bf16.mxu0 0
    %1067 = vmatpush1.bf16.msra.mxu0 %v899
    %1068 = vmatprep.subr.bf16.mxu0 0
    %1069 = vmatpush2.bf16.msra.mxu0 0
    %1070 = vmatprep.subr.bf16.mxu0 0
    %1071 = vmatpush2.bf16.msra.mxu0 0
    %1072 = vmatprep.subr.bf16.mxu0 0
    %1073 = vmatpush2.bf16.msra.mxu0 0
    %1074 = vmatprep.subr.bf16.mxu0 0
    %1075 = vmatpush2.bf16.msra.mxu0 0
    %1076 = vmatprep.subr.bf16.mxu0 0
    %1077 = vmatpush2.bf16.msra.mxu0 0
    %1078 = vmatprep.subr.bf16.mxu0 0
    %1079 = vmatpush2.bf16.msra.mxu0 0
    %1080 = vmatprep.subr.bf16.mxu0 0
    %1081 = vmatpush2.bf16.msra.mxu0 0
    %1082 = vmatprep.subr.bf16.mxu0 0
    %1083 = vmatpush2.bf16.msra.mxu0 0
    %1084 = vmatprep.mubr.bf16.mxu0 0
    %1085 = vmatmul.mubr.bf16.gmra.mxu0 %v1036
    %v1086 = vpop.f32.mrf.mxu0
    %v1087 = vadd.f32 %v927, %v1086
    %v1088 = vpop.f32.mrf.mxu0
    %v1089 = vpop.f32.mrf.mxu0
    %v1090 = vadd.f32 %v932, %v1089
    %v1091 = vpop.f32.mrf.mxu0
    %1092 = vmatprep.mubr.bf16.mxu0 0
    %1093 = vmatmul.mubr.bf16.gmra.mxu0 %v1037
    %v1094 = vpop.f32.mrf.mxu0
    %v1095 = vadd.f32 %v937, %v1094
    %v1096 = vpop.f32.mrf.mxu0
    %v1097 = vpop.f32.mrf.mxu0
    %v1098 = vadd.f32 %v942, %v1097
    %v1099 = vpop.f32.mrf.mxu0
    %1100 = vmatprep.mubr.bf16.mxu0 0
    %1101 = vmatmul.mubr.bf16.gmra.mxu0 %v1038
    %v1102 = vpop.f32.mrf.mxu0
    %v1103 = vadd.f32 %v947, %v1102
    %v1104 = vpop.f32.mrf.mxu0
    %v1105 = vpop.f32.mrf.mxu0
    %v1106 = vadd.f32 %v952, %v1105
    %v1107 = vpop.f32.mrf.mxu0
    %1108 = vmatprep.mubr.bf16.mxu0 0
    %1109 = vmatmul.mubr.bf16.gmra.mxu0 %v1039
    %v1110 = vpop.f32.mrf.mxu0
    %v1111 = vadd.f32 %v957, %v1110
    %v1112 = vpop.f32.mrf.mxu0
    %v1113 = vpop.f32.mrf.mxu0
    %v1114 = vadd.f32 %v962, %v1113
    %v1115 = vpop.f32.mrf.mxu0
    %1116 = vmatprep.mubr.bf16.mxu0 0
    %1117 = vmatmul.mubr.bf16.gmra.mxu0 %v1040
    %v1118 = vpop.f32.mrf.mxu0
    %v1119 = vadd.f32 %v967, %v1118
    %v1120 = vpop.f32.mrf.mxu0
    %v1121 = vpop.f32.mrf.mxu0
    %v1122 = vadd.f32 %v972, %v1121
    %v1123 = vpop.f32.mrf.mxu0
    %1124 = vmatprep.mubr.bf16.mxu0 0
    %1125 = vmatmul.mubr.bf16.gmra.mxu0 %v1041
    %v1126 = vpop.f32.mrf.mxu0
    %v1127 = vadd.f32 %v977, %v1126
    %v1128 = vpop.f32.mrf.mxu0
    %v1129 = vpop.f32.mrf.mxu0
    %v1130 = vadd.f32 %v982, %v1129
    %v1131 = vpop.f32.mrf.mxu0
    %1132 = vmatprep.mubr.bf16.mxu0 0
    %1133 = vmatmul.mubr.bf16.gmra.mxu0 %v1042
    %v1134 = vpop.f32.mrf.mxu0
    %v1135 = vadd.f32 %v987, %v1134
    %v1136 = vpop.f32.mrf.mxu0
    %v1137 = vpop.f32.mrf.mxu0
    %v1138 = vadd.f32 %v992, %v1137
    %v1139 = vpop.f32.mrf.mxu0
    %1140 = vmatprep.mubr.bf16.mxu0 0
    %1141 = vmatmul.mubr.bf16.gmra.mxu0 %v1043
    %v1142 = vpop.f32.mrf.mxu0
    %v1143 = vadd.f32 %v997, %v1142
    %v1144 = vpop.f32.mrf.mxu0
    %v1145 = vpop.f32.mrf.mxu0
    %v1146 = vadd.f32 %v1002, %v1145
    %v1147 = vpop.f32.mrf.mxu0
    %1148 = vdwg.mxu0
    %vm1149 = vcmp.ge.f32.partialorder %v1087, 0.0
    %vm1150 = vcmp.ge.f32.partialorder %v1090, 0.0
    %vm1151 = vcmp.ge.f32.partialorder %v1095, 0.0
    %vm1152 = vcmp.ge.f32.partialorder %v1098, 0.0
    %vm1153 = vcmp.ge.f32.partialorder %v1103, 0.0
    %vm1154 = vcmp.ge.f32.partialorder %v1106, 0.0
    %vm1155 = vcmp.ge.f32.partialorder %v1111, 0.0
    %vm1156 = vcmp.ge.f32.partialorder %v1114, 0.0
    %vm1157 = vcmp.ge.f32.partialorder %v1119, 0.0
    %vm1158 = vcmp.ge.f32.partialorder %v1122, 0.0
    %vm1159 = vcmp.ge.f32.partialorder %v1127, 0.0
    %vm1160 = vcmp.ge.f32.partialorder %v1130, 0.0
    %vm1161 = vcmp.ge.f32.partialorder %v1135, 0.0
    %vm1162 = vcmp.ge.f32.partialorder %v1138, 0.0
    %vm1163 = vcmp.ge.f32.partialorder %v1143, 0.0
    %vm1164 = vcmp.ge.f32.partialorder %v1146, 0.0
    %v1165 = vmul.f32 %v1087, 0.01
    %v1166 = vmul.f32 %v1090, 0.01
    %v1167 = vmul.f32 %v1095, 0.01
    %v1168 = vmul.f32 %v1098, 0.01
    %v1169 = vmul.f32 %v1103, 0.01
    %v1170 = vmul.f32 %v1106, 0.01
    %v1171 = vmul.f32 %v1111, 0.01
    %v1172 = vmul.f32 %v1114, 0.01
    %v1173 = vmul.f32 %v1119, 0.01
    %v1174 = vmul.f32 %v1122, 0.01
    %v1175 = vmul.f32 %v1127, 0.01
    %v1176 = vmul.f32 %v1130, 0.01
    %v1177 = vmul.f32 %v1135, 0.01
    %v1178 = vmul.f32 %v1138, 0.01
    %v1179 = vmul.f32 %v1143, 0.01
    %v1180 = vmul.f32 %v1146, 0.01
    %v1181 = vsel %vm1149, %v1087, %v1165
    %v1182 = vsel %vm1150, %v1090, %v1166
    %v1183 = vsel %vm1151, %v1095, %v1167
    %v1184 = vsel %vm1152, %v1098, %v1168
    %v1185 = vsel %vm1153, %v1103, %v1169
    %v1186 = vsel %vm1154, %v1106, %v1170
    %v1187 = vsel %vm1155, %v1111, %v1171
    %v1188 = vsel %vm1156, %v1114, %v1172
    %v1189 = vsel %vm1157, %v1119, %v1173
    %v1190 = vsel %vm1158, %v1122, %v1174
    %v1191 = vsel %vm1159, %v1127, %v1175
    %v1192 = vsel %vm1160, %v1130, %v1176
    %v1193 = vsel %vm1161, %v1135, %v1177
    %v1194 = vsel %vm1162, %v1138, %v1178
    %v1195 = vsel %vm1163, %v1143, %v1179
    %v1196 = vsel %vm1164, %v1146, %v1180
    %s1197 = scalar_lea.vmem %s3, 4
    %v1198 = vld [vmem:[%s1197] sm:$0x1]
    %v1199 = vpack.c.bf16 %v1182, %v1181
    %v1200 = vpack.c.bf16 %v1184, %v1183
    %v1201 = vpack.c.bf16 %v1186, %v1185
    %v1202 = vpack.c.bf16 %v1188, %v1187
    %v1203 = vpack.c.bf16 %v1190, %v1189
    %v1204 = vpack.c.bf16 %v1192, %v1191
    %v1205 = vpack.c.bf16 %v1194, %v1193
    %v1206 = vpack.c.bf16 %v1196, %v1195
    %s1207 = scalar_lea.vmem %s4, 8
    %v1208 = vld [vmem:[%s1207] sm:$0x3]
    %1210 = vset.pattern.permute.xlu0 0
    %1211 = vperm.xlu0 %1210, %v1208
    %v1212 = vpop.permute.xlu0 %1211
    %1214 = vmatprep.subr.bf16.mxu0 0
    %1215 = vmatpush1.bf16.msra.mxu0 %v1206
    %1216 = vmatprep.subr.bf16.mxu0 0
    %1217 = vmatpush1.bf16.msra.mxu0 %v1205
    %1218 = vmatprep.subr.bf16.mxu0 0
    %1219 = vmatpush1.bf16.msra.mxu0 %v1204
    %1220 = vmatprep.subr.bf16.mxu0 0
    %1221 = vmatpush1.bf16.msra.mxu0 %v1203
    %1222 = vmatprep.subr.bf16.mxu0 0
    %1223 = vmatpush1.bf16.msra.mxu0 %v1202
    %1224 = vmatprep.subr.bf16.mxu0 0
    %1225 = vmatpush1.bf16.msra.mxu0 %v1201
    %1226 = vmatprep.subr.bf16.mxu0 0
    %1227 = vmatpush1.bf16.msra.mxu0 %v1200
    %1228 = vmatprep.subr.bf16.mxu0 0
    %1229 = vmatpush1.bf16.msra.mxu0 %v1199
    %1230 = vmatprep.subr.bf16.mxu0 0
    %1231 = vmatpush2.bf16.msra.mxu0 0
    %1232 = vmatprep.subr.bf16.mxu0 0
    %1233 = vmatpush2.bf16.msra.mxu0 0
    %1234 = vmatprep.subr.bf16.mxu0 0
    %1235 = vmatpush2.bf16.msra.mxu0 0
    %1236 = vmatprep.subr.bf16.mxu0 0
    %1237 = vmatpush2.bf16.msra.mxu0 0
    %1238 = vmatprep.subr.bf16.mxu0 0
    %1239 = vmatpush2.bf16.msra.mxu0 0
    %1240 = vmatprep.subr.bf16.mxu0 0
    %1241 = vmatpush2.bf16.msra.mxu0 0
    %1242 = vmatprep.subr.bf16.mxu0 0
    %1243 = vmatpush2.bf16.msra.mxu0 0
    %1244 = vmatprep.subr.bf16.mxu0 0
    %1245 = vmatpush2.bf16.msra.mxu0 0
    %1246 = vmatprep.mubr.bf16.mxu0 0
    %1247 = vmatmul.mubr.bf16.gmra.mxu0 %v1198
    %v1248 = vpop.f32.mrf.mxu0
    %v1249 = vadd.f32 %v1212, %v1248
    %v1250 = vpop.f32.mrf.mxu0
    %v1251 = vpop.f32.mrf.mxu0
    %v1252 = vpop.f32.mrf.mxu0
    %1253 = vdwg.mxu0
    %v1254 = vtanh.pop %v1249
    %v1256 = vrot.slane %v1249, 1
    %v1258 = vsub.f32 %v25, %v1256
    %v1259 = vsub.f32 0.0, %v1254
    %v1260 = vmul.f32 %v1259, 1.442695
    %v1261 = vpow.pop %v1260
    %v1262 = vmul.f32 %v1258, %v1261
    %v1263 = vsub.f32 %v640, %v1254
    %v1264 = vlaneseq
    %v1265 = vshrl.u32 %v1264, 7
    %v1266 = vsub.s32 0, %v1265
    %v1267 = vrot.slane %v1262, %v1266
    %v1268 = vsel %vm28, %v1267, 1.0
    %v1269 = vpack.c.bf16 %v1268, %v1268
    %s1270 = scalar_lea.vmem %s0, 192
    %v1271 = vld [vmem:[%s1270] sm:$0xf]
    %v1272 = vld [vmem:[%s1270 + $0x4] sm:$0xf]
    %v1273 = vld [vmem:[%s1270 + $0x8] sm:$0xf]
    %v1274 = vld [vmem:[%s1270 + $0xc] sm:$0xf]
    %v1275 = vld [vmem:[%s1270 + $0x10] sm:$0xf]
    %v1276 = vld [vmem:[%s1270 + $0x14] sm:$0xf]
    %v1277 = vld [vmem:[%s1270 + $0x18] sm:$0xf]
    %v1278 = vld [vmem:[%s1270 + $0x1c] sm:$0xf]
    %v1279 = vld [vmem:[%s1270 + $0x20] sm:$0xf]
    %v1280 = vld [vmem:[%s1270 + $0x24] sm:$0xf]
    %v1281 = vld [vmem:[%s1270 + $0x28] sm:$0xf]
    %v1282 = vld [vmem:[%s1270 + $0x2c] sm:$0xf]
    %v1283 = vld [vmem:[%s1270 + $0x30] sm:$0xf]
    %v1284 = vld [vmem:[%s1270 + $0x34] sm:$0xf]
    %v1285 = vld [vmem:[%s1270 + $0x38] sm:$0xf]
    %v1286 = vld [vmem:[%s1270 + $0x3c] sm:$0xf]
    %v1303 = vunpack.c.l.b16 %v1271
    %v1304 = vunpack.c.l.b16 %v1272
    %v1305 = vunpack.c.l.b16 %v1273
    %v1306 = vunpack.c.l.b16 %v1274
    %v1307 = vunpack.c.l.b16 %v1275
    %v1308 = vunpack.c.l.b16 %v1276
    %v1309 = vunpack.c.l.b16 %v1277
    %v1310 = vunpack.c.l.b16 %v1278
    %v1311 = vunpack.c.l.b16 %v1279
    %v1312 = vunpack.c.l.b16 %v1280
    %v1313 = vunpack.c.l.b16 %v1281
    %v1314 = vunpack.c.l.b16 %v1282
    %v1315 = vunpack.c.l.b16 %v1283
    %v1316 = vunpack.c.l.b16 %v1284
    %v1317 = vunpack.c.l.b16 %v1285
    %v1318 = vunpack.c.l.b16 %v1286
    %v1319 = vpack.c.b16 %v1304, %v1303
    %v1320 = vpack.c.b16 %v1306, %v1305
    %v1321 = vpack.c.b16 %v1308, %v1307
    %v1322 = vpack.c.b16 %v1310, %v1309
    %v1323 = vpack.c.b16 %v1312, %v1311
    %v1324 = vpack.c.b16 %v1314, %v1313
    %v1325 = vpack.c.b16 %v1316, %v1315
    %v1326 = vpack.c.b16 %v1318, %v1317
    %v1328 = vsel %vm92, %v1319, 0
    %v1331 = vsel %vm92, %v1320, 0
    %v1334 = vsel %vm92, %v1321, 0
    %v1337 = vsel %vm92, %v1322, 0
    %v1340 = vsel %vm92, %v1323, 0
    %v1343 = vsel %vm92, %v1324, 0
    %v1346 = vsel %vm92, %v1325, 0
    %v1349 = vsel %vm92, %v1326, 0
    %v1352 = vsel %vm117, %v1269, 0
    %1354 = vmatprep.subr.bf16.mxu0 0
    %1355 = vmatpush1.bf16.msra.mxu0 0
    %1356 = vmatprep.subr.bf16.mxu0 0
    %1357 = vmatpush1.bf16.msra.mxu0 0
    %1358 = vmatprep.subr.bf16.mxu0 0
    %1359 = vmatpush1.bf16.msra.mxu0 0
    %1360 = vmatprep.subr.bf16.mxu0 0
    %1361 = vmatpush1.bf16.msra.mxu0 0
    %1362 = vmatprep.subr.bf16.mxu0 0
    %1363 = vmatpush1.bf16.msra.mxu0 0
    %1364 = vmatprep.subr.bf16.mxu0 0
    %1365 = vmatpush1.bf16.msra.mxu0 0
    %1366 = vmatprep.subr.bf16.mxu0 0
    %1367 = vmatpush1.bf16.msra.mxu0 0
    %1368 = vmatprep.subr.bf16.mxu0 0
    %1369 = vmatpush1.bf16.msra.mxu0 %v1352
    %1370 = vmatprep.subr.bf16.mxu0 0
    %1371 = vmatpush2.bf16.msra.mxu0 0
    %1372 = vmatprep.subr.bf16.mxu0 0
    %1373 = vmatpush2.bf16.msra.mxu0 0
    %1374 = vmatprep.subr.bf16.mxu0 0
    %1375 = vmatpush2.bf16.msra.mxu0 0
    %1376 = vmatprep.subr.bf16.mxu0 0
    %1377 = vmatpush2.bf16.msra.mxu0 0
    %1378 = vmatprep.subr.bf16.mxu0 0
    %1379 = vmatpush2.bf16.msra.mxu0 0
    %1380 = vmatprep.subr.bf16.mxu0 0
    %1381 = vmatpush2.bf16.msra.mxu0 0
    %1382 = vmatprep.subr.bf16.mxu0 0
    %1383 = vmatpush2.bf16.msra.mxu0 0
    %1384 = vmatprep.subr.bf16.mxu0 0
    %1385 = vmatpush2.bf16.msra.mxu0 0
    %1386 = vmatprep.mubr.bf16.mxu0 0
    %1387 = vmatmul.mubr.bf16.gmra.mxu0 %v1328
    %v1388 = vpop.f32.mrf.mxu0
    %v1389 = vadd.f32 0.0, %v1388
    %v1390 = vpop.f32.mrf.mxu0
    %v1391 = vpop.f32.mrf.mxu0
    %v1392 = vadd.f32 0.0, %v1391
    %v1393 = vpop.f32.mrf.mxu0
    %1394 = vmatprep.mubr.bf16.mxu0 0
    %1395 = vmatmul.mubr.bf16.gmra.mxu0 %v1331
    %v1396 = vpop.f32.mrf.mxu0
    %v1397 = vadd.f32 0.0, %v1396
    %v1398 = vpop.f32.mrf.mxu0
    %v1399 = vpop.f32.mrf.mxu0
    %v1400 = vadd.f32 0.0, %v1399
    %v1401 = vpop.f32.mrf.mxu0
    %1402 = vmatprep.mubr.bf16.mxu0 0
    %1403 = vmatmul.mubr.bf16.gmra.mxu0 %v1334
    %v1404 = vpop.f32.mrf.mxu0
    %v1405 = vadd.f32 0.0, %v1404
    %v1406 = vpop.f32.mrf.mxu0
    %v1407 = vpop.f32.mrf.mxu0
    %v1408 = vadd.f32 0.0, %v1407
    %v1409 = vpop.f32.mrf.mxu0
    %1410 = vmatprep.mubr.bf16.mxu0 0
    %1411 = vmatmul.mubr.bf16.gmra.mxu0 %v1337
    %v1412 = vpop.f32.mrf.mxu0
    %v1413 = vadd.f32 0.0, %v1412
    %v1414 = vpop.f32.mrf.mxu0
    %v1415 = vpop.f32.mrf.mxu0
    %v1416 = vadd.f32 0.0, %v1415
    %v1417 = vpop.f32.mrf.mxu0
    %1418 = vmatprep.mubr.bf16.mxu0 0
    %1419 = vmatmul.mubr.bf16.gmra.mxu0 %v1340
    %v1420 = vpop.f32.mrf.mxu0
    %v1421 = vadd.f32 0.0, %v1420
    %v1422 = vpop.f32.mrf.mxu0
    %v1423 = vpop.f32.mrf.mxu0
    %v1424 = vadd.f32 0.0, %v1423
    %v1425 = vpop.f32.mrf.mxu0
    %1426 = vmatprep.mubr.bf16.mxu0 0
    %1427 = vmatmul.mubr.bf16.gmra.mxu0 %v1343
    %v1428 = vpop.f32.mrf.mxu0
    %v1429 = vadd.f32 0.0, %v1428
    %v1430 = vpop.f32.mrf.mxu0
    %v1431 = vpop.f32.mrf.mxu0
    %v1432 = vadd.f32 0.0, %v1431
    %v1433 = vpop.f32.mrf.mxu0
    %1434 = vmatprep.mubr.bf16.mxu0 0
    %1435 = vmatmul.mubr.bf16.gmra.mxu0 %v1346
    %v1436 = vpop.f32.mrf.mxu0
    %v1437 = vadd.f32 0.0, %v1436
    %v1438 = vpop.f32.mrf.mxu0
    %v1439 = vpop.f32.mrf.mxu0
    %v1440 = vadd.f32 0.0, %v1439
    %v1441 = vpop.f32.mrf.mxu0
    %1442 = vmatprep.mubr.bf16.mxu0 0
    %1443 = vmatmul.mubr.bf16.gmra.mxu0 %v1349
    %v1444 = vpop.f32.mrf.mxu0
    %v1445 = vadd.f32 0.0, %v1444
    %v1446 = vpop.f32.mrf.mxu0
    %v1447 = vpop.f32.mrf.mxu0
    %v1448 = vadd.f32 0.0, %v1447
    %v1449 = vpop.f32.mrf.mxu0
    %1450 = vdwg.mxu0
    %vm1451 = vcmp.ge.f32.partialorder %v1389, 0.0
    %vm1452 = vcmp.ge.f32.partialorder %v1392, 0.0
    %vm1453 = vcmp.ge.f32.partialorder %v1397, 0.0
    %vm1454 = vcmp.ge.f32.partialorder %v1400, 0.0
    %vm1455 = vcmp.ge.f32.partialorder %v1405, 0.0
    %vm1456 = vcmp.ge.f32.partialorder %v1408, 0.0
    %vm1457 = vcmp.ge.f32.partialorder %v1413, 0.0
    %vm1458 = vcmp.ge.f32.partialorder %v1416, 0.0
    %vm1459 = vcmp.ge.f32.partialorder %v1421, 0.0
    %vm1460 = vcmp.ge.f32.partialorder %v1424, 0.0
    %vm1461 = vcmp.ge.f32.partialorder %v1429, 0.0
    %vm1462 = vcmp.ge.f32.partialorder %v1432, 0.0
    %vm1463 = vcmp.ge.f32.partialorder %v1437, 0.0
    %vm1464 = vcmp.ge.f32.partialorder %v1440, 0.0
    %vm1465 = vcmp.ge.f32.partialorder %v1445, 0.0
    %vm1466 = vcmp.ge.f32.partialorder %v1448, 0.0
    %v1467 = vmul.f32 %v1389, 0.01
    %v1468 = vmul.f32 %v1392, 0.01
    %v1469 = vmul.f32 %v1397, 0.01
    %v1470 = vmul.f32 %v1400, 0.01
    %v1471 = vmul.f32 %v1405, 0.01
    %v1472 = vmul.f32 %v1408, 0.01
    %v1473 = vmul.f32 %v1413, 0.01
    %v1474 = vmul.f32 %v1416, 0.01
    %v1475 = vmul.f32 %v1421, 0.01
    %v1476 = vmul.f32 %v1424, 0.01
    %v1477 = vmul.f32 %v1429, 0.01
    %v1478 = vmul.f32 %v1432, 0.01
    %v1479 = vmul.f32 %v1437, 0.01
    %v1480 = vmul.f32 %v1440, 0.01
    %v1481 = vmul.f32 %v1445, 0.01
    %v1482 = vmul.f32 %v1448, 0.01
    %v1483 = vsel %vm1451, %v1389, %v1467
    %v1484 = vsel %vm1452, %v1392, %v1468
    %v1485 = vsel %vm1453, %v1397, %v1469
    %v1486 = vsel %vm1454, %v1400, %v1470
    %v1487 = vsel %vm1455, %v1405, %v1471
    %v1488 = vsel %vm1456, %v1408, %v1472
    %v1489 = vsel %vm1457, %v1413, %v1473
    %v1490 = vsel %vm1458, %v1416, %v1474
    %v1491 = vsel %vm1459, %v1421, %v1475
    %v1492 = vsel %vm1460, %v1424, %v1476
    %v1493 = vsel %vm1461, %v1429, %v1477
    %v1494 = vsel %vm1462, %v1432, %v1478
    %v1495 = vsel %vm1463, %v1437, %v1479
    %v1496 = vsel %vm1464, %v1440, %v1480
    %v1497 = vsel %vm1465, %v1445, %v1481
    %v1498 = vsel %vm1466, %v1448, %v1482
    %s1499 = scalar_lea.vmem %s1, 192
    %v1500 = vld [vmem:[%s1499] sm:$0xf]
    %v1501 = vld [vmem:[%s1499 + $0x4] sm:$0xf]
    %v1502 = vld [vmem:[%s1499 + $0x8] sm:$0xf]
    %v1503 = vld [vmem:[%s1499 + $0xc] sm:$0xf]
    %v1504 = vld [vmem:[%s1499 + $0x10] sm:$0xf]
    %v1505 = vld [vmem:[%s1499 + $0x14] sm:$0xf]
    %v1506 = vld [vmem:[%s1499 + $0x18] sm:$0xf]
    %v1507 = vld [vmem:[%s1499 + $0x1c] sm:$0xf]
    %v1508 = vld [vmem:[%s1499 + $0x20] sm:$0xf]
    %v1509 = vld [vmem:[%s1499 + $0x24] sm:$0xf]
    %v1510 = vld [vmem:[%s1499 + $0x28] sm:$0xf]
    %v1511 = vld [vmem:[%s1499 + $0x2c] sm:$0xf]
    %v1512 = vld [vmem:[%s1499 + $0x30] sm:$0xf]
    %v1513 = vld [vmem:[%s1499 + $0x34] sm:$0xf]
    %v1514 = vld [vmem:[%s1499 + $0x38] sm:$0xf]
    %v1515 = vld [vmem:[%s1499 + $0x3c] sm:$0xf]
    %v1516 = vpack.c.bf16 %v1484, %v1483
    %v1517 = vpack.c.bf16 %v1486, %v1485
    %v1518 = vpack.c.bf16 %v1488, %v1487
    %v1519 = vpack.c.bf16 %v1490, %v1489
    %v1520 = vpack.c.bf16 %v1492, %v1491
    %v1521 = vpack.c.bf16 %v1494, %v1493
    %v1522 = vpack.c.bf16 %v1496, %v1495
    %v1523 = vpack.c.bf16 %v1498, %v1497
    %s1524 = scalar_lea.vmem %s2, 384
    %v1525 = vld [vmem:[%s1524] sm:$0xff]
    %v1526 = vld [vmem:[%s1524 + $0x8] sm:$0xff]
    %v1527 = vld [vmem:[%s1524 + $0x10] sm:$0xff]
    %v1528 = vld [vmem:[%s1524 + $0x18] sm:$0xff]
    %v1529 = vld [vmem:[%s1524 + $0x20] sm:$0xff]
    %v1530 = vld [vmem:[%s1524 + $0x28] sm:$0xff]
    %v1531 = vld [vmem:[%s1524 + $0x30] sm:$0xff]
    %v1532 = vld [vmem:[%s1524 + $0x38] sm:$0xff]
    %v1533 = vld [vmem:[%s1524 + $0x40] sm:$0xff]
    %v1534 = vld [vmem:[%s1524 + $0x48] sm:$0xff]
    %v1535 = vld [vmem:[%s1524 + $0x50] sm:$0xff]
    %v1536 = vld [vmem:[%s1524 + $0x58] sm:$0xff]
    %v1537 = vld [vmem:[%s1524 + $0x60] sm:$0xff]
    %v1538 = vld [vmem:[%s1524 + $0x68] sm:$0xff]
    %v1539 = vld [vmem:[%s1524 + $0x70] sm:$0xff]
    %v1540 = vld [vmem:[%s1524 + $0x78] sm:$0xff]
    %1542 = vset.pattern.permute.xlu0 0
    %1543 = vperm.xlu0 %1542, %v1525
    %v1544 = vpop.permute.xlu0 %1543
    %1547 = vset.pattern.permute.xlu0 0
    %1548 = vperm.xlu0 %1547, %v1526
    %v1549 = vpop.permute.xlu0 %1548
    %1552 = vset.pattern.permute.xlu0 0
    %1553 = vperm.xlu0 %1552, %v1527
    %v1554 = vpop.permute.xlu0 %1553
    %1557 = vset.pattern.permute.xlu0 0
    %1558 = vperm.xlu0 %1557, %v1528
    %v1559 = vpop.permute.xlu0 %1558
    %1562 = vset.pattern.permute.xlu0 0
    %1563 = vperm.xlu0 %1562, %v1529
    %v1564 = vpop.permute.xlu0 %1563
    %1567 = vset.pattern.permute.xlu0 0
    %1568 = vperm.xlu0 %1567, %v1530
    %v1569 = vpop.permute.xlu0 %1568
    %1572 = vset.pattern.permute.xlu0 0
    %1573 = vperm.xlu0 %1572, %v1531
    %v1574 = vpop.permute.xlu0 %1573
    %1577 = vset.pattern.permute.xlu0 0
    %1578 = vperm.xlu0 %1577, %v1532
    %v1579 = vpop.permute.xlu0 %1578
    %1582 = vset.pattern.permute.xlu0 0
    %1583 = vperm.xlu0 %1582, %v1533
    %v1584 = vpop.permute.xlu0 %1583
    %1587 = vset.pattern.permute.xlu0 0
    %1588 = vperm.xlu0 %1587, %v1534
    %v1589 = vpop.permute.xlu0 %1588
    %1592 = vset.pattern.permute.xlu0 0
    %1593 = vperm.xlu0 %1592, %v1535
    %v1594 = vpop.permute.xlu0 %1593
    %1597 = vset.pattern.permute.xlu0 0
    %1598 = vperm.xlu0 %1597, %v1536
    %v1599 = vpop.permute.xlu0 %1598
    %1602 = vset.pattern.permute.xlu0 0
    %1603 = vperm.xlu0 %1602, %v1537
    %v1604 = vpop.permute.xlu0 %1603
    %1607 = vset.pattern.permute.xlu0 0
    %1608 = vperm.xlu0 %1607, %v1538
    %v1609 = vpop.permute.xlu0 %1608
    %1612 = vset.pattern.permute.xlu0 0
    %1613 = vperm.xlu0 %1612, %v1539
    %v1614 = vpop.permute.xlu0 %1613
    %1617 = vset.pattern.permute.xlu0 0
    %1618 = vperm.xlu0 %1617, %v1540
    %v1619 = vpop.permute.xlu0 %1618
    %v1637 = vunpack.c.l.b16 %v1500
    %v1638 = vunpack.c.l.b16 %v1501
    %v1639 = vunpack.c.l.b16 %v1502
    %v1640 = vunpack.c.l.b16 %v1503
    %v1641 = vunpack.c.l.b16 %v1504
    %v1642 = vunpack.c.l.b16 %v1505
    %v1643 = vunpack.c.l.b16 %v1506
    %v1644 = vunpack.c.l.b16 %v1507
    %v1645 = vunpack.c.l.b16 %v1508
    %v1646 = vunpack.c.l.b16 %v1509
    %v1647 = vunpack.c.l.b16 %v1510
    %v1648 = vunpack.c.l.b16 %v1511
    %v1649 = vunpack.c.l.b16 %v1512
    %v1650 = vunpack.c.l.b16 %v1513
    %v1651 = vunpack.c.l.b16 %v1514
    %v1652 = vunpack.c.l.b16 %v1515
    %v1653 = vpack.c.b16 %v1638, %v1637
    %v1654 = vpack.c.b16 %v1640, %v1639
    %v1655 = vpack.c.b16 %v1642, %v1641
    %v1656 = vpack.c.b16 %v1644, %v1643
    %v1657 = vpack.c.b16 %v1646, %v1645
    %v1658 = vpack.c.b16 %v1648, %v1647
    %v1659 = vpack.c.b16 %v1650, %v1649
    %v1660 = vpack.c.b16 %v1652, %v1651
    %1669 = vmatprep.subr.bf16.mxu0 0
    %1670 = vmatpush1.bf16.msra.mxu0 %v1523
    %1671 = vmatprep.subr.bf16.mxu0 0
    %1672 = vmatpush1.bf16.msra.mxu0 %v1522
    %1673 = vmatprep.subr.bf16.mxu0 0
    %1674 = vmatpush1.bf16.msra.mxu0 %v1521
    %1675 = vmatprep.subr.bf16.mxu0 0
    %1676 = vmatpush1.bf16.msra.mxu0 %v1520
    %1677 = vmatprep.subr.bf16.mxu0 0
    %1678 = vmatpush1.bf16.msra.mxu0 %v1519
    %1679 = vmatprep.subr.bf16.mxu0 0
    %1680 = vmatpush1.bf16.msra.mxu0 %v1518
    %1681 = vmatprep.subr.bf16.mxu0 0
    %1682 = vmatpush1.bf16.msra.mxu0 %v1517
    %1683 = vmatprep.subr.bf16.mxu0 0
    %1684 = vmatpush1.bf16.msra.mxu0 %v1516
    %1685 = vmatprep.subr.bf16.mxu0 0
    %1686 = vmatpush2.bf16.msra.mxu0 0
    %1687 = vmatprep.subr.bf16.mxu0 0
    %1688 = vmatpush2.bf16.msra.mxu0 0
    %1689 = vmatprep.subr.bf16.mxu0 0
    %1690 = vmatpush2.bf16.msra.mxu0 0
    %1691 = vmatprep.subr.bf16.mxu0 0
    %1692 = vmatpush2.bf16.msra.mxu0 0
    %1693 = vmatprep.subr.bf16.mxu0 0
    %1694 = vmatpush2.bf16.msra.mxu0 0
    %1695 = vmatprep.subr.bf16.mxu0 0
    %1696 = vmatpush2.bf16.msra.mxu0 0
    %1697 = vmatprep.subr.bf16.mxu0 0
    %1698 = vmatpush2.bf16.msra.mxu0 0
    %1699 = vmatprep.subr.bf16.mxu0 0
    %1700 = vmatpush2.bf16.msra.mxu0 0
    %1701 = vmatprep.mubr.bf16.mxu0 0
    %1702 = vmatmul.mubr.bf16.gmra.mxu0 %v1653
    %v1703 = vpop.f32.mrf.mxu0
    %v1704 = vadd.f32 %v1544, %v1703
    %v1705 = vpop.f32.mrf.mxu0
    %v1706 = vpop.f32.mrf.mxu0
    %v1707 = vadd.f32 %v1549, %v1706
    %v1708 = vpop.f32.mrf.mxu0
    %1709 = vmatprep.mubr.bf16.mxu0 0
    %1710 = vmatmul.mubr.bf16.gmra.mxu0 %v1654
    %v1711 = vpop.f32.mrf.mxu0
    %v1712 = vadd.f32 %v1554, %v1711
    %v1713 = vpop.f32.mrf.mxu0
    %v1714 = vpop.f32.mrf.mxu0
    %v1715 = vadd.f32 %v1559, %v1714
    %v1716 = vpop.f32.mrf.mxu0
    %1717 = vmatprep.mubr.bf16.mxu0 0
    %1718 = vmatmul.mubr.bf16.gmra.mxu0 %v1655
    %v1719 = vpop.f32.mrf.mxu0
    %v1720 = vadd.f32 %v1564, %v1719
    %v1721 = vpop.f32.mrf.mxu0
    %v1722 = vpop.f32.mrf.mxu0
    %v1723 = vadd.f32 %v1569, %v1722
    %v1724 = vpop.f32.mrf.mxu0
    %1725 = vmatprep.mubr.bf16.mxu0 0
    %1726 = vmatmul.mubr.bf16.gmra.mxu0 %v1656
    %v1727 = vpop.f32.mrf.mxu0
    %v1728 = vadd.f32 %v1574, %v1727
    %v1729 = vpop.f32.mrf.mxu0
    %v1730 = vpop.f32.mrf.mxu0
    %v1731 = vadd.f32 %v1579, %v1730
    %v1732 = vpop.f32.mrf.mxu0
    %1733 = vmatprep.mubr.bf16.mxu0 0
    %1734 = vmatmul.mubr.bf16.gmra.mxu0 %v1657
    %v1735 = vpop.f32.mrf.mxu0
    %v1736 = vadd.f32 %v1584, %v1735
    %v1737 = vpop.f32.mrf.mxu0
    %v1738 = vpop.f32.mrf.mxu0
    %v1739 = vadd.f32 %v1589, %v1738
    %v1740 = vpop.f32.mrf.mxu0
    %1741 = vmatprep.mubr.bf16.mxu0 0
    %1742 = vmatmul.mubr.bf16.gmra.mxu0 %v1658
    %v1743 = vpop.f32.mrf.mxu0
    %v1744 = vadd.f32 %v1594, %v1743
    %v1745 = vpop.f32.mrf.mxu0
    %v1746 = vpop.f32.mrf.mxu0
    %v1747 = vadd.f32 %v1599, %v1746
    %v1748 = vpop.f32.mrf.mxu0
    %1749 = vmatprep.mubr.bf16.mxu0 0
    %1750 = vmatmul.mubr.bf16.gmra.mxu0 %v1659
    %v1751 = vpop.f32.mrf.mxu0
    %v1752 = vadd.f32 %v1604, %v1751
    %v1753 = vpop.f32.mrf.mxu0
    %v1754 = vpop.f32.mrf.mxu0
    %v1755 = vadd.f32 %v1609, %v1754
    %v1756 = vpop.f32.mrf.mxu0
    %1757 = vmatprep.mubr.bf16.mxu0 0
    %1758 = vmatmul.mubr.bf16.gmra.mxu0 %v1660
    %v1759 = vpop.f32.mrf.mxu0
    %v1760 = vadd.f32 %v1614, %v1759
    %v1761 = vpop.f32.mrf.mxu0
    %v1762 = vpop.f32.mrf.mxu0
    %v1763 = vadd.f32 %v1619, %v1762
    %v1764 = vpop.f32.mrf.mxu0
    %1765 = vdwg.mxu0
    %vm1766 = vcmp.ge.f32.partialorder %v1704, 0.0
    %vm1767 = vcmp.ge.f32.partialorder %v1707, 0.0
    %vm1768 = vcmp.ge.f32.partialorder %v1712, 0.0
    %vm1769 = vcmp.ge.f32.partialorder %v1715, 0.0
    %vm1770 = vcmp.ge.f32.partialorder %v1720, 0.0
    %vm1771 = vcmp.ge.f32.partialorder %v1723, 0.0
    %vm1772 = vcmp.ge.f32.partialorder %v1728, 0.0
    %vm1773 = vcmp.ge.f32.partialorder %v1731, 0.0
    %vm1774 = vcmp.ge.f32.partialorder %v1736, 0.0
    %vm1775 = vcmp.ge.f32.partialorder %v1739, 0.0
    %vm1776 = vcmp.ge.f32.partialorder %v1744, 0.0
    %vm1777 = vcmp.ge.f32.partialorder %v1747, 0.0
    %vm1778 = vcmp.ge.f32.partialorder %v1752, 0.0
    %vm1779 = vcmp.ge.f32.partialorder %v1755, 0.0
    %vm1780 = vcmp.ge.f32.partialorder %v1760, 0.0
    %vm1781 = vcmp.ge.f32.partialorder %v1763, 0.0
    %v1782 = vmul.f32 %v1704, 0.01
    %v1783 = vmul.f32 %v1707, 0.01
    %v1784 = vmul.f32 %v1712, 0.01
    %v1785 = vmul.f32 %v1715, 0.01
    %v1786 = vmul.f32 %v1720, 0.01
    %v1787 = vmul.f32 %v1723, 0.01
    %v1788 = vmul.f32 %v1728, 0.01
    %v1789 = vmul.f32 %v1731, 0.01
    %v1790 = vmul.f32 %v1736, 0.01
    %v1791 = vmul.f32 %v1739, 0.01
    %v1792 = vmul.f32 %v1744, 0.01
    %v1793 = vmul.f32 %v1747, 0.01
    %v1794 = vmul.f32 %v1752, 0.01
    %v1795 = vmul.f32 %v1755, 0.01
    %v1796 = vmul.f32 %v1760, 0.01
    %v1797 = vmul.f32 %v1763, 0.01
    %v1798 = vsel %vm1766, %v1704, %v1782
    %v1799 = vsel %vm1767, %v1707, %v1783
    %v1800 = vsel %vm1768, %v1712, %v1784
    %v1801 = vsel %vm1769, %v1715, %v1785
    %v1802 = vsel %vm1770, %v1720, %v1786
    %v1803 = vsel %vm1771, %v1723, %v1787
    %v1804 = vsel %vm1772, %v1728, %v1788
    %v1805 = vsel %vm1773, %v1731, %v1789
    %v1806 = vsel %vm1774, %v1736, %v1790
    %v1807 = vsel %vm1775, %v1739, %v1791
    %v1808 = vsel %vm1776, %v1744, %v1792
    %v1809 = vsel %vm1777, %v1747, %v1793
    %v1810 = vsel %vm1778, %v1752, %v1794
    %v1811 = vsel %vm1779, %v1755, %v1795
    %v1812 = vsel %vm1780, %v1760, %v1796
    %v1813 = vsel %vm1781, %v1763, %v1797
    %s1814 = scalar_lea.vmem %s3, 3
    %v1815 = vld [vmem:[%s1814] sm:$0x1]
    %v1816 = vpack.c.bf16 %v1799, %v1798
    %v1817 = vpack.c.bf16 %v1801, %v1800
    %v1818 = vpack.c.bf16 %v1803, %v1802
    %v1819 = vpack.c.bf16 %v1805, %v1804
    %v1820 = vpack.c.bf16 %v1807, %v1806
    %v1821 = vpack.c.bf16 %v1809, %v1808
    %v1822 = vpack.c.bf16 %v1811, %v1810
    %v1823 = vpack.c.bf16 %v1813, %v1812
    %s1824 = scalar_lea.vmem %s4, 6
    %v1825 = vld [vmem:[%s1824] sm:$0x3]
    %1827 = vset.pattern.permute.xlu0 0
    %1828 = vperm.xlu0 %1827, %v1825
    %v1829 = vpop.permute.xlu0 %1828
    %1831 = vmatprep.subr.bf16.mxu0 0
    %1832 = vmatpush1.bf16.msra.mxu0 %v1823
    %1833 = vmatprep.subr.bf16.mxu0 0
    %1834 = vmatpush1.bf16.msra.mxu0 %v1822
    %1835 = vmatprep.subr.bf16.mxu0 0
    %1836 = vmatpush1.bf16.msra.mxu0 %v1821
    %1837 = vmatprep.subr.bf16.mxu0 0
    %1838 = vmatpush1.bf16.msra.mxu0 %v1820
    %1839 = vmatprep.subr.bf16.mxu0 0
    %1840 = vmatpush1.bf16.msra.mxu0 %v1819
    %1841 = vmatprep.subr.bf16.mxu0 0
    %1842 = vmatpush1.bf16.msra.mxu0 %v1818
    %1843 = vmatprep.subr.bf16.mxu0 0
    %1844 = vmatpush1.bf16.msra.mxu0 %v1817
    %1845 = vmatprep.subr.bf16.mxu0 0
    %1846 = vmatpush1.bf16.msra.mxu0 %v1816
    %1847 = vmatprep.subr.bf16.mxu0 0
    %1848 = vmatpush2.bf16.msra.mxu0 0
    %1849 = vmatprep.subr.bf16.mxu0 0
    %1850 = vmatpush2.bf16.msra.mxu0 0
    %1851 = vmatprep.subr.bf16.mxu0 0
    %1852 = vmatpush2.bf16.msra.mxu0 0
    %1853 = vmatprep.subr.bf16.mxu0 0
    %1854 = vmatpush2.bf16.msra.mxu0 0
    %1855 = vmatprep.subr.bf16.mxu0 0
    %1856 = vmatpush2.bf16.msra.mxu0 0
    %1857 = vmatprep.subr.bf16.mxu0 0
    %1858 = vmatpush2.bf16.msra.mxu0 0
    %1859 = vmatprep.subr.bf16.mxu0 0
    %1860 = vmatpush2.bf16.msra.mxu0 0
    %1861 = vmatprep.subr.bf16.mxu0 0
    %1862 = vmatpush2.bf16.msra.mxu0 0
    %1863 = vmatprep.mubr.bf16.mxu0 0
    %1864 = vmatmul.mubr.bf16.gmra.mxu0 %v1815
    %v1865 = vpop.f32.mrf.mxu0
    %v1866 = vadd.f32 %v1829, %v1865
    %v1867 = vpop.f32.mrf.mxu0
    %v1868 = vpop.f32.mrf.mxu0
    %v1869 = vpop.f32.mrf.mxu0
    %1870 = vdwg.mxu0
    %v1871 = vtanh.pop %v1866
    %v1872 = vsub.f32 %v646, %v1866
    %v1873 = vsub.f32 0.0, %v1871
    %v1874 = vmul.f32 %v1873, 1.442695
    %v1875 = vpow.pop %v1874
    %v1877 = vrot.slane %v1875, 7
    %v1879 = vmul.f32 %v1872, %v1877
    %v1880 = vsub.f32 %v1263, %v1871
    %v1881 = vlaneseq
    %v1882 = vshrl.u32 %v1881, 7
    %v1883 = vsub.s32 1, %v1882
    %v1884 = vrot.slane %v1879, %v1883
    %v1885 = vsel %vm28, %v1884, 1.0
    %v1886 = vpack.c.bf16 %v1885, %v1885
    %s1887 = scalar_lea.vmem %s0, 128
    %v1888 = vld [vmem:[%s1887] sm:$0xf]
    %v1889 = vld [vmem:[%s1887 + $0x4] sm:$0xf]
    %v1890 = vld [vmem:[%s1887 + $0x8] sm:$0xf]
    %v1891 = vld [vmem:[%s1887 + $0xc] sm:$0xf]
    %v1892 = vld [vmem:[%s1887 + $0x10] sm:$0xf]
    %v1893 = vld [vmem:[%s1887 + $0x14] sm:$0xf]
    %v1894 = vld [vmem:[%s1887 + $0x18] sm:$0xf]
    %v1895 = vld [vmem:[%s1887 + $0x1c] sm:$0xf]
    %v1896 = vld [vmem:[%s1887 + $0x20] sm:$0xf]
    %v1897 = vld [vmem:[%s1887 + $0x24] sm:$0xf]
    %v1898 = vld [vmem:[%s1887 + $0x28] sm:$0xf]
    %v1899 = vld [vmem:[%s1887 + $0x2c] sm:$0xf]
    %v1900 = vld [vmem:[%s1887 + $0x30] sm:$0xf]
    %v1901 = vld [vmem:[%s1887 + $0x34] sm:$0xf]
    %v1902 = vld [vmem:[%s1887 + $0x38] sm:$0xf]
    %v1903 = vld [vmem:[%s1887 + $0x3c] sm:$0xf]
    %v1920 = vunpack.c.l.b16 %v1888
    %v1921 = vunpack.c.l.b16 %v1889
    %v1922 = vunpack.c.l.b16 %v1890
    %v1923 = vunpack.c.l.b16 %v1891
    %v1924 = vunpack.c.l.b16 %v1892
    %v1925 = vunpack.c.l.b16 %v1893
    %v1926 = vunpack.c.l.b16 %v1894
    %v1927 = vunpack.c.l.b16 %v1895
    %v1928 = vunpack.c.l.b16 %v1896
    %v1929 = vunpack.c.l.b16 %v1897
    %v1930 = vunpack.c.l.b16 %v1898
    %v1931 = vunpack.c.l.b16 %v1899
    %v1932 = vunpack.c.l.b16 %v1900
    %v1933 = vunpack.c.l.b16 %v1901
    %v1934 = vunpack.c.l.b16 %v1902
    %v1935 = vunpack.c.l.b16 %v1903
    %v1936 = vpack.c.b16 %v1921, %v1920
    %v1937 = vpack.c.b16 %v1923, %v1922
    %v1938 = vpack.c.b16 %v1925, %v1924
    %v1939 = vpack.c.b16 %v1927, %v1926
    %v1940 = vpack.c.b16 %v1929, %v1928
    %v1941 = vpack.c.b16 %v1931, %v1930
    %v1942 = vpack.c.b16 %v1933, %v1932
    %v1943 = vpack.c.b16 %v1935, %v1934
    %v1945 = vsel %vm92, %v1936, 0
    %v1948 = vsel %vm92, %v1937, 0
    %v1951 = vsel %vm92, %v1938, 0
    %v1954 = vsel %vm92, %v1939, 0
    %v1957 = vsel %vm92, %v1940, 0
    %v1960 = vsel %vm92, %v1941, 0
    %v1963 = vsel %vm92, %v1942, 0
    %v1966 = vsel %vm92, %v1943, 0
    %v1969 = vsel %vm117, %v1886, 0
    %1971 = vmatprep.subr.bf16.mxu0 0
    %1972 = vmatpush1.bf16.msra.mxu0 0
    %1973 = vmatprep.subr.bf16.mxu0 0
    %1974 = vmatpush1.bf16.msra.mxu0 0
    %1975 = vmatprep.subr.bf16.mxu0 0
    %1976 = vmatpush1.bf16.msra.mxu0 0
    %1977 = vmatprep.subr.bf16.mxu0 0
    %1978 = vmatpush1.bf16.msra.mxu0 0
    %1979 = vmatprep.subr.bf16.mxu0 0
    %1980 = vmatpush1.bf16.msra.mxu0 0
    %1981 = vmatprep.subr.bf16.mxu0 0
    %1982 = vmatpush1.bf16.msra.mxu0 0
    %1983 = vmatprep.subr.bf16.mxu0 0
    %1984 = vmatpush1.bf16.msra.mxu0 0
    %1985 = vmatprep.subr.bf16.mxu0 0
    %1986 = vmatpush1.bf16.msra.mxu0 %v1969
    %1987 = vmatprep.subr.bf16.mxu0 0
    %1988 = vmatpush2.bf16.msra.mxu0 0
    %1989 = vmatprep.subr.bf16.mxu0 0
    %1990 = vmatpush2.bf16.msra.mxu0 0
    %1991 = vmatprep.subr.bf16.mxu0 0
    %1992 = vmatpush2.bf16.msra.mxu0 0
    %1993 = vmatprep.subr.bf16.mxu0 0
    %1994 = vmatpush2.bf16.msra.mxu0 0
    %1995 = vmatprep.subr.bf16.mxu0 0
    %1996 = vmatpush2.bf16.msra.mxu0 0
    %1997 = vmatprep.subr.bf16.mxu0 0
    %1998 = vmatpush2.bf16.msra.mxu0 0
    %1999 = vmatprep.subr.bf16.mxu0 0
    %2000 = vmatpush2.bf16.msra.mxu0 0
    %2001 = vmatprep.subr.bf16.mxu0 0
    %2002 = vmatpush2.bf16.msra.mxu0 0
    %2003 = vmatprep.mubr.bf16.mxu0 0
    %2004 = vmatmul.mubr.bf16.gmra.mxu0 %v1945
    %v2005 = vpop.f32.mrf.mxu0
    %v2006 = vadd.f32 0.0, %v2005
    %v2007 = vpop.f32.mrf.mxu0
    %v2008 = vpop.f32.mrf.mxu0
    %v2009 = vadd.f32 0.0, %v2008
    %v2010 = vpop.f32.mrf.mxu0
    %2011 = vmatprep.mubr.bf16.mxu0 0
    %2012 = vmatmul.mubr.bf16.gmra.mxu0 %v1948
    %v2013 = vpop.f32.mrf.mxu0
    %v2014 = vadd.f32 0.0, %v2013
    %v2015 = vpop.f32.mrf.mxu0
    %v2016 = vpop.f32.mrf.mxu0
    %v2017 = vadd.f32 0.0, %v2016
    %v2018 = vpop.f32.mrf.mxu0
    %2019 = vmatprep.mubr.bf16.mxu0 0
    %2020 = vmatmul.mubr.bf16.gmra.mxu0 %v1951
    %v2021 = vpop.f32.mrf.mxu0
    %v2022 = vadd.f32 0.0, %v2021
    %v2023 = vpop.f32.mrf.mxu0
    %v2024 = vpop.f32.mrf.mxu0
    %v2025 = vadd.f32 0.0, %v2024
    %v2026 = vpop.f32.mrf.mxu0
    %2027 = vmatprep.mubr.bf16.mxu0 0
    %2028 = vmatmul.mubr.bf16.gmra.mxu0 %v1954
    %v2029 = vpop.f32.mrf.mxu0
    %v2030 = vadd.f32 0.0, %v2029
    %v2031 = vpop.f32.mrf.mxu0
    %v2032 = vpop.f32.mrf.mxu0
    %v2033 = vadd.f32 0.0, %v2032
    %v2034 = vpop.f32.mrf.mxu0
    %2035 = vmatprep.mubr.bf16.mxu0 0
    %2036 = vmatmul.mubr.bf16.gmra.mxu0 %v1957
    %v2037 = vpop.f32.mrf.mxu0
    %v2038 = vadd.f32 0.0, %v2037
    %v2039 = vpop.f32.mrf.mxu0
    %v2040 = vpop.f32.mrf.mxu0
    %v2041 = vadd.f32 0.0, %v2040
    %v2042 = vpop.f32.mrf.mxu0
    %2043 = vmatprep.mubr.bf16.mxu0 0
    %2044 = vmatmul.mubr.bf16.gmra.mxu0 %v1960
    %v2045 = vpop.f32.mrf.mxu0
    %v2046 = vadd.f32 0.0, %v2045
    %v2047 = vpop.f32.mrf.mxu0
    %v2048 = vpop.f32.mrf.mxu0
    %v2049 = vadd.f32 0.0, %v2048
    %v2050 = vpop.f32.mrf.mxu0
    %2051 = vmatprep.mubr.bf16.mxu0 0
    %2052 = vmatmul.mubr.bf16.gmra.mxu0 %v1963
    %v2053 = vpop.f32.mrf.mxu0
    %v2054 = vadd.f32 0.0, %v2053
    %v2055 = vpop.f32.mrf.mxu0
    %v2056 = vpop.f32.mrf.mxu0
    %v2057 = vadd.f32 0.0, %v2056
    %v2058 = vpop.f32.mrf.mxu0
    %2059 = vmatprep.mubr.bf16.mxu0 0
    %2060 = vmatmul.mubr.bf16.gmra.mxu0 %v1966
    %v2061 = vpop.f32.mrf.mxu0
    %v2062 = vadd.f32 0.0, %v2061
    %v2063 = vpop.f32.mrf.mxu0
    %v2064 = vpop.f32.mrf.mxu0
    %v2065 = vadd.f32 0.0, %v2064
    %v2066 = vpop.f32.mrf.mxu0
    %2067 = vdwg.mxu0
    %vm2068 = vcmp.ge.f32.partialorder %v2006, 0.0
    %vm2069 = vcmp.ge.f32.partialorder %v2009, 0.0
    %vm2070 = vcmp.ge.f32.partialorder %v2014, 0.0
    %vm2071 = vcmp.ge.f32.partialorder %v2017, 0.0
    %vm2072 = vcmp.ge.f32.partialorder %v2022, 0.0
    %vm2073 = vcmp.ge.f32.partialorder %v2025, 0.0
    %vm2074 = vcmp.ge.f32.partialorder %v2030, 0.0
    %vm2075 = vcmp.ge.f32.partialorder %v2033, 0.0
    %vm2076 = vcmp.ge.f32.partialorder %v2038, 0.0
    %vm2077 = vcmp.ge.f32.partialorder %v2041, 0.0
    %vm2078 = vcmp.ge.f32.partialorder %v2046, 0.0
    %vm2079 = vcmp.ge.f32.partialorder %v2049, 0.0
    %vm2080 = vcmp.ge.f32.partialorder %v2054, 0.0
    %vm2081 = vcmp.ge.f32.partialorder %v2057, 0.0
    %vm2082 = vcmp.ge.f32.partialorder %v2062, 0.0
    %vm2083 = vcmp.ge.f32.partialorder %v2065, 0.0
    %v2084 = vmul.f32 %v2006, 0.01
    %v2085 = vmul.f32 %v2009, 0.01
    %v2086 = vmul.f32 %v2014, 0.01
    %v2087 = vmul.f32 %v2017, 0.01
    %v2088 = vmul.f32 %v2022, 0.01
    %v2089 = vmul.f32 %v2025, 0.01
    %v2090 = vmul.f32 %v2030, 0.01
    %v2091 = vmul.f32 %v2033, 0.01
    %v2092 = vmul.f32 %v2038, 0.01
    %v2093 = vmul.f32 %v2041, 0.01
    %v2094 = vmul.f32 %v2046, 0.01
    %v2095 = vmul.f32 %v2049, 0.01
    %v2096 = vmul.f32 %v2054, 0.01
    %v2097 = vmul.f32 %v2057, 0.01
    %v2098 = vmul.f32 %v2062, 0.01
    %v2099 = vmul.f32 %v2065, 0.01
    %v2100 = vsel %vm2068, %v2006, %v2084
    %v2101 = vsel %vm2069, %v2009, %v2085
    %v2102 = vsel %vm2070, %v2014, %v2086
    %v2103 = vsel %vm2071, %v2017, %v2087
    %v2104 = vsel %vm2072, %v2022, %v2088
    %v2105 = vsel %vm2073, %v2025, %v2089
    %v2106 = vsel %vm2074, %v2030, %v2090
    %v2107 = vsel %vm2075, %v2033, %v2091
    %v2108 = vsel %vm2076, %v2038, %v2092
    %v2109 = vsel %vm2077, %v2041, %v2093
    %v2110 = vsel %vm2078, %v2046, %v2094
    %v2111 = vsel %vm2079, %v2049, %v2095
    %v2112 = vsel %vm2080, %v2054, %v2096
    %v2113 = vsel %vm2081, %v2057, %v2097
    %v2114 = vsel %vm2082, %v2062, %v2098
    %v2115 = vsel %vm2083, %v2065, %v2099
    %s2116 = scalar_lea.vmem %s1, 128
    %v2117 = vld [vmem:[%s2116] sm:$0xf]
    %v2118 = vld [vmem:[%s2116 + $0x4] sm:$0xf]
    %v2119 = vld [vmem:[%s2116 + $0x8] sm:$0xf]
    %v2120 = vld [vmem:[%s2116 + $0xc] sm:$0xf]
    %v2121 = vld [vmem:[%s2116 + $0x10] sm:$0xf]
    %v2122 = vld [vmem:[%s2116 + $0x14] sm:$0xf]
    %v2123 = vld [vmem:[%s2116 + $0x18] sm:$0xf]
    %v2124 = vld [vmem:[%s2116 + $0x1c] sm:$0xf]
    %v2125 = vld [vmem:[%s2116 + $0x20] sm:$0xf]
    %v2126 = vld [vmem:[%s2116 + $0x24] sm:$0xf]
    %v2127 = vld [vmem:[%s2116 + $0x28] sm:$0xf]
    %v2128 = vld [vmem:[%s2116 + $0x2c] sm:$0xf]
    %v2129 = vld [vmem:[%s2116 + $0x30] sm:$0xf]
    %v2130 = vld [vmem:[%s2116 + $0x34] sm:$0xf]
    %v2131 = vld [vmem:[%s2116 + $0x38] sm:$0xf]
    %v2132 = vld [vmem:[%s2116 + $0x3c] sm:$0xf]
    %v2133 = vpack.c.bf16 %v2101, %v2100
    %v2134 = vpack.c.bf16 %v2103, %v2102
    %v2135 = vpack.c.bf16 %v2105, %v2104
    %v2136 = vpack.c.bf16 %v2107, %v2106
    %v2137 = vpack.c.bf16 %v2109, %v2108
    %v2138 = vpack.c.bf16 %v2111, %v2110
    %v2139 = vpack.c.bf16 %v2113, %v2112
    %v2140 = vpack.c.bf16 %v2115, %v2114
    %s2141 = scalar_lea.vmem %s2, 256
    %v2142 = vld [vmem:[%s2141] sm:$0xff]
    %v2143 = vld [vmem:[%s2141 + $0x8] sm:$0xff]
    %v2144 = vld [vmem:[%s2141 + $0x10] sm:$0xff]
    %v2145 = vld [vmem:[%s2141 + $0x18] sm:$0xff]
    %v2146 = vld [vmem:[%s2141 + $0x20] sm:$0xff]
    %v2147 = vld [vmem:[%s2141 + $0x28] sm:$0xff]
    %v2148 = vld [vmem:[%s2141 + $0x30] sm:$0xff]
    %v2149 = vld [vmem:[%s2141 + $0x38] sm:$0xff]
    %v2150 = vld [vmem:[%s2141 + $0x40] sm:$0xff]
    %v2151 = vld [vmem:[%s2141 + $0x48] sm:$0xff]
    %v2152 = vld [vmem:[%s2141 + $0x50] sm:$0xff]
    %v2153 = vld [vmem:[%s2141 + $0x58] sm:$0xff]
    %v2154 = vld [vmem:[%s2141 + $0x60] sm:$0xff]
    %v2155 = vld [vmem:[%s2141 + $0x68] sm:$0xff]
    %v2156 = vld [vmem:[%s2141 + $0x70] sm:$0xff]
    %v2157 = vld [vmem:[%s2141 + $0x78] sm:$0xff]
    %2159 = vset.pattern.permute.xlu0 0
    %2160 = vperm.xlu0 %2159, %v2142
    %v2161 = vpop.permute.xlu0 %2160
    %2164 = vset.pattern.permute.xlu0 0
    %2165 = vperm.xlu0 %2164, %v2143
    %v2166 = vpop.permute.xlu0 %2165
    %2169 = vset.pattern.permute.xlu0 0
    %2170 = vperm.xlu0 %2169, %v2144
    %v2171 = vpop.permute.xlu0 %2170
    %2174 = vset.pattern.permute.xlu0 0
    %2175 = vperm.xlu0 %2174, %v2145
    %v2176 = vpop.permute.xlu0 %2175
    %2179 = vset.pattern.permute.xlu0 0
    %2180 = vperm.xlu0 %2179, %v2146
    %v2181 = vpop.permute.xlu0 %2180
    %2184 = vset.pattern.permute.xlu0 0
    %2185 = vperm.xlu0 %2184, %v2147
    %v2186 = vpop.permute.xlu0 %2185
    %2189 = vset.pattern.permute.xlu0 0
    %2190 = vperm.xlu0 %2189, %v2148
    %v2191 = vpop.permute.xlu0 %2190
    %2194 = vset.pattern.permute.xlu0 0
    %2195 = vperm.xlu0 %2194, %v2149
    %v2196 = vpop.permute.xlu0 %2195
    %2199 = vset.pattern.permute.xlu0 0
    %2200 = vperm.xlu0 %2199, %v2150
    %v2201 = vpop.permute.xlu0 %2200
    %2204 = vset.pattern.permute.xlu0 0
    %2205 = vperm.xlu0 %2204, %v2151
    %v2206 = vpop.permute.xlu0 %2205
    %2209 = vset.pattern.permute.xlu0 0
    %2210 = vperm.xlu0 %2209, %v2152
    %v2211 = vpop.permute.xlu0 %2210
    %2214 = vset.pattern.permute.xlu0 0
    %2215 = vperm.xlu0 %2214, %v2153
    %v2216 = vpop.permute.xlu0 %2215
    %2219 = vset.pattern.permute.xlu0 0
    %2220 = vperm.xlu0 %2219, %v2154
    %v2221 = vpop.permute.xlu0 %2220
    %2224 = vset.pattern.permute.xlu0 0
    %2225 = vperm.xlu0 %2224, %v2155
    %v2226 = vpop.permute.xlu0 %2225
    %2229 = vset.pattern.permute.xlu0 0
    %2230 = vperm.xlu0 %2229, %v2156
    %v2231 = vpop.permute.xlu0 %2230
    %2234 = vset.pattern.permute.xlu0 0
    %2235 = vperm.xlu0 %2234, %v2157
    %v2236 = vpop.permute.xlu0 %2235
    %v2254 = vunpack.c.l.b16 %v2117
    %v2255 = vunpack.c.l.b16 %v2118
    %v2256 = vunpack.c.l.b16 %v2119
    %v2257 = vunpack.c.l.b16 %v2120
    %v2258 = vunpack.c.l.b16 %v2121
    %v2259 = vunpack.c.l.b16 %v2122
    %v2260 = vunpack.c.l.b16 %v2123
    %v2261 = vunpack.c.l.b16 %v2124
    %v2262 = vunpack.c.l.b16 %v2125
    %v2263 = vunpack.c.l.b16 %v2126
    %v2264 = vunpack.c.l.b16 %v2127
    %v2265 = vunpack.c.l.b16 %v2128
    %v2266 = vunpack.c.l.b16 %v2129
    %v2267 = vunpack.c.l.b16 %v2130
    %v2268 = vunpack.c.l.b16 %v2131
    %v2269 = vunpack.c.l.b16 %v2132
    %v2270 = vpack.c.b16 %v2255, %v2254
    %v2271 = vpack.c.b16 %v2257, %v2256
    %v2272 = vpack.c.b16 %v2259, %v2258
    %v2273 = vpack.c.b16 %v2261, %v2260
    %v2274 = vpack.c.b16 %v2263, %v2262
    %v2275 = vpack.c.b16 %v2265, %v2264
    %v2276 = vpack.c.b16 %v2267, %v2266
    %v2277 = vpack.c.b16 %v2269, %v2268
    %2286 = vmatprep.subr.bf16.mxu0 0
    %2287 = vmatpush1.bf16.msra.mxu0 %v2140
    %2288 = vmatprep.subr.bf16.mxu0 0
    %2289 = vmatpush1.bf16.msra.mxu0 %v2139
    %2290 = vmatprep.subr.bf16.mxu0 0
    %2291 = vmatpush1.bf16.msra.mxu0 %v2138
    %2292 = vmatprep.subr.bf16.mxu0 0
    %2293 = vmatpush1.bf16.msra.mxu0 %v2137
    %2294 = vmatprep.subr.bf16.mxu0 0
    %2295 = vmatpush1.bf16.msra.mxu0 %v2136
    %2296 = vmatprep.subr.bf16.mxu0 0
    %2297 = vmatpush1.bf16.msra.mxu0 %v2135
    %2298 = vmatprep.subr.bf16.mxu0 0
    %2299 = vmatpush1.bf16.msra.mxu0 %v2134
    %2300 = vmatprep.subr.bf16.mxu0 0
    %2301 = vmatpush1.bf16.msra.mxu0 %v2133
    %2302 = vmatprep.subr.bf16.mxu0 0
    %2303 = vmatpush2.bf16.msra.mxu0 0
    %2304 = vmatprep.subr.bf16.mxu0 0
    %2305 = vmatpush2.bf16.msra.mxu0 0
    %2306 = vmatprep.subr.bf16.mxu0 0
    %2307 = vmatpush2.bf16.msra.mxu0 0
    %2308 = vmatprep.subr.bf16.mxu0 0
    %2309 = vmatpush2.bf16.msra.mxu0 0
    %2310 = vmatprep.subr.bf16.mxu0 0
    %2311 = vmatpush2.bf16.msra.mxu0 0
    %2312 = vmatprep.subr.bf16.mxu0 0
    %2313 = vmatpush2.bf16.msra.mxu0 0
    %2314 = vmatprep.subr.bf16.mxu0 0
    %2315 = vmatpush2.bf16.msra.mxu0 0
    %2316 = vmatprep.subr.bf16.mxu0 0
    %2317 = vmatpush2.bf16.msra.mxu0 0
    %2318 = vmatprep.mubr.bf16.mxu0 0
    %2319 = vmatmul.mubr.bf16.gmra.mxu0 %v2270
    %v2320 = vpop.f32.mrf.mxu0
    %v2321 = vadd.f32 %v2161, %v2320
    %v2322 = vpop.f32.mrf.mxu0
    %v2323 = vpop.f32.mrf.mxu0
    %v2324 = vadd.f32 %v2166, %v2323
    %v2325 = vpop.f32.mrf.mxu0
    %2326 = vmatprep.mubr.bf16.mxu0 0
    %2327 = vmatmul.mubr.bf16.gmra.mxu0 %v2271
    %v2328 = vpop.f32.mrf.mxu0
    %v2329 = vadd.f32 %v2171, %v2328
    %v2330 = vpop.f32.mrf.mxu0
    %v2331 = vpop.f32.mrf.mxu0
    %v2332 = vadd.f32 %v2176, %v2331
    %v2333 = vpop.f32.mrf.mxu0
    %2334 = vmatprep.mubr.bf16.mxu0 0
    %2335 = vmatmul.mubr.bf16.gmra.mxu0 %v2272
    %v2336 = vpop.f32.mrf.mxu0
    %v2337 = vadd.f32 %v2181, %v2336
    %v2338 = vpop.f32.mrf.mxu0
    %v2339 = vpop.f32.mrf.mxu0
    %v2340 = vadd.f32 %v2186, %v2339
    %v2341 = vpop.f32.mrf.mxu0
    %2342 = vmatprep.mubr.bf16.mxu0 0
    %2343 = vmatmul.mubr.bf16.gmra.mxu0 %v2273
    %v2344 = vpop.f32.mrf.mxu0
    %v2345 = vadd.f32 %v2191, %v2344
    %v2346 = vpop.f32.mrf.mxu0
    %v2347 = vpop.f32.mrf.mxu0
    %v2348 = vadd.f32 %v2196, %v2347
    %v2349 = vpop.f32.mrf.mxu0
    %2350 = vmatprep.mubr.bf16.mxu0 0
    %2351 = vmatmul.mubr.bf16.gmra.mxu0 %v2274
    %v2352 = vpop.f32.mrf.mxu0
    %v2353 = vadd.f32 %v2201, %v2352
    %v2354 = vpop.f32.mrf.mxu0
    %v2355 = vpop.f32.mrf.mxu0
    %v2356 = vadd.f32 %v2206, %v2355
    %v2357 = vpop.f32.mrf.mxu0
    %2358 = vmatprep.mubr.bf16.mxu0 0
    %2359 = vmatmul.mubr.bf16.gmra.mxu0 %v2275
    %v2360 = vpop.f32.mrf.mxu0
    %v2361 = vadd.f32 %v2211, %v2360
    %v2362 = vpop.f32.mrf.mxu0
    %v2363 = vpop.f32.mrf.mxu0
    %v2364 = vadd.f32 %v2216, %v2363
    %v2365 = vpop.f32.mrf.mxu0
    %2366 = vmatprep.mubr.bf16.mxu0 0
    %2367 = vmatmul.mubr.bf16.gmra.mxu0 %v2276
    %v2368 = vpop.f32.mrf.mxu0
    %v2369 = vadd.f32 %v2221, %v2368
    %v2370 = vpop.f32.mrf.mxu0
    %v2371 = vpop.f32.mrf.mxu0
    %v2372 = vadd.f32 %v2226, %v2371
    %v2373 = vpop.f32.mrf.mxu0
    %2374 = vmatprep.mubr.bf16.mxu0 0
    %2375 = vmatmul.mubr.bf16.gmra.mxu0 %v2277
    %v2376 = vpop.f32.mrf.mxu0
    %v2377 = vadd.f32 %v2231, %v2376
    %v2378 = vpop.f32.mrf.mxu0
    %v2379 = vpop.f32.mrf.mxu0
    %v2380 = vadd.f32 %v2236, %v2379
    %v2381 = vpop.f32.mrf.mxu0
    %2382 = vdwg.mxu0
    %vm2383 = vcmp.ge.f32.partialorder %v2321, 0.0
    %vm2384 = vcmp.ge.f32.partialorder %v2324, 0.0
    %vm2385 = vcmp.ge.f32.partialorder %v2329, 0.0
    %vm2386 = vcmp.ge.f32.partialorder %v2332, 0.0
    %vm2387 = vcmp.ge.f32.partialorder %v2337, 0.0
    %vm2388 = vcmp.ge.f32.partialorder %v2340, 0.0
    %vm2389 = vcmp.ge.f32.partialorder %v2345, 0.0
    %vm2390 = vcmp.ge.f32.partialorder %v2348, 0.0
    %vm2391 = vcmp.ge.f32.partialorder %v2353, 0.0
    %vm2392 = vcmp.ge.f32.partialorder %v2356, 0.0
    %vm2393 = vcmp.ge.f32.partialorder %v2361, 0.0
    %vm2394 = vcmp.ge.f32.partialorder %v2364, 0.0
    %vm2395 = vcmp.ge.f32.partialorder %v2369, 0.0
    %vm2396 = vcmp.ge.f32.partialorder %v2372, 0.0
    %vm2397 = vcmp.ge.f32.partialorder %v2377, 0.0
    %vm2398 = vcmp.ge.f32.partialorder %v2380, 0.0
    %v2399 = vmul.f32 %v2321, 0.01
    %v2400 = vmul.f32 %v2324, 0.01
    %v2401 = vmul.f32 %v2329, 0.01
    %v2402 = vmul.f32 %v2332, 0.01
    %v2403 = vmul.f32 %v2337, 0.01
    %v2404 = vmul.f32 %v2340, 0.01
    %v2405 = vmul.f32 %v2345, 0.01
    %v2406 = vmul.f32 %v2348, 0.01
    %v2407 = vmul.f32 %v2353, 0.01
    %v2408 = vmul.f32 %v2356, 0.01
    %v2409 = vmul.f32 %v2361, 0.01
    %v2410 = vmul.f32 %v2364, 0.01
    %v2411 = vmul.f32 %v2369, 0.01
    %v2412 = vmul.f32 %v2372, 0.01
    %v2413 = vmul.f32 %v2377, 0.01
    %v2414 = vmul.f32 %v2380, 0.01
    %v2415 = vsel %vm2383, %v2321, %v2399
    %v2416 = vsel %vm2384, %v2324, %v2400
    %v2417 = vsel %vm2385, %v2329, %v2401
    %v2418 = vsel %vm2386, %v2332, %v2402
    %v2419 = vsel %vm2387, %v2337, %v2403
    %v2420 = vsel %vm2388, %v2340, %v2404
    %v2421 = vsel %vm2389, %v2345, %v2405
    %v2422 = vsel %vm2390, %v2348, %v2406
    %v2423 = vsel %vm2391, %v2353, %v2407
    %v2424 = vsel %vm2392, %v2356, %v2408
    %v2425 = vsel %vm2393, %v2361, %v2409
    %v2426 = vsel %vm2394, %v2364, %v2410
    %v2427 = vsel %vm2395, %v2369, %v2411
    %v2428 = vsel %vm2396, %v2372, %v2412
    %v2429 = vsel %vm2397, %v2377, %v2413
    %v2430 = vsel %vm2398, %v2380, %v2414
    %s2431 = scalar_lea.vmem %s3, 2
    %v2432 = vld [vmem:[%s2431] sm:$0x1]
    %v2433 = vpack.c.bf16 %v2416, %v2415
    %v2434 = vpack.c.bf16 %v2418, %v2417
    %v2435 = vpack.c.bf16 %v2420, %v2419
    %v2436 = vpack.c.bf16 %v2422, %v2421
    %v2437 = vpack.c.bf16 %v2424, %v2423
    %v2438 = vpack.c.bf16 %v2426, %v2425
    %v2439 = vpack.c.bf16 %v2428, %v2427
    %v2440 = vpack.c.bf16 %v2430, %v2429
    %s2441 = scalar_lea.vmem %s4, 4
    %v2442 = vld [vmem:[%s2441] sm:$0x3]
    %2444 = vset.pattern.permute.xlu0 0
    %2445 = vperm.xlu0 %2444, %v2442
    %v2446 = vpop.permute.xlu0 %2445
    %2448 = vmatprep.subr.bf16.mxu0 0
    %2449 = vmatpush1.bf16.msra.mxu0 %v2440
    %2450 = vmatprep.subr.bf16.mxu0 0
    %2451 = vmatpush1.bf16.msra.mxu0 %v2439
    %2452 = vmatprep.subr.bf16.mxu0 0
    %2453 = vmatpush1.bf16.msra.mxu0 %v2438
    %2454 = vmatprep.subr.bf16.mxu0 0
    %2455 = vmatpush1.bf16.msra.mxu0 %v2437
    %2456 = vmatprep.subr.bf16.mxu0 0
    %2457 = vmatpush1.bf16.msra.mxu0 %v2436
    %2458 = vmatprep.subr.bf16.mxu0 0
    %2459 = vmatpush1.bf16.msra.mxu0 %v2435
    %2460 = vmatprep.subr.bf16.mxu0 0
    %2461 = vmatpush1.bf16.msra.mxu0 %v2434
    %2462 = vmatprep.subr.bf16.mxu0 0
    %2463 = vmatpush1.bf16.msra.mxu0 %v2433
    %2464 = vmatprep.subr.bf16.mxu0 0
    %2465 = vmatpush2.bf16.msra.mxu0 0
    %2466 = vmatprep.subr.bf16.mxu0 0
    %2467 = vmatpush2.bf16.msra.mxu0 0
    %2468 = vmatprep.subr.bf16.mxu0 0
    %2469 = vmatpush2.bf16.msra.mxu0 0
    %2470 = vmatprep.subr.bf16.mxu0 0
    %2471 = vmatpush2.bf16.msra.mxu0 0
    %2472 = vmatprep.subr.bf16.mxu0 0
    %2473 = vmatpush2.bf16.msra.mxu0 0
    %2474 = vmatprep.subr.bf16.mxu0 0
    %2475 = vmatpush2.bf16.msra.mxu0 0
    %2476 = vmatprep.subr.bf16.mxu0 0
    %2477 = vmatpush2.bf16.msra.mxu0 0
    %2478 = vmatprep.subr.bf16.mxu0 0
    %2479 = vmatpush2.bf16.msra.mxu0 0
    %2480 = vmatprep.mubr.bf16.mxu0 0
    %2481 = vmatmul.mubr.bf16.gmra.mxu0 %v2432
    %v2482 = vpop.f32.mrf.mxu0
    %v2483 = vadd.f32 %v2446, %v2482
    %v2484 = vpop.f32.mrf.mxu0
    %v2485 = vpop.f32.mrf.mxu0
    %v2486 = vpop.f32.mrf.mxu0
    %2487 = vdwg.mxu0
    %v2488 = vtanh.pop %v2483
    %v2490 = vrot.slane %v2483, 1
    %v2492 = vsub.f32 %v1262, %v2490
    %v2493 = vsub.f32 0.0, %v2488
    %v2494 = vmul.f32 %v2493, 1.442695
    %v2495 = vpow.pop %v2494
    %v2496 = vmul.f32 %v2492, %v2495
    %v2497 = vsub.f32 %v1880, %v2488
    %v2498 = vlaneseq
    %v2499 = vshrl.u32 %v2498, 7
    %v2500 = vsub.s32 0, %v2499
    %v2501 = vrot.slane %v2496, %v2500
    %v2502 = vsel %vm28, %v2501, 1.0
    %v2503 = vpack.c.bf16 %v2502, %v2502
    %s2504 = scalar_lea.vmem %s0, 64
    %v2505 = vld [vmem:[%s2504] sm:$0xf]
    %v2506 = vld [vmem:[%s2504 + $0x4] sm:$0xf]
    %v2507 = vld [vmem:[%s2504 + $0x8] sm:$0xf]
    %v2508 = vld [vmem:[%s2504 + $0xc] sm:$0xf]
    %v2509 = vld [vmem:[%s2504 + $0x10] sm:$0xf]
    %v2510 = vld [vmem:[%s2504 + $0x14] sm:$0xf]
    %v2511 = vld [vmem:[%s2504 + $0x18] sm:$0xf]
    %v2512 = vld [vmem:[%s2504 + $0x1c] sm:$0xf]
    %v2513 = vld [vmem:[%s2504 + $0x20] sm:$0xf]
    %v2514 = vld [vmem:[%s2504 + $0x24] sm:$0xf]
    %v2515 = vld [vmem:[%s2504 + $0x28] sm:$0xf]
    %v2516 = vld [vmem:[%s2504 + $0x2c] sm:$0xf]
    %v2517 = vld [vmem:[%s2504 + $0x30] sm:$0xf]
    %v2518 = vld [vmem:[%s2504 + $0x34] sm:$0xf]
    %v2519 = vld [vmem:[%s2504 + $0x38] sm:$0xf]
    %v2520 = vld [vmem:[%s2504 + $0x3c] sm:$0xf]
    %v2537 = vunpack.c.l.b16 %v2505
    %v2538 = vunpack.c.l.b16 %v2506
    %v2539 = vunpack.c.l.b16 %v2507
    %v2540 = vunpack.c.l.b16 %v2508
    %v2541 = vunpack.c.l.b16 %v2509
    %v2542 = vunpack.c.l.b16 %v2510
    %v2543 = vunpack.c.l.b16 %v2511
    %v2544 = vunpack.c.l.b16 %v2512
    %v2545 = vunpack.c.l.b16 %v2513
    %v2546 = vunpack.c.l.b16 %v2514
    %v2547 = vunpack.c.l.b16 %v2515
    %v2548 = vunpack.c.l.b16 %v2516
    %v2549 = vunpack.c.l.b16 %v2517
    %v2550 = vunpack.c.l.b16 %v2518
    %v2551 = vunpack.c.l.b16 %v2519
    %v2552 = vunpack.c.l.b16 %v2520
    %v2553 = vpack.c.b16 %v2538, %v2537
    %v2554 = vpack.c.b16 %v2540, %v2539
    %v2555 = vpack.c.b16 %v2542, %v2541
    %v2556 = vpack.c.b16 %v2544, %v2543
    %v2557 = vpack.c.b16 %v2546, %v2545
    %v2558 = vpack.c.b16 %v2548, %v2547
    %v2559 = vpack.c.b16 %v2550, %v2549
    %v2560 = vpack.c.b16 %v2552, %v2551
    %v2562 = vsel %vm92, %v2553, 0
    %v2565 = vsel %vm92, %v2554, 0
    %v2568 = vsel %vm92, %v2555, 0
    %v2571 = vsel %vm92, %v2556, 0
    %v2574 = vsel %vm92, %v2557, 0
    %v2577 = vsel %vm92, %v2558, 0
    %v2580 = vsel %vm92, %v2559, 0
    %v2583 = vsel %vm92, %v2560, 0
    %v2586 = vsel %vm117, %v2503, 0
    %2588 = vmatprep.subr.bf16.mxu0 0
    %2589 = vmatpush1.bf16.msra.mxu0 0
    %2590 = vmatprep.subr.bf16.mxu0 0
    %2591 = vmatpush1.bf16.msra.mxu0 0
    %2592 = vmatprep.subr.bf16.mxu0 0
    %2593 = vmatpush1.bf16.msra.mxu0 0
    %2594 = vmatprep.subr.bf16.mxu0 0
    %2595 = vmatpush1.bf16.msra.mxu0 0
    %2596 = vmatprep.subr.bf16.mxu0 0
    %2597 = vmatpush1.bf16.msra.mxu0 0
    %2598 = vmatprep.subr.bf16.mxu0 0
    %2599 = vmatpush1.bf16.msra.mxu0 0
    %2600 = vmatprep.subr.bf16.mxu0 0
    %2601 = vmatpush1.bf16.msra.mxu0 0
    %2602 = vmatprep.subr.bf16.mxu0 0
    %2603 = vmatpush1.bf16.msra.mxu0 %v2586
    %2604 = vmatprep.subr.bf16.mxu0 0
    %2605 = vmatpush2.bf16.msra.mxu0 0
    %2606 = vmatprep.subr.bf16.mxu0 0
    %2607 = vmatpush2.bf16.msra.mxu0 0
    %2608 = vmatprep.subr.bf16.mxu0 0
    %2609 = vmatpush2.bf16.msra.mxu0 0
    %2610 = vmatprep.subr.bf16.mxu0 0
    %2611 = vmatpush2.bf16.msra.mxu0 0
    %2612 = vmatprep.subr.bf16.mxu0 0
    %2613 = vmatpush2.bf16.msra.mxu0 0
    %2614 = vmatprep.subr.bf16.mxu0 0
    %2615 = vmatpush2.bf16.msra.mxu0 0
    %2616 = vmatprep.subr.bf16.mxu0 0
    %2617 = vmatpush2.bf16.msra.mxu0 0
    %2618 = vmatprep.subr.bf16.mxu0 0
    %2619 = vmatpush2.bf16.msra.mxu0 0
    %2620 = vmatprep.mubr.bf16.mxu0 0
    %2621 = vmatmul.mubr.bf16.gmra.mxu0 %v2562
    %v2622 = vpop.f32.mrf.mxu0
    %v2623 = vadd.f32 0.0, %v2622
    %v2624 = vpop.f32.mrf.mxu0
    %v2625 = vpop.f32.mrf.mxu0
    %v2626 = vadd.f32 0.0, %v2625
    %v2627 = vpop.f32.mrf.mxu0
    %2628 = vmatprep.mubr.bf16.mxu0 0
    %2629 = vmatmul.mubr.bf16.gmra.mxu0 %v2565
    %v2630 = vpop.f32.mrf.mxu0
    %v2631 = vadd.f32 0.0, %v2630
    %v2632 = vpop.f32.mrf.mxu0
    %v2633 = vpop.f32.mrf.mxu0
    %v2634 = vadd.f32 0.0, %v2633
    %v2635 = vpop.f32.mrf.mxu0
    %2636 = vmatprep.mubr.bf16.mxu0 0
    %2637 = vmatmul.mubr.bf16.gmra.mxu0 %v2568
    %v2638 = vpop.f32.mrf.mxu0
    %v2639 = vadd.f32 0.0, %v2638
    %v2640 = vpop.f32.mrf.mxu0
    %v2641 = vpop.f32.mrf.mxu0
    %v2642 = vadd.f32 0.0, %v2641
    %v2643 = vpop.f32.mrf.mxu0
    %2644 = vmatprep.mubr.bf16.mxu0 0
    %2645 = vmatmul.mubr.bf16.gmra.mxu0 %v2571
    %v2646 = vpop.f32.mrf.mxu0
    %v2647 = vadd.f32 0.0, %v2646
    %v2648 = vpop.f32.mrf.mxu0
    %v2649 = vpop.f32.mrf.mxu0
    %v2650 = vadd.f32 0.0, %v2649
    %v2651 = vpop.f32.mrf.mxu0
    %2652 = vmatprep.mubr.bf16.mxu0 0
    %2653 = vmatmul.mubr.bf16.gmra.mxu0 %v2574
    %v2654 = vpop.f32.mrf.mxu0
    %v2655 = vadd.f32 0.0, %v2654
    %v2656 = vpop.f32.mrf.mxu0
    %v2657 = vpop.f32.mrf.mxu0
    %v2658 = vadd.f32 0.0, %v2657
    %v2659 = vpop.f32.mrf.mxu0
    %2660 = vmatprep.mubr.bf16.mxu0 0
    %2661 = vmatmul.mubr.bf16.gmra.mxu0 %v2577
    %v2662 = vpop.f32.mrf.mxu0
    %v2663 = vadd.f32 0.0, %v2662
    %v2664 = vpop.f32.mrf.mxu0
    %v2665 = vpop.f32.mrf.mxu0
    %v2666 = vadd.f32 0.0, %v2665
    %v2667 = vpop.f32.mrf.mxu0
    %2668 = vmatprep.mubr.bf16.mxu0 0
    %2669 = vmatmul.mubr.bf16.gmra.mxu0 %v2580
    %v2670 = vpop.f32.mrf.mxu0
    %v2671 = vadd.f32 0.0, %v2670
    %v2672 = vpop.f32.mrf.mxu0
    %v2673 = vpop.f32.mrf.mxu0
    %v2674 = vadd.f32 0.0, %v2673
    %v2675 = vpop.f32.mrf.mxu0
    %2676 = vmatprep.mubr.bf16.mxu0 0
    %2677 = vmatmul.mubr.bf16.gmra.mxu0 %v2583
    %v2678 = vpop.f32.mrf.mxu0
    %v2679 = vadd.f32 0.0, %v2678
    %v2680 = vpop.f32.mrf.mxu0
    %v2681 = vpop.f32.mrf.mxu0
    %v2682 = vadd.f32 0.0, %v2681
    %v2683 = vpop.f32.mrf.mxu0
    %2684 = vdwg.mxu0
    %vm2685 = vcmp.ge.f32.partialorder %v2623, 0.0
    %vm2686 = vcmp.ge.f32.partialorder %v2626, 0.0
    %vm2687 = vcmp.ge.f32.partialorder %v2631, 0.0
    %vm2688 = vcmp.ge.f32.partialorder %v2634, 0.0
    %vm2689 = vcmp.ge.f32.partialorder %v2639, 0.0
    %vm2690 = vcmp.ge.f32.partialorder %v2642, 0.0
    %vm2691 = vcmp.ge.f32.partialorder %v2647, 0.0
    %vm2692 = vcmp.ge.f32.partialorder %v2650, 0.0
    %vm2693 = vcmp.ge.f32.partialorder %v2655, 0.0
    %vm2694 = vcmp.ge.f32.partialorder %v2658, 0.0
    %vm2695 = vcmp.ge.f32.partialorder %v2663, 0.0
    %vm2696 = vcmp.ge.f32.partialorder %v2666, 0.0
    %vm2697 = vcmp.ge.f32.partialorder %v2671, 0.0
    %vm2698 = vcmp.ge.f32.partialorder %v2674, 0.0
    %vm2699 = vcmp.ge.f32.partialorder %v2679, 0.0
    %vm2700 = vcmp.ge.f32.partialorder %v2682, 0.0
    %v2701 = vmul.f32 %v2623, 0.01
    %v2702 = vmul.f32 %v2626, 0.01
    %v2703 = vmul.f32 %v2631, 0.01
    %v2704 = vmul.f32 %v2634, 0.01
    %v2705 = vmul.f32 %v2639, 0.01
    %v2706 = vmul.f32 %v2642, 0.01
    %v2707 = vmul.f32 %v2647, 0.01
    %v2708 = vmul.f32 %v2650, 0.01
    %v2709 = vmul.f32 %v2655, 0.01
    %v2710 = vmul.f32 %v2658, 0.01
    %v2711 = vmul.f32 %v2663, 0.01
    %v2712 = vmul.f32 %v2666, 0.01
    %v2713 = vmul.f32 %v2671, 0.01
    %v2714 = vmul.f32 %v2674, 0.01
    %v2715 = vmul.f32 %v2679, 0.01
    %v2716 = vmul.f32 %v2682, 0.01
    %v2717 = vsel %vm2685, %v2623, %v2701
    %v2718 = vsel %vm2686, %v2626, %v2702
    %v2719 = vsel %vm2687, %v2631, %v2703
    %v2720 = vsel %vm2688, %v2634, %v2704
    %v2721 = vsel %vm2689, %v2639, %v2705
    %v2722 = vsel %vm2690, %v2642, %v2706
    %v2723 = vsel %vm2691, %v2647, %v2707
    %v2724 = vsel %vm2692, %v2650, %v2708
    %v2725 = vsel %vm2693, %v2655, %v2709
    %v2726 = vsel %vm2694, %v2658, %v2710
    %v2727 = vsel %vm2695, %v2663, %v2711
    %v2728 = vsel %vm2696, %v2666, %v2712
    %v2729 = vsel %vm2697, %v2671, %v2713
    %v2730 = vsel %vm2698, %v2674, %v2714
    %v2731 = vsel %vm2699, %v2679, %v2715
    %v2732 = vsel %vm2700, %v2682, %v2716
    %s2733 = scalar_lea.vmem %s1, 64
    %v2734 = vld [vmem:[%s2733] sm:$0xf]
    %v2735 = vld [vmem:[%s2733 + $0x4] sm:$0xf]
    %v2736 = vld [vmem:[%s2733 + $0x8] sm:$0xf]
    %v2737 = vld [vmem:[%s2733 + $0xc] sm:$0xf]
    %v2738 = vld [vmem:[%s2733 + $0x10] sm:$0xf]
    %v2739 = vld [vmem:[%s2733 + $0x14] sm:$0xf]
    %v2740 = vld [vmem:[%s2733 + $0x18] sm:$0xf]
    %v2741 = vld [vmem:[%s2733 + $0x1c] sm:$0xf]
    %v2742 = vld [vmem:[%s2733 + $0x20] sm:$0xf]
    %v2743 = vld [vmem:[%s2733 + $0x24] sm:$0xf]
    %v2744 = vld [vmem:[%s2733 + $0x28] sm:$0xf]
    %v2745 = vld [vmem:[%s2733 + $0x2c] sm:$0xf]
    %v2746 = vld [vmem:[%s2733 + $0x30] sm:$0xf]
    %v2747 = vld [vmem:[%s2733 + $0x34] sm:$0xf]
    %v2748 = vld [vmem:[%s2733 + $0x38] sm:$0xf]
    %v2749 = vld [vmem:[%s2733 + $0x3c] sm:$0xf]
    %v2750 = vpack.c.bf16 %v2718, %v2717
    %v2751 = vpack.c.bf16 %v2720, %v2719
    %v2752 = vpack.c.bf16 %v2722, %v2721
    %v2753 = vpack.c.bf16 %v2724, %v2723
    %v2754 = vpack.c.bf16 %v2726, %v2725
    %v2755 = vpack.c.bf16 %v2728, %v2727
    %v2756 = vpack.c.bf16 %v2730, %v2729
    %v2757 = vpack.c.bf16 %v2732, %v2731
    %s2758 = scalar_lea.vmem %s2, 128
    %v2759 = vld [vmem:[%s2758] sm:$0xff]
    %v2760 = vld [vmem:[%s2758 + $0x8] sm:$0xff]
    %v2761 = vld [vmem:[%s2758 + $0x10] sm:$0xff]
    %v2762 = vld [vmem:[%s2758 + $0x18] sm:$0xff]
    %v2763 = vld [vmem:[%s2758 + $0x20] sm:$0xff]
    %v2764 = vld [vmem:[%s2758 + $0x28] sm:$0xff]
    %v2765 = vld [vmem:[%s2758 + $0x30] sm:$0xff]
    %v2766 = vld [vmem:[%s2758 + $0x38] sm:$0xff]
    %v2767 = vld [vmem:[%s2758 + $0x40] sm:$0xff]
    %v2768 = vld [vmem:[%s2758 + $0x48] sm:$0xff]
    %v2769 = vld [vmem:[%s2758 + $0x50] sm:$0xff]
    %v2770 = vld [vmem:[%s2758 + $0x58] sm:$0xff]
    %v2771 = vld [vmem:[%s2758 + $0x60] sm:$0xff]
    %v2772 = vld [vmem:[%s2758 + $0x68] sm:$0xff]
    %v2773 = vld [vmem:[%s2758 + $0x70] sm:$0xff]
    %v2774 = vld [vmem:[%s2758 + $0x78] sm:$0xff]
    %2776 = vset.pattern.permute.xlu0 0
    %2777 = vperm.xlu0 %2776, %v2759
    %v2778 = vpop.permute.xlu0 %2777
    %2781 = vset.pattern.permute.xlu0 0
    %2782 = vperm.xlu0 %2781, %v2760
    %v2783 = vpop.permute.xlu0 %2782
    %2786 = vset.pattern.permute.xlu0 0
    %2787 = vperm.xlu0 %2786, %v2761
    %v2788 = vpop.permute.xlu0 %2787
    %2791 = vset.pattern.permute.xlu0 0
    %2792 = vperm.xlu0 %2791, %v2762
    %v2793 = vpop.permute.xlu0 %2792
    %2796 = vset.pattern.permute.xlu0 0
    %2797 = vperm.xlu0 %2796, %v2763
    %v2798 = vpop.permute.xlu0 %2797
    %2801 = vset.pattern.permute.xlu0 0
    %2802 = vperm.xlu0 %2801, %v2764
    %v2803 = vpop.permute.xlu0 %2802
    %2806 = vset.pattern.permute.xlu0 0
    %2807 = vperm.xlu0 %2806, %v2765
    %v2808 = vpop.permute.xlu0 %2807
    %2811 = vset.pattern.permute.xlu0 0
    %2812 = vperm.xlu0 %2811, %v2766
    %v2813 = vpop.permute.xlu0 %2812
    %2816 = vset.pattern.permute.xlu0 0
    %2817 = vperm.xlu0 %2816, %v2767
    %v2818 = vpop.permute.xlu0 %2817
    %2821 = vset.pattern.permute.xlu0 0
    %2822 = vperm.xlu0 %2821, %v2768
    %v2823 = vpop.permute.xlu0 %2822
    %2826 = vset.pattern.permute.xlu0 0
    %2827 = vperm.xlu0 %2826, %v2769
    %v2828 = vpop.permute.xlu0 %2827
    %2831 = vset.pattern.permute.xlu0 0
    %2832 = vperm.xlu0 %2831, %v2770
    %v2833 = vpop.permute.xlu0 %2832
    %2836 = vset.pattern.permute.xlu0 0
    %2837 = vperm.xlu0 %2836, %v2771
    %v2838 = vpop.permute.xlu0 %2837
    %2841 = vset.pattern.permute.xlu0 0
    %2842 = vperm.xlu0 %2841, %v2772
    %v2843 = vpop.permute.xlu0 %2842
    %2846 = vset.pattern.permute.xlu0 0
    %2847 = vperm.xlu0 %2846, %v2773
    %v2848 = vpop.permute.xlu0 %2847
    %2851 = vset.pattern.permute.xlu0 0
    %2852 = vperm.xlu0 %2851, %v2774
    %v2853 = vpop.permute.xlu0 %2852
    %v2871 = vunpack.c.l.b16 %v2734
    %v2872 = vunpack.c.l.b16 %v2735
    %v2873 = vunpack.c.l.b16 %v2736
    %v2874 = vunpack.c.l.b16 %v2737
    %v2875 = vunpack.c.l.b16 %v2738
    %v2876 = vunpack.c.l.b16 %v2739
    %v2877 = vunpack.c.l.b16 %v2740
    %v2878 = vunpack.c.l.b16 %v2741
    %v2879 = vunpack.c.l.b16 %v2742
    %v2880 = vunpack.c.l.b16 %v2743
    %v2881 = vunpack.c.l.b16 %v2744
    %v2882 = vunpack.c.l.b16 %v2745
    %v2883 = vunpack.c.l.b16 %v2746
    %v2884 = vunpack.c.l.b16 %v2747
    %v2885 = vunpack.c.l.b16 %v2748
    %v2886 = vunpack.c.l.b16 %v2749
    %v2887 = vpack.c.b16 %v2872, %v2871
    %v2888 = vpack.c.b16 %v2874, %v2873
    %v2889 = vpack.c.b16 %v2876, %v2875
    %v2890 = vpack.c.b16 %v2878, %v2877
    %v2891 = vpack.c.b16 %v2880, %v2879
    %v2892 = vpack.c.b16 %v2882, %v2881
    %v2893 = vpack.c.b16 %v2884, %v2883
    %v2894 = vpack.c.b16 %v2886, %v2885
    %2903 = vmatprep.subr.bf16.mxu0 0
    %2904 = vmatpush1.bf16.msra.mxu0 %v2757
    %2905 = vmatprep.subr.bf16.mxu0 0
    %2906 = vmatpush1.bf16.msra.mxu0 %v2756
    %2907 = vmatprep.subr.bf16.mxu0 0
    %2908 = vmatpush1.bf16.msra.mxu0 %v2755
    %2909 = vmatprep.subr.bf16.mxu0 0
    %2910 = vmatpush1.bf16.msra.mxu0 %v2754
    %2911 = vmatprep.subr.bf16.mxu0 0
    %2912 = vmatpush1.bf16.msra.mxu0 %v2753
    %2913 = vmatprep.subr.bf16.mxu0 0
    %2914 = vmatpush1.bf16.msra.mxu0 %v2752
    %2915 = vmatprep.subr.bf16.mxu0 0
    %2916 = vmatpush1.bf16.msra.mxu0 %v2751
    %2917 = vmatprep.subr.bf16.mxu0 0
    %2918 = vmatpush1.bf16.msra.mxu0 %v2750
    %2919 = vmatprep.subr.bf16.mxu0 0
    %2920 = vmatpush2.bf16.msra.mxu0 0
    %2921 = vmatprep.subr.bf16.mxu0 0
    %2922 = vmatpush2.bf16.msra.mxu0 0
    %2923 = vmatprep.subr.bf16.mxu0 0
    %2924 = vmatpush2.bf16.msra.mxu0 0
    %2925 = vmatprep.subr.bf16.mxu0 0
    %2926 = vmatpush2.bf16.msra.mxu0 0
    %2927 = vmatprep.subr.bf16.mxu0 0
    %2928 = vmatpush2.bf16.msra.mxu0 0
    %2929 = vmatprep.subr.bf16.mxu0 0
    %2930 = vmatpush2.bf16.msra.mxu0 0
    %2931 = vmatprep.subr.bf16.mxu0 0
    %2932 = vmatpush2.bf16.msra.mxu0 0
    %2933 = vmatprep.subr.bf16.mxu0 0
    %2934 = vmatpush2.bf16.msra.mxu0 0
    %2935 = vmatprep.mubr.bf16.mxu0 0
    %2936 = vmatmul.mubr.bf16.gmra.mxu0 %v2887
    %v2937 = vpop.f32.mrf.mxu0
    %v2938 = vadd.f32 %v2778, %v2937
    %v2939 = vpop.f32.mrf.mxu0
    %v2940 = vpop.f32.mrf.mxu0
    %v2941 = vadd.f32 %v2783, %v2940
    %v2942 = vpop.f32.mrf.mxu0
    %2943 = vmatprep.mubr.bf16.mxu0 0
    %2944 = vmatmul.mubr.bf16.gmra.mxu0 %v2888
    %v2945 = vpop.f32.mrf.mxu0
    %v2946 = vadd.f32 %v2788, %v2945
    %v2947 = vpop.f32.mrf.mxu0
    %v2948 = vpop.f32.mrf.mxu0
    %v2949 = vadd.f32 %v2793, %v2948
    %v2950 = vpop.f32.mrf.mxu0
    %2951 = vmatprep.mubr.bf16.mxu0 0
    %2952 = vmatmul.mubr.bf16.gmra.mxu0 %v2889
    %v2953 = vpop.f32.mrf.mxu0
    %v2954 = vadd.f32 %v2798, %v2953
    %v2955 = vpop.f32.mrf.mxu0
    %v2956 = vpop.f32.mrf.mxu0
    %v2957 = vadd.f32 %v2803, %v2956
    %v2958 = vpop.f32.mrf.mxu0
    %2959 = vmatprep.mubr.bf16.mxu0 0
    %2960 = vmatmul.mubr.bf16.gmra.mxu0 %v2890
    %v2961 = vpop.f32.mrf.mxu0
    %v2962 = vadd.f32 %v2808, %v2961
    %v2963 = vpop.f32.mrf.mxu0
    %v2964 = vpop.f32.mrf.mxu0
    %v2965 = vadd.f32 %v2813, %v2964
    %v2966 = vpop.f32.mrf.mxu0
    %2967 = vmatprep.mubr.bf16.mxu0 0
    %2968 = vmatmul.mubr.bf16.gmra.mxu0 %v2891
    %v2969 = vpop.f32.mrf.mxu0
    %v2970 = vadd.f32 %v2818, %v2969
    %v2971 = vpop.f32.mrf.mxu0
    %v2972 = vpop.f32.mrf.mxu0
    %v2973 = vadd.f32 %v2823, %v2972
    %v2974 = vpop.f32.mrf.mxu0
    %2975 = vmatprep.mubr.bf16.mxu0 0
    %2976 = vmatmul.mubr.bf16.gmra.mxu0 %v2892
    %v2977 = vpop.f32.mrf.mxu0
    %v2978 = vadd.f32 %v2828, %v2977
    %v2979 = vpop.f32.mrf.mxu0
    %v2980 = vpop.f32.mrf.mxu0
    %v2981 = vadd.f32 %v2833, %v2980
    %v2982 = vpop.f32.mrf.mxu0
    %2983 = vmatprep.mubr.bf16.mxu0 0
    %2984 = vmatmul.mubr.bf16.gmra.mxu0 %v2893
    %v2985 = vpop.f32.mrf.mxu0
    %v2986 = vadd.f32 %v2838, %v2985
    %v2987 = vpop.f32.mrf.mxu0
    %v2988 = vpop.f32.mrf.mxu0
    %v2989 = vadd.f32 %v2843, %v2988
    %v2990 = vpop.f32.mrf.mxu0
    %2991 = vmatprep.mubr.bf16.mxu0 0
    %2992 = vmatmul.mubr.bf16.gmra.mxu0 %v2894
    %v2993 = vpop.f32.mrf.mxu0
    %v2994 = vadd.f32 %v2848, %v2993
    %v2995 = vpop.f32.mrf.mxu0
    %v2996 = vpop.f32.mrf.mxu0
    %v2997 = vadd.f32 %v2853, %v2996
    %v2998 = vpop.f32.mrf.mxu0
    %2999 = vdwg.mxu0
    %vm3000 = vcmp.ge.f32.partialorder %v2938, 0.0
    %vm3001 = vcmp.ge.f32.partialorder %v2941, 0.0
    %vm3002 = vcmp.ge.f32.partialorder %v2946, 0.0
    %vm3003 = vcmp.ge.f32.partialorder %v2949, 0.0
    %vm3004 = vcmp.ge.f32.partialorder %v2954, 0.0
    %vm3005 = vcmp.ge.f32.partialorder %v2957, 0.0
    %vm3006 = vcmp.ge.f32.partialorder %v2962, 0.0
    %vm3007 = vcmp.ge.f32.partialorder %v2965, 0.0
    %vm3008 = vcmp.ge.f32.partialorder %v2970, 0.0
    %vm3009 = vcmp.ge.f32.partialorder %v2973, 0.0
    %vm3010 = vcmp.ge.f32.partialorder %v2978, 0.0
    %vm3011 = vcmp.ge.f32.partialorder %v2981, 0.0
    %vm3012 = vcmp.ge.f32.partialorder %v2986, 0.0
    %vm3013 = vcmp.ge.f32.partialorder %v2989, 0.0
    %vm3014 = vcmp.ge.f32.partialorder %v2994, 0.0
    %vm3015 = vcmp.ge.f32.partialorder %v2997, 0.0
    %v3016 = vmul.f32 %v2938, 0.01
    %v3017 = vmul.f32 %v2941, 0.01
    %v3018 = vmul.f32 %v2946, 0.01
    %v3019 = vmul.f32 %v2949, 0.01
    %v3020 = vmul.f32 %v2954, 0.01
    %v3021 = vmul.f32 %v2957, 0.01
    %v3022 = vmul.f32 %v2962, 0.01
    %v3023 = vmul.f32 %v2965, 0.01
    %v3024 = vmul.f32 %v2970, 0.01
    %v3025 = vmul.f32 %v2973, 0.01
    %v3026 = vmul.f32 %v2978, 0.01
    %v3027 = vmul.f32 %v2981, 0.01
    %v3028 = vmul.f32 %v2986, 0.01
    %v3029 = vmul.f32 %v2989, 0.01
    %v3030 = vmul.f32 %v2994, 0.01
    %v3031 = vmul.f32 %v2997, 0.01
    %v3032 = vsel %vm3000, %v2938, %v3016
    %v3033 = vsel %vm3001, %v2941, %v3017
    %v3034 = vsel %vm3002, %v2946, %v3018
    %v3035 = vsel %vm3003, %v2949, %v3019
    %v3036 = vsel %vm3004, %v2954, %v3020
    %v3037 = vsel %vm3005, %v2957, %v3021
    %v3038 = vsel %vm3006, %v2962, %v3022
    %v3039 = vsel %vm3007, %v2965, %v3023
    %v3040 = vsel %vm3008, %v2970, %v3024
    %v3041 = vsel %vm3009, %v2973, %v3025
    %v3042 = vsel %vm3010, %v2978, %v3026
    %v3043 = vsel %vm3011, %v2981, %v3027
    %v3044 = vsel %vm3012, %v2986, %v3028
    %v3045 = vsel %vm3013, %v2989, %v3029
    %v3046 = vsel %vm3014, %v2994, %v3030
    %v3047 = vsel %vm3015, %v2997, %v3031
    %s3048 = scalar_lea.vmem %s3, 1
    %v3049 = vld [vmem:[%s3048] sm:$0x1]
    %v3050 = vpack.c.bf16 %v3033, %v3032
    %v3051 = vpack.c.bf16 %v3035, %v3034
    %v3052 = vpack.c.bf16 %v3037, %v3036
    %v3053 = vpack.c.bf16 %v3039, %v3038
    %v3054 = vpack.c.bf16 %v3041, %v3040
    %v3055 = vpack.c.bf16 %v3043, %v3042
    %v3056 = vpack.c.bf16 %v3045, %v3044
    %v3057 = vpack.c.bf16 %v3047, %v3046
    %s3058 = scalar_lea.vmem %s4, 2
    %v3059 = vld [vmem:[%s3058] sm:$0x3]
    %3061 = vset.pattern.permute.xlu0 0
    %3062 = vperm.xlu0 %3061, %v3059
    %v3063 = vpop.permute.xlu0 %3062
    %3065 = vmatprep.subr.bf16.mxu0 0
    %3066 = vmatpush1.bf16.msra.mxu0 %v3057
    %3067 = vmatprep.subr.bf16.mxu0 0
    %3068 = vmatpush1.bf16.msra.mxu0 %v3056
    %3069 = vmatprep.subr.bf16.mxu0 0
    %3070 = vmatpush1.bf16.msra.mxu0 %v3055
    %3071 = vmatprep.subr.bf16.mxu0 0
    %3072 = vmatpush1.bf16.msra.mxu0 %v3054
    %3073 = vmatprep.subr.bf16.mxu0 0
    %3074 = vmatpush1.bf16.msra.mxu0 %v3053
    %3075 = vmatprep.subr.bf16.mxu0 0
    %3076 = vmatpush1.bf16.msra.mxu0 %v3052
    %3077 = vmatprep.subr.bf16.mxu0 0
    %3078 = vmatpush1.bf16.msra.mxu0 %v3051
    %3079 = vmatprep.subr.bf16.mxu0 0
    %3080 = vmatpush1.bf16.msra.mxu0 %v3050
    %3081 = vmatprep.subr.bf16.mxu0 0
    %3082 = vmatpush2.bf16.msra.mxu0 0
    %3083 = vmatprep.subr.bf16.mxu0 0
    %3084 = vmatpush2.bf16.msra.mxu0 0
    %3085 = vmatprep.subr.bf16.mxu0 0
    %3086 = vmatpush2.bf16.msra.mxu0 0
    %3087 = vmatprep.subr.bf16.mxu0 0
    %3088 = vmatpush2.bf16.msra.mxu0 0
    %3089 = vmatprep.subr.bf16.mxu0 0
    %3090 = vmatpush2.bf16.msra.mxu0 0
    %3091 = vmatprep.subr.bf16.mxu0 0
    %3092 = vmatpush2.bf16.msra.mxu0 0
    %3093 = vmatprep.subr.bf16.mxu0 0
    %3094 = vmatpush2.bf16.msra.mxu0 0
    %3095 = vmatprep.subr.bf16.mxu0 0
    %3096 = vmatpush2.bf16.msra.mxu0 0
    %3097 = vmatprep.mubr.bf16.mxu0 0
    %3098 = vmatmul.mubr.bf16.gmra.mxu0 %v3049
    %v3099 = vpop.f32.mrf.mxu0
    %v3100 = vadd.f32 %v3063, %v3099
    %v3101 = vpop.f32.mrf.mxu0
    %v3102 = vpop.f32.mrf.mxu0
    %v3103 = vpop.f32.mrf.mxu0
    %3104 = vdwg.mxu0
    %v3105 = vtanh.pop %v3100
    %v3106 = vsub.f32 %v1879, %v3100
    %v3107 = vsub.f32 0.0, %v3105
    %v3108 = vmul.f32 %v3107, 1.442695
    %v3109 = vpow.pop %v3108
    %v3111 = vrot.slane %v3109, 7
    %v3113 = vmul.f32 %v3106, %v3111
    %v3114 = vsub.f32 %v2497, %v3105
    %v3115 = vlaneseq
    %v3116 = vshrl.u32 %v3115, 7
    %v3117 = vsub.s32 1, %v3116
    %v3118 = vrot.slane %v3113, %v3117
    %v3119 = vsel %vm28, %v3118, 1.0
    %v3120 = vpack.c.bf16 %v3119, %v3119
    %v3121 = vld [vmem:[%s0] sm:$0xf]
    %v3122 = vld [vmem:[%s0 + $0x4] sm:$0xf]
    %v3123 = vld [vmem:[%s0 + $0x8] sm:$0xf]
    %v3124 = vld [vmem:[%s0 + $0xc] sm:$0xf]
    %v3125 = vld [vmem:[%s0 + $0x10] sm:$0xf]
    %v3126 = vld [vmem:[%s0 + $0x14] sm:$0xf]
    %v3127 = vld [vmem:[%s0 + $0x18] sm:$0xf]
    %v3128 = vld [vmem:[%s0 + $0x1c] sm:$0xf]
    %v3129 = vld [vmem:[%s0 + $0x20] sm:$0xf]
    %v3130 = vld [vmem:[%s0 + $0x24] sm:$0xf]
    %v3131 = vld [vmem:[%s0 + $0x28] sm:$0xf]
    %v3132 = vld [vmem:[%s0 + $0x2c] sm:$0xf]
    %v3133 = vld [vmem:[%s0 + $0x30] sm:$0xf]
    %v3134 = vld [vmem:[%s0 + $0x34] sm:$0xf]
    %v3135 = vld [vmem:[%s0 + $0x38] sm:$0xf]
    %v3136 = vld [vmem:[%s0 + $0x3c] sm:$0xf]
    %v3153 = vunpack.c.l.b16 %v3121
    %v3154 = vunpack.c.l.b16 %v3122
    %v3155 = vunpack.c.l.b16 %v3123
    %v3156 = vunpack.c.l.b16 %v3124
    %v3157 = vunpack.c.l.b16 %v3125
    %v3158 = vunpack.c.l.b16 %v3126
    %v3159 = vunpack.c.l.b16 %v3127
    %v3160 = vunpack.c.l.b16 %v3128
    %v3161 = vunpack.c.l.b16 %v3129
    %v3162 = vunpack.c.l.b16 %v3130
    %v3163 = vunpack.c.l.b16 %v3131
    %v3164 = vunpack.c.l.b16 %v3132
    %v3165 = vunpack.c.l.b16 %v3133
    %v3166 = vunpack.c.l.b16 %v3134
    %v3167 = vunpack.c.l.b16 %v3135
    %v3168 = vunpack.c.l.b16 %v3136
    %v3169 = vpack.c.b16 %v3154, %v3153
    %v3170 = vpack.c.b16 %v3156, %v3155
    %v3171 = vpack.c.b16 %v3158, %v3157
    %v3172 = vpack.c.b16 %v3160, %v3159
    %v3173 = vpack.c.b16 %v3162, %v3161
    %v3174 = vpack.c.b16 %v3164, %v3163
    %v3175 = vpack.c.b16 %v3166, %v3165
    %v3176 = vpack.c.b16 %v3168, %v3167
    %v3178 = vsel %vm92, %v3169, 0
    %v3181 = vsel %vm92, %v3170, 0
    %v3184 = vsel %vm92, %v3171, 0
    %v3187 = vsel %vm92, %v3172, 0
    %v3190 = vsel %vm92, %v3173, 0
    %v3193 = vsel %vm92, %v3174, 0
    %v3196 = vsel %vm92, %v3175, 0
    %v3199 = vsel %vm92, %v3176, 0
    %v3202 = vsel %vm117, %v3120, 0
    %3204 = vmatprep.subr.bf16.mxu0 0
    %3205 = vmatpush1.bf16.msra.mxu0 0
    %3206 = vmatprep.subr.bf16.mxu0 0
    %3207 = vmatpush1.bf16.msra.mxu0 0
    %3208 = vmatprep.subr.bf16.mxu0 0
    %3209 = vmatpush1.bf16.msra.mxu0 0
    %3210 = vmatprep.subr.bf16.mxu0 0
    %3211 = vmatpush1.bf16.msra.mxu0 0
    %3212 = vmatprep.subr.bf16.mxu0 0
    %3213 = vmatpush1.bf16.msra.mxu0 0
    %3214 = vmatprep.subr.bf16.mxu0 0
    %3215 = vmatpush1.bf16.msra.mxu0 0
    %3216 = vmatprep.subr.bf16.mxu0 0
    %3217 = vmatpush1.bf16.msra.mxu0 0
    %3218 = vmatprep.subr.bf16.mxu0 0
    %3219 = vmatpush1.bf16.msra.mxu0 %v3202
    %3220 = vmatprep.subr.bf16.mxu0 0
    %3221 = vmatpush2.bf16.msra.mxu0 0
    %3222 = vmatprep.subr.bf16.mxu0 0
    %3223 = vmatpush2.bf16.msra.mxu0 0
    %3224 = vmatprep.subr.bf16.mxu0 0
    %3225 = vmatpush2.bf16.msra.mxu0 0
    %3226 = vmatprep.subr.bf16.mxu0 0
    %3227 = vmatpush2.bf16.msra.mxu0 0
    %3228 = vmatprep.subr.bf16.mxu0 0
    %3229 = vmatpush2.bf16.msra.mxu0 0
    %3230 = vmatprep.subr.bf16.mxu0 0
    %3231 = vmatpush2.bf16.msra.mxu0 0
    %3232 = vmatprep.subr.bf16.mxu0 0
    %3233 = vmatpush2.bf16.msra.mxu0 0
    %3234 = vmatprep.subr.bf16.mxu0 0
    %3235 = vmatpush2.bf16.msra.mxu0 0
    %3236 = vmatprep.mubr.bf16.mxu0 0
    %3237 = vmatmul.mubr.bf16.gmra.mxu0 %v3178
    %v3238 = vpop.f32.mrf.mxu0
    %v3239 = vadd.f32 0.0, %v3238
    %v3240 = vpop.f32.mrf.mxu0
    %v3241 = vpop.f32.mrf.mxu0
    %v3242 = vadd.f32 0.0, %v3241
    %v3243 = vpop.f32.mrf.mxu0
    %3244 = vmatprep.mubr.bf16.mxu0 0
    %3245 = vmatmul.mubr.bf16.gmra.mxu0 %v3181
    %v3246 = vpop.f32.mrf.mxu0
    %v3247 = vadd.f32 0.0, %v3246
    %v3248 = vpop.f32.mrf.mxu0
    %v3249 = vpop.f32.mrf.mxu0
    %v3250 = vadd.f32 0.0, %v3249
    %v3251 = vpop.f32.mrf.mxu0
    %3252 = vmatprep.mubr.bf16.mxu0 0
    %3253 = vmatmul.mubr.bf16.gmra.mxu0 %v3184
    %v3254 = vpop.f32.mrf.mxu0
    %v3255 = vadd.f32 0.0, %v3254
    %v3256 = vpop.f32.mrf.mxu0
    %v3257 = vpop.f32.mrf.mxu0
    %v3258 = vadd.f32 0.0, %v3257
    %v3259 = vpop.f32.mrf.mxu0
    %3260 = vmatprep.mubr.bf16.mxu0 0
    %3261 = vmatmul.mubr.bf16.gmra.mxu0 %v3187
    %v3262 = vpop.f32.mrf.mxu0
    %v3263 = vadd.f32 0.0, %v3262
    %v3264 = vpop.f32.mrf.mxu0
    %v3265 = vpop.f32.mrf.mxu0
    %v3266 = vadd.f32 0.0, %v3265
    %v3267 = vpop.f32.mrf.mxu0
    %3268 = vmatprep.mubr.bf16.mxu0 0
    %3269 = vmatmul.mubr.bf16.gmra.mxu0 %v3190
    %v3270 = vpop.f32.mrf.mxu0
    %v3271 = vadd.f32 0.0, %v3270
    %v3272 = vpop.f32.mrf.mxu0
    %v3273 = vpop.f32.mrf.mxu0
    %v3274 = vadd.f32 0.0, %v3273
    %v3275 = vpop.f32.mrf.mxu0
    %3276 = vmatprep.mubr.bf16.mxu0 0
    %3277 = vmatmul.mubr.bf16.gmra.mxu0 %v3193
    %v3278 = vpop.f32.mrf.mxu0
    %v3279 = vadd.f32 0.0, %v3278
    %v3280 = vpop.f32.mrf.mxu0
    %v3281 = vpop.f32.mrf.mxu0
    %v3282 = vadd.f32 0.0, %v3281
    %v3283 = vpop.f32.mrf.mxu0
    %3284 = vmatprep.mubr.bf16.mxu0 0
    %3285 = vmatmul.mubr.bf16.gmra.mxu0 %v3196
    %v3286 = vpop.f32.mrf.mxu0
    %v3287 = vadd.f32 0.0, %v3286
    %v3288 = vpop.f32.mrf.mxu0
    %v3289 = vpop.f32.mrf.mxu0
    %v3290 = vadd.f32 0.0, %v3289
    %v3291 = vpop.f32.mrf.mxu0
    %3292 = vmatprep.mubr.bf16.mxu0 0
    %3293 = vmatmul.mubr.bf16.gmra.mxu0 %v3199
    %v3294 = vpop.f32.mrf.mxu0
    %v3295 = vadd.f32 0.0, %v3294
    %v3296 = vpop.f32.mrf.mxu0
    %v3297 = vpop.f32.mrf.mxu0
    %v3298 = vadd.f32 0.0, %v3297
    %v3299 = vpop.f32.mrf.mxu0
    %3300 = vdwg.mxu0
    %vm3301 = vcmp.ge.f32.partialorder %v3239, 0.0
    %vm3302 = vcmp.ge.f32.partialorder %v3242, 0.0
    %vm3303 = vcmp.ge.f32.partialorder %v3247, 0.0
    %vm3304 = vcmp.ge.f32.partialorder %v3250, 0.0
    %vm3305 = vcmp.ge.f32.partialorder %v3255, 0.0
    %vm3306 = vcmp.ge.f32.partialorder %v3258, 0.0
    %vm3307 = vcmp.ge.f32.partialorder %v3263, 0.0
    %vm3308 = vcmp.ge.f32.partialorder %v3266, 0.0
    %vm3309 = vcmp.ge.f32.partialorder %v3271, 0.0
    %vm3310 = vcmp.ge.f32.partialorder %v3274, 0.0
    %vm3311 = vcmp.ge.f32.partialorder %v3279, 0.0
    %vm3312 = vcmp.ge.f32.partialorder %v3282, 0.0
    %vm3313 = vcmp.ge.f32.partialorder %v3287, 0.0
    %vm3314 = vcmp.ge.f32.partialorder %v3290, 0.0
    %vm3315 = vcmp.ge.f32.partialorder %v3295, 0.0
    %vm3316 = vcmp.ge.f32.partialorder %v3298, 0.0
    %v3317 = vmul.f32 %v3239, 0.01
    %v3318 = vmul.f32 %v3242, 0.01
    %v3319 = vmul.f32 %v3247, 0.01
    %v3320 = vmul.f32 %v3250, 0.01
    %v3321 = vmul.f32 %v3255, 0.01
    %v3322 = vmul.f32 %v3258, 0.01
    %v3323 = vmul.f32 %v3263, 0.01
    %v3324 = vmul.f32 %v3266, 0.01
    %v3325 = vmul.f32 %v3271, 0.01
    %v3326 = vmul.f32 %v3274, 0.01
    %v3327 = vmul.f32 %v3279, 0.01
    %v3328 = vmul.f32 %v3282, 0.01
    %v3329 = vmul.f32 %v3287, 0.01
    %v3330 = vmul.f32 %v3290, 0.01
    %v3331 = vmul.f32 %v3295, 0.01
    %v3332 = vmul.f32 %v3298, 0.01
    %v3333 = vsel %vm3301, %v3239, %v3317
    %v3334 = vsel %vm3302, %v3242, %v3318
    %v3335 = vsel %vm3303, %v3247, %v3319
    %v3336 = vsel %vm3304, %v3250, %v3320
    %v3337 = vsel %vm3305, %v3255, %v3321
    %v3338 = vsel %vm3306, %v3258, %v3322
    %v3339 = vsel %vm3307, %v3263, %v3323
    %v3340 = vsel %vm3308, %v3266, %v3324
    %v3341 = vsel %vm3309, %v3271, %v3325
    %v3342 = vsel %vm3310, %v3274, %v3326
    %v3343 = vsel %vm3311, %v3279, %v3327
    %v3344 = vsel %vm3312, %v3282, %v3328
    %v3345 = vsel %vm3313, %v3287, %v3329
    %v3346 = vsel %vm3314, %v3290, %v3330
    %v3347 = vsel %vm3315, %v3295, %v3331
    %v3348 = vsel %vm3316, %v3298, %v3332
    %v3349 = vld [vmem:[%s1] sm:$0xf]
    %v3350 = vld [vmem:[%s1 + $0x4] sm:$0xf]
    %v3351 = vld [vmem:[%s1 + $0x8] sm:$0xf]
    %v3352 = vld [vmem:[%s1 + $0xc] sm:$0xf]
    %v3353 = vld [vmem:[%s1 + $0x10] sm:$0xf]
    %v3354 = vld [vmem:[%s1 + $0x14] sm:$0xf]
    %v3355 = vld [vmem:[%s1 + $0x18] sm:$0xf]
    %v3356 = vld [vmem:[%s1 + $0x1c] sm:$0xf]
    %v3357 = vld [vmem:[%s1 + $0x20] sm:$0xf]
    %v3358 = vld [vmem:[%s1 + $0x24] sm:$0xf]
    %v3359 = vld [vmem:[%s1 + $0x28] sm:$0xf]
    %v3360 = vld [vmem:[%s1 + $0x2c] sm:$0xf]
    %v3361 = vld [vmem:[%s1 + $0x30] sm:$0xf]
    %v3362 = vld [vmem:[%s1 + $0x34] sm:$0xf]
    %v3363 = vld [vmem:[%s1 + $0x38] sm:$0xf]
    %v3364 = vld [vmem:[%s1 + $0x3c] sm:$0xf]
    %v3365 = vpack.c.bf16 %v3334, %v3333
    %v3366 = vpack.c.bf16 %v3336, %v3335
    %v3367 = vpack.c.bf16 %v3338, %v3337
    %v3368 = vpack.c.bf16 %v3340, %v3339
    %v3369 = vpack.c.bf16 %v3342, %v3341
    %v3370 = vpack.c.bf16 %v3344, %v3343
    %v3371 = vpack.c.bf16 %v3346, %v3345
    %v3372 = vpack.c.bf16 %v3348, %v3347
    %v3373 = vld [vmem:[%s2] sm:$0xff]
    %v3374 = vld [vmem:[%s2 + $0x8] sm:$0xff]
    %v3375 = vld [vmem:[%s2 + $0x10] sm:$0xff]
    %v3376 = vld [vmem:[%s2 + $0x18] sm:$0xff]
    %v3377 = vld [vmem:[%s2 + $0x20] sm:$0xff]
    %v3378 = vld [vmem:[%s2 + $0x28] sm:$0xff]
    %v3379 = vld [vmem:[%s2 + $0x30] sm:$0xff]
    %v3380 = vld [vmem:[%s2 + $0x38] sm:$0xff]
    %v3381 = vld [vmem:[%s2 + $0x40] sm:$0xff]
    %v3382 = vld [vmem:[%s2 + $0x48] sm:$0xff]
    %v3383 = vld [vmem:[%s2 + $0x50] sm:$0xff]
    %v3384 = vld [vmem:[%s2 + $0x58] sm:$0xff]
    %v3385 = vld [vmem:[%s2 + $0x60] sm:$0xff]
    %v3386 = vld [vmem:[%s2 + $0x68] sm:$0xff]
    %v3387 = vld [vmem:[%s2 + $0x70] sm:$0xff]
    %v3388 = vld [vmem:[%s2 + $0x78] sm:$0xff]
    %3390 = vset.pattern.permute.xlu0 0
    %3391 = vperm.xlu0 %3390, %v3373
    %v3392 = vpop.permute.xlu0 %3391
    %3395 = vset.pattern.permute.xlu0 0
    %3396 = vperm.xlu0 %3395, %v3374
    %v3397 = vpop.permute.xlu0 %3396
    %3400 = vset.pattern.permute.xlu0 0
    %3401 = vperm.xlu0 %3400, %v3375
    %v3402 = vpop.permute.xlu0 %3401
    %3405 = vset.pattern.permute.xlu0 0
    %3406 = vperm.xlu0 %3405, %v3376
    %v3407 = vpop.permute.xlu0 %3406
    %3410 = vset.pattern.permute.xlu0 0
    %3411 = vperm.xlu0 %3410, %v3377
    %v3412 = vpop.permute.xlu0 %3411
    %3415 = vset.pattern.permute.xlu0 0
    %3416 = vperm.xlu0 %3415, %v3378
    %v3417 = vpop.permute.xlu0 %3416
    %3420 = vset.pattern.permute.xlu0 0
    %3421 = vperm.xlu0 %3420, %v3379
    %v3422 = vpop.permute.xlu0 %3421
    %3425 = vset.pattern.permute.xlu0 0
    %3426 = vperm.xlu0 %3425, %v3380
    %v3427 = vpop.permute.xlu0 %3426
    %3430 = vset.pattern.permute.xlu0 0
    %3431 = vperm.xlu0 %3430, %v3381
    %v3432 = vpop.permute.xlu0 %3431
    %3435 = vset.pattern.permute.xlu0 0
    %3436 = vperm.xlu0 %3435, %v3382
    %v3437 = vpop.permute.xlu0 %3436
    %3440 = vset.pattern.permute.xlu0 0
    %3441 = vperm.xlu0 %3440, %v3383
    %v3442 = vpop.permute.xlu0 %3441
    %3445 = vset.pattern.permute.xlu0 0
    %3446 = vperm.xlu0 %3445, %v3384
    %v3447 = vpop.permute.xlu0 %3446
    %3450 = vset.pattern.permute.xlu0 0
    %3451 = vperm.xlu0 %3450, %v3385
    %v3452 = vpop.permute.xlu0 %3451
    %3455 = vset.pattern.permute.xlu0 0
    %3456 = vperm.xlu0 %3455, %v3386
    %v3457 = vpop.permute.xlu0 %3456
    %3460 = vset.pattern.permute.xlu0 0
    %3461 = vperm.xlu0 %3460, %v3387
    %v3462 = vpop.permute.xlu0 %3461
    %3465 = vset.pattern.permute.xlu0 0
    %3466 = vperm.xlu0 %3465, %v3388
    %v3467 = vpop.permute.xlu0 %3466
    %v3485 = vunpack.c.l.b16 %v3349
    %v3486 = vunpack.c.l.b16 %v3350
    %v3487 = vunpack.c.l.b16 %v3351
    %v3488 = vunpack.c.l.b16 %v3352
    %v3489 = vunpack.c.l.b16 %v3353
    %v3490 = vunpack.c.l.b16 %v3354
    %v3491 = vunpack.c.l.b16 %v3355
    %v3492 = vunpack.c.l.b16 %v3356
    %v3493 = vunpack.c.l.b16 %v3357
    %v3494 = vunpack.c.l.b16 %v3358
    %v3495 = vunpack.c.l.b16 %v3359
    %v3496 = vunpack.c.l.b16 %v3360
    %v3497 = vunpack.c.l.b16 %v3361
    %v3498 = vunpack.c.l.b16 %v3362
    %v3499 = vunpack.c.l.b16 %v3363
    %v3500 = vunpack.c.l.b16 %v3364
    %v3501 = vpack.c.b16 %v3486, %v3485
    %v3502 = vpack.c.b16 %v3488, %v3487
    %v3503 = vpack.c.b16 %v3490, %v3489
    %v3504 = vpack.c.b16 %v3492, %v3491
    %v3505 = vpack.c.b16 %v3494, %v3493
    %v3506 = vpack.c.b16 %v3496, %v3495
    %v3507 = vpack.c.b16 %v3498, %v3497
    %v3508 = vpack.c.b16 %v3500, %v3499
    %3517 = vmatprep.subr.bf16.mxu0 0
    %3518 = vmatpush1.bf16.msra.mxu0 %v3372
    %3519 = vmatprep.subr.bf16.mxu0 0
    %3520 = vmatpush1.bf16.msra.mxu0 %v3371
    %3521 = vmatprep.subr.bf16.mxu0 0
    %3522 = vmatpush1.bf16.msra.mxu0 %v3370
    %3523 = vmatprep.subr.bf16.mxu0 0
    %3524 = vmatpush1.bf16.msra.mxu0 %v3369
    %3525 = vmatprep.subr.bf16.mxu0 0
    %3526 = vmatpush1.bf16.msra.mxu0 %v3368
    %3527 = vmatprep.subr.bf16.mxu0 0
    %3528 = vmatpush1.bf16.msra.mxu0 %v3367
    %3529 = vmatprep.subr.bf16.mxu0 0
    %3530 = vmatpush1.bf16.msra.mxu0 %v3366
    %3531 = vmatprep.subr.bf16.mxu0 0
    %3532 = vmatpush1.bf16.msra.mxu0 %v3365
    %3533 = vmatprep.subr.bf16.mxu0 0
    %3534 = vmatpush2.bf16.msra.mxu0 0
    %3535 = vmatprep.subr.bf16.mxu0 0
    %3536 = vmatpush2.bf16.msra.mxu0 0
    %3537 = vmatprep.subr.bf16.mxu0 0
    %3538 = vmatpush2.bf16.msra.mxu0 0
    %3539 = vmatprep.subr.bf16.mxu0 0
    %3540 = vmatpush2.bf16.msra.mxu0 0
    %3541 = vmatprep.subr.bf16.mxu0 0
    %3542 = vmatpush2.bf16.msra.mxu0 0
    %3543 = vmatprep.subr.bf16.mxu0 0
    %3544 = vmatpush2.bf16.msra.mxu0 0
    %3545 = vmatprep.subr.bf16.mxu0 0
    %3546 = vmatpush2.bf16.msra.mxu0 0
    %3547 = vmatprep.subr.bf16.mxu0 0
    %3548 = vmatpush2.bf16.msra.mxu0 0
    %3549 = vmatprep.mubr.bf16.mxu0 0
    %3550 = vmatmul.mubr.bf16.gmra.mxu0 %v3501
    %v3551 = vpop.f32.mrf.mxu0
    %v3552 = vadd.f32 %v3392, %v3551
    %v3553 = vpop.f32.mrf.mxu0
    %v3554 = vpop.f32.mrf.mxu0
    %v3555 = vadd.f32 %v3397, %v3554
    %v3556 = vpop.f32.mrf.mxu0
    %3557 = vmatprep.mubr.bf16.mxu0 0
    %3558 = vmatmul.mubr.bf16.gmra.mxu0 %v3502
    %v3559 = vpop.f32.mrf.mxu0
    %v3560 = vadd.f32 %v3402, %v3559
    %v3561 = vpop.f32.mrf.mxu0
    %v3562 = vpop.f32.mrf.mxu0
    %v3563 = vadd.f32 %v3407, %v3562
    %v3564 = vpop.f32.mrf.mxu0
    %3565 = vmatprep.mubr.bf16.mxu0 0
    %3566 = vmatmul.mubr.bf16.gmra.mxu0 %v3503
    %v3567 = vpop.f32.mrf.mxu0
    %v3568 = vadd.f32 %v3412, %v3567
    %v3569 = vpop.f32.mrf.mxu0
    %v3570 = vpop.f32.mrf.mxu0
    %v3571 = vadd.f32 %v3417, %v3570
    %v3572 = vpop.f32.mrf.mxu0
    %3573 = vmatprep.mubr.bf16.mxu0 0
    %3574 = vmatmul.mubr.bf16.gmra.mxu0 %v3504
    %v3575 = vpop.f32.mrf.mxu0
    %v3576 = vadd.f32 %v3422, %v3575
    %v3577 = vpop.f32.mrf.mxu0
    %v3578 = vpop.f32.mrf.mxu0
    %v3579 = vadd.f32 %v3427, %v3578
    %v3580 = vpop.f32.mrf.mxu0
    %3581 = vmatprep.mubr.bf16.mxu0 0
    %3582 = vmatmul.mubr.bf16.gmra.mxu0 %v3505
    %v3583 = vpop.f32.mrf.mxu0
    %v3584 = vadd.f32 %v3432, %v3583
    %v3585 = vpop.f32.mrf.mxu0
    %v3586 = vpop.f32.mrf.mxu0
    %v3587 = vadd.f32 %v3437, %v3586
    %v3588 = vpop.f32.mrf.mxu0
    %3589 = vmatprep.mubr.bf16.mxu0 0
    %3590 = vmatmul.mubr.bf16.gmra.mxu0 %v3506
    %v3591 = vpop.f32.mrf.mxu0
    %v3592 = vadd.f32 %v3442, %v3591
    %v3593 = vpop.f32.mrf.mxu0
    %v3594 = vpop.f32.mrf.mxu0
    %v3595 = vadd.f32 %v3447, %v3594
    %v3596 = vpop.f32.mrf.mxu0
    %3597 = vmatprep.mubr.bf16.mxu0 0
    %3598 = vmatmul.mubr.bf16.gmra.mxu0 %v3507
    %v3599 = vpop.f32.mrf.mxu0
    %v3600 = vadd.f32 %v3452, %v3599
    %v3601 = vpop.f32.mrf.mxu0
    %v3602 = vpop.f32.mrf.mxu0
    %v3603 = vadd.f32 %v3457, %v3602
    %v3604 = vpop.f32.mrf.mxu0
    %3605 = vmatprep.mubr.bf16.mxu0 0
    %3606 = vmatmul.mubr.bf16.gmra.mxu0 %v3508
    %v3607 = vpop.f32.mrf.mxu0
    %v3608 = vadd.f32 %v3462, %v3607
    %v3609 = vpop.f32.mrf.mxu0
    %v3610 = vpop.f32.mrf.mxu0
    %v3611 = vadd.f32 %v3467, %v3610
    %v3612 = vpop.f32.mrf.mxu0
    %3613 = vdwg.mxu0
    %vm3614 = vcmp.ge.f32.partialorder %v3552, 0.0
    %vm3615 = vcmp.ge.f32.partialorder %v3555, 0.0
    %vm3616 = vcmp.ge.f32.partialorder %v3560, 0.0
    %vm3617 = vcmp.ge.f32.partialorder %v3563, 0.0
    %vm3618 = vcmp.ge.f32.partialorder %v3568, 0.0
    %vm3619 = vcmp.ge.f32.partialorder %v3571, 0.0
    %vm3620 = vcmp.ge.f32.partialorder %v3576, 0.0
    %vm3621 = vcmp.ge.f32.partialorder %v3579, 0.0
    %vm3622 = vcmp.ge.f32.partialorder %v3584, 0.0
    %vm3623 = vcmp.ge.f32.partialorder %v3587, 0.0
    %vm3624 = vcmp.ge.f32.partialorder %v3592, 0.0
    %vm3625 = vcmp.ge.f32.partialorder %v3595, 0.0
    %vm3626 = vcmp.ge.f32.partialorder %v3600, 0.0
    %vm3627 = vcmp.ge.f32.partialorder %v3603, 0.0
    %vm3628 = vcmp.ge.f32.partialorder %v3608, 0.0
    %vm3629 = vcmp.ge.f32.partialorder %v3611, 0.0
    %v3630 = vmul.f32 %v3552, 0.01
    %v3631 = vmul.f32 %v3555, 0.01
    %v3632 = vmul.f32 %v3560, 0.01
    %v3633 = vmul.f32 %v3563, 0.01
    %v3634 = vmul.f32 %v3568, 0.01
    %v3635 = vmul.f32 %v3571, 0.01
    %v3636 = vmul.f32 %v3576, 0.01
    %v3637 = vmul.f32 %v3579, 0.01
    %v3638 = vmul.f32 %v3584, 0.01
    %v3639 = vmul.f32 %v3587, 0.01
    %v3640 = vmul.f32 %v3592, 0.01
    %v3641 = vmul.f32 %v3595, 0.01
    %v3642 = vmul.f32 %v3600, 0.01
    %v3643 = vmul.f32 %v3603, 0.01
    %v3644 = vmul.f32 %v3608, 0.01
    %v3645 = vmul.f32 %v3611, 0.01
    %v3646 = vsel %vm3614, %v3552, %v3630
    %v3647 = vsel %vm3615, %v3555, %v3631
    %v3648 = vsel %vm3616, %v3560, %v3632
    %v3649 = vsel %vm3617, %v3563, %v3633
    %v3650 = vsel %vm3618, %v3568, %v3634
    %v3651 = vsel %vm3619, %v3571, %v3635
    %v3652 = vsel %vm3620, %v3576, %v3636
    %v3653 = vsel %vm3621, %v3579, %v3637
    %v3654 = vsel %vm3622, %v3584, %v3638
    %v3655 = vsel %vm3623, %v3587, %v3639
    %v3656 = vsel %vm3624, %v3592, %v3640
    %v3657 = vsel %vm3625, %v3595, %v3641
    %v3658 = vsel %vm3626, %v3600, %v3642
    %v3659 = vsel %vm3627, %v3603, %v3643
    %v3660 = vsel %vm3628, %v3608, %v3644
    %v3661 = vsel %vm3629, %v3611, %v3645
    %v3662 = vld [vmem:[%s3] sm:$0x1]
    %v3663 = vpack.c.bf16 %v3647, %v3646
    %v3664 = vpack.c.bf16 %v3649, %v3648
    %v3665 = vpack.c.bf16 %v3651, %v3650
    %v3666 = vpack.c.bf16 %v3653, %v3652
    %v3667 = vpack.c.bf16 %v3655, %v3654
    %v3668 = vpack.c.bf16 %v3657, %v3656
    %v3669 = vpack.c.bf16 %v3659, %v3658
    %v3670 = vpack.c.bf16 %v3661, %v3660
    %v3671 = vld [vmem:[%s4] sm:$0x3]
    %3673 = vset.pattern.permute.xlu0 0
    %3674 = vperm.xlu0 %3673, %v3671
    %v3675 = vpop.permute.xlu0 %3674
    %3677 = vmatprep.subr.bf16.mxu0 0
    %3678 = vmatpush1.bf16.msra.mxu0 %v3670
    %3679 = vmatprep.subr.bf16.mxu0 0
    %3680 = vmatpush1.bf16.msra.mxu0 %v3669
    %3681 = vmatprep.subr.bf16.mxu0 0
    %3682 = vmatpush1.bf16.msra.mxu0 %v3668
    %3683 = vmatprep.subr.bf16.mxu0 0
    %3684 = vmatpush1.bf16.msra.mxu0 %v3667
    %3685 = vmatprep.subr.bf16.mxu0 0
    %3686 = vmatpush1.bf16.msra.mxu0 %v3666
    %3687 = vmatprep.subr.bf16.mxu0 0
    %3688 = vmatpush1.bf16.msra.mxu0 %v3665
    %3689 = vmatprep.subr.bf16.mxu0 0
    %3690 = vmatpush1.bf16.msra.mxu0 %v3664
    %3691 = vmatprep.subr.bf16.mxu0 0
    %3692 = vmatpush1.bf16.msra.mxu0 %v3663
    %3693 = vmatprep.subr.bf16.mxu0 0
    %3694 = vmatpush2.bf16.msra.mxu0 0
    %3695 = vmatprep.subr.bf16.mxu0 0
    %3696 = vmatpush2.bf16.msra.mxu0 0
    %3697 = vmatprep.subr.bf16.mxu0 0
    %3698 = vmatpush2.bf16.msra.mxu0 0
    %3699 = vmatprep.subr.bf16.mxu0 0
    %3700 = vmatpush2.bf16.msra.mxu0 0
    %3701 = vmatprep.subr.bf16.mxu0 0
    %3702 = vmatpush2.bf16.msra.mxu0 0
    %3703 = vmatprep.subr.bf16.mxu0 0
    %3704 = vmatpush2.bf16.msra.mxu0 0
    %3705 = vmatprep.subr.bf16.mxu0 0
    %3706 = vmatpush2.bf16.msra.mxu0 0
    %3707 = vmatprep.subr.bf16.mxu0 0
    %3708 = vmatpush2.bf16.msra.mxu0 0
    %3709 = vmatprep.mubr.bf16.mxu0 0
    %3710 = vmatmul.mubr.bf16.gmra.mxu0 %v3662
    %v3711 = vpop.f32.mrf.mxu0
    %v3712 = vadd.f32 %v3675, %v3711
    %v3713 = vpop.f32.mrf.mxu0
    %v3714 = vpop.f32.mrf.mxu0
    %v3715 = vpop.f32.mrf.mxu0
    %3716 = vdwg.mxu0
    %v3717 = vtanh.pop %v3712
    %v3719 = vrot.slane %v3712, 1
    %v3721 = vsub.f32 %v2496, %v3719
    %v3722 = vsub.f32 0.0, %v3717
    %v3723 = vmul.f32 %v3722, 1.442695
    %v3724 = vpow.pop %v3723
    %v3725 = vmul.f32 %v3721, %v3724
    %v3726 = vsub.f32 %v3114, %v3717
    %v3727 = vmul.f32 %v3725, %v3725
    %v3728 = vmul.f32 %v3113, %v3113
    %v3730 = vrot.slane %v3728, 1
    %v3732 = vadd.f32 %v3727, %v3730
    %v3733 = vmul.f32 %v3732, -0.5
    %v3734 = vsub.f32 %v3733, 1.837877
    %v3735 = vadd.f32 %v3734, %v3726
    %3736 = vst [vmem:[#allocation2] sm:$0x1] %v3735
    // Predicated region
    $region26: #{tpu_custom_call.1} parent=1 // pred_check
      _
    $region27: #{tpu_custom_call.1} parent=1 // pred_check_branch
      %3738 = sbr.rel (0) target = $region29
    $region28: #{tpu_custom_call.1} parent=1 // pred_region
      %s3740 = ssub.s32 16, 16
      %3741 = vsyncadd [#allocation3], %s3740
      %s3743 = sshll.u32 [#allocation2], 4
      %s3744 = int_to_ptr.vmem [resolvable:$true] %s3743
      %3746 = dma.vmem_to_hbm [thread:$0]  %s3744, 16, %s6, [#allocation3]
    $region29: #{tpu_custom_call.1} parent=1 // pred_fallthru
      _
    // Predicated region
    $region30: #{tpu_custom_call.1} parent=1 // pred_check
      _
    $region31: #{tpu_custom_call.1} parent=1 // pred_check_branch
      %3748 = sbr.rel (0) target = $region33
    $region32: #{tpu_custom_call.1} parent=1 // pred_region
      %3749 = dma.done [#allocation3], 16
    $region33: #{tpu_custom_call.1} parent=1 // pred_fallthru
      _
    %3750 = vsyncpa [#allocation3], 1

</llo_original>
